<compile_context>
chip_gen: v7x
topology: tpu7x:2x2x1
jax: 0.10.0
libtpu: 0.0.40
codegen_flags: <defaults>
</compile_context>

<pallas_src>
import math
import functools

import jax
import jax.numpy as jnp
from jax import lax
from jax.experimental import pallas as pl
from jax.experimental.pallas import tpu as pltpu


def tstrans_kernel(src_ref, pe_ref, emb_w_ref, wqkv_ref, wo_ref, w1_ref, w2_ref,
                   bias_ref, out_ref, *, nhead, batch, seq, d_model, dim_ff):
    f32 = jnp.float32
    bf16 = jnp.bfloat16
    d = d_model
    dh = d // nhead
    BS = batch * seq
    scale = 1.0 / math.sqrt(dh)

    def bf(t):
        return t.astype(bf16)

    # --- slices of the packed small-vector array (one DMA for all of them) --------
    b_qkv = bias_ref[0:1, 0:3 * d]          # (1, 3d)
    b1    = bias_ref[1:2, 0:dim_ff]         # (1, dim_ff)
    bo    = bias_ref[2:3, 0:d]
    ln1_g = bias_ref[3:4, 0:d]
    ln1_b = bias_ref[4:5, 0:d]
    b2    = bias_ref[5:6, 0:d]
    ln2_g = bias_ref[6:7, 0:d]
    ln2_b = bias_ref[7:8, 0:d]
    dec_w = bias_ref[8:9, 0:d]
    dec_b = bias_ref[9:10, 0:1]             # (1, 1)

    # --- embedding (emb bias folded into pe in the wrapper) ------------------------
    x = jnp.dot(bf(src_ref[...]), bf(emb_w_ref[...]),
                preferred_element_type=f32) + pe_ref[...]            # (BS, d) f32

    # --- fused Q/K/V projection: one (BS,d)x(d,3d) matmul --------------------------
    qkv = jnp.dot(bf(x), bf(wqkv_ref[...]), preferred_element_type=f32) + b_qkv

    def heads(t):   # (BS, d) -> (B*H, S, dh)
        return (t.reshape(batch, seq, nhead, dh)
                 .transpose(0, 2, 1, 3)
                 .reshape(batch * nhead, seq, dh))

    q = heads(qkv[:, 0:d]) * scale
    k = heads(qkv[:, d:2 * d])
    v = heads(qkv[:, 2 * d:3 * d])

    # --- batched attention over (batch*head), causal mask built in-kernel ----------
    row = lax.broadcasted_iota(jnp.int32, (seq, seq), 0)   # query index
    col = lax.broadcasted_iota(jnp.int32, (seq, seq), 1)   # key index
    causal = (col <= row)[None, :, :]                      # (1, S, S) bool

    s = jnp.einsum('xqd,xkd->xqk', bf(q), bf(k),
                   preferred_element_type=f32)             # (B*H, S, S) f32
    s = jnp.where(causal, s, -1e30)
    s = s - jnp.max(s, axis=-1, keepdims=True)
    p = jnp.exp(s)
    p = p * pl.reciprocal(jnp.sum(p, axis=-1, keepdims=True), approx=True)

    ctx = jnp.einsum('xqk,xkd->xqd', bf(p), bf(v),
                     preferred_element_type=f32)           # (B*H, S, dh)
    ctx = (ctx.reshape(batch, nhead, seq, dh)
              .transpose(0, 2, 1, 3)
              .reshape(BS, d))                             # (BS, d)

    # --- single output projection against the un-split wo --------------------------
    attn = jnp.dot(bf(ctx), bf(wo_ref[...]), preferred_element_type=f32) + bo

    # --- residual + LayerNorm 1 (post-norm) ----------------------------------------
    h1 = x + attn
    mu = jnp.mean(h1, axis=-1, keepdims=True)
    var = jnp.mean((h1 - mu) ** 2, axis=-1, keepdims=True)
    h1 = (h1 - mu) * lax.rsqrt(var + 1e-5) * ln1_g + ln1_b

    # --- feed-forward (relu) ---------------------------------------------------------
    ff = jnp.dot(bf(h1), bf(w1_ref[...]), preferred_element_type=f32) + b1
    ff = jnp.maximum(ff, 0.0)
    ff = jnp.dot(bf(ff), bf(w2_ref[...]), preferred_element_type=f32) + b2

    # --- residual + LayerNorm 2 -------------------------------------------------------
    h2 = h1 + ff
    mu2 = jnp.mean(h2, axis=-1, keepdims=True)
    var2 = jnp.mean((h2 - mu2) ** 2, axis=-1, keepdims=True)
    h2 = (h2 - mu2) * lax.rsqrt(var2 + 1e-5) * ln2_g + ln2_b

    # --- decoder Linear(d,1) as broadcast-mul + lane-sum, lane-dense (1, BS) out ----
    y = jnp.sum(h2.reshape(1, BS, d) * dec_w.reshape(1, 1, d), axis=-1)  # (1, BS)
    out_ref[...] = y + dec_b


def tstrans_forward(src_sbD, params, *, nhead):
    """src_sbD: (S, B, input_dim) seq-major (PyTorch layout). Returns (S, B, 1)."""
    S, B, input_dim = src_sbD.shape
    d = params["emb_w"].shape[1]
    dim_ff = params["w1"].shape[1]
    assert params["pe"].shape[0] == B, "module's pe broadcast requires max_len == B"
    BS = B * S

    # batch-major flattened rows; no lane padding (full-array BlockSpec of width 11)
    src_flat = jnp.transpose(src_sbD, (1, 0, 2)).reshape(BS, input_dim)

    # pre-expanded positional encoding (+ embedding bias folded in): (BS, d)
    pe_rows = jnp.repeat(params["pe"], S, axis=0) + params["emb_b"]

    # fused QKV weights / biases (layout prep, not compute)
    w_qkv = jnp.concatenate([params["wq"], params["wk"], params["wv"]], axis=1)  # (d, 3d)
    b_qkv = jnp.concatenate([params["bq"], params["bk"], params["bv"]], axis=1)  # (1, 3d)

    # pack all small vectors into ONE array -> one input DMA instead of ~14
    pack_w = max(3 * d, dim_ff)

    def row(v):
        v = v.reshape(1, -1)
        return jnp.pad(v, ((0, 0), (0, pack_w - v.shape[1])))

    bias_pack = jnp.concatenate([
        row(b_qkv), row(params["b1"]), row(params["bo"]),
        row(params["ln1_g"]), row(params["ln1_b"]), row(params["b2"]),
        row(params["ln2_g"]), row(params["ln2_b"]),
        row(params["dec_w"]), row(params["dec_b"]),
    ], axis=0)                                                       # (10, pack_w)

    args = [src_flat, pe_rows, params["emb_w"], w_qkv, params["wo"],
            params["w1"], params["w2"], bias_pack]

    def full_spec(shape):
        n = len(shape)
        return pl.BlockSpec(shape, lambda i, _n=n: (0,) * _n)

    out_row = pl.pallas_call(
        functools.partial(tstrans_kernel, nhead=nhead, batch=B, seq=S,
                          d_model=d, dim_ff=dim_ff),
        out_shape=jax.ShapeDtypeStruct((1, BS), jnp.float32),
        grid=(1,),
        in_specs=[full_spec(a.shape) for a in args],
        out_specs=pl.BlockSpec((1, BS), lambda i: (0, 0)),
        compiler_params=pltpu.CompilerParams(dimension_semantics=("arbitrary",)),
    )(*args)

    # (1, B*S) -> (B, S) -> (S, B, 1)
    return jnp.transpose(out_row.reshape(B, S), (1, 0))[:, :, None]


def make_params(key, *, input_dim, d_model, nhead, dim_ff, max_len):
    ks = jax.random.split(key, 8)
    n = lambda k, shape, s=0.05: (s * jax.random.normal(k, shape)).astype(jnp.float32)
    zeros = lambda shape: jnp.zeros(shape, jnp.float32)
    ones = lambda shape: jnp.ones(shape, jnp.float32)

    # sinusoidal positional-encoding buffer, exactly as in PositionalEncoding.__init__
    position = jnp.arange(max_len, dtype=jnp.float32)[:, None]
    div_term = jnp.exp(jnp.arange(0, d_model, 2, dtype=jnp.float32)
                       * (-math.log(10000.0) / d_model))
    pe = jnp.zeros((max_len, d_model), jnp.float32)
    pe = pe.at[:, 0::2].set(jnp.sin(position * div_term))
    pe = pe.at[:, 1::2].set(jnp.cos(position * div_term))

    return {
        "pe": pe,
        "emb_w": n(ks[0], (input_dim, d_model)), "emb_b": zeros((1, d_model)),
        "wq": n(ks[1], (d_model, d_model)), "bq": zeros((1, d_model)),
        "wk": n(ks[2], (d_model, d_model)), "bk": zeros((1, d_model)),
        "wv": n(ks[3], (d_model, d_model)), "bv": zeros((1, d_model)),
        "wo": n(ks[4], (d_model, d_model)), "bo": zeros((1, d_model)),
        "ln1_g": ones((1, d_model)), "ln1_b": zeros((1, d_model)),
        "w1": n(ks[5], (d_model, dim_ff)), "b1": zeros((1, dim_ff)),
        "w2": n(ks[6], (dim_ff, d_model)), "b2": zeros((1, d_model)),
        "ln2_g": ones((1, d_model)), "ln2_b": zeros((1, d_model)),
        "dec_w": n(ks[7], (d_model, 1)).reshape(1, d_model), "dec_b": zeros((1, 1)),
    }


if __name__ == "__main__":
    # small, structure-preserving hyperparameters
    S, B = 8, 4
    input_dim, d_model, nhead, dim_ff = 11, 64, 4, 128
    max_len = B   # required by the module's literal pe broadcast (see note above)

    key = jax.random.PRNGKey(0)
    k_src, k_par = jax.random.split(key)
    src = jax.random.normal(k_src, (S, B, input_dim), dtype=jnp.float32)
    params = make_params(k_par, input_dim=input_dim, d_model=d_model,
                         nhead=nhead, dim_ff=dim_ff, max_len=max_len)

    out = tstrans_forward(src, params, nhead=nhead)
    out = jax.block_until_ready(out)
    assert out.shape == (S, B, 1)
    assert bool(jnp.all(jnp.isfinite(out)))
    print("KERNEL_OK")
</pallas_src>

<mosaic_0001>
module attributes {stable_mosaic.version = 11 : i64} {
  func.func @tstrans_kernel(%arg0: i32, %arg1: memref<32x11xf32, #tpu.memory_space<vmem>>, %arg2: memref<32x64xf32, #tpu.memory_space<vmem>>, %arg3: memref<11x64xf32, #tpu.memory_space<vmem>>, %arg4: memref<64x192xf32, #tpu.memory_space<vmem>>, %arg5: memref<64x64xf32, #tpu.memory_space<vmem>>, %arg6: memref<64x128xf32, #tpu.memory_space<vmem>>, %arg7: memref<128x64xf32, #tpu.memory_space<vmem>>, %arg8: memref<10x192xf32, #tpu.memory_space<vmem>>, %arg9: memref<1x32xf32, #tpu.memory_space<vmem>>) attributes {dimension_semantics = [#tpu.dimension_semantics<arbitrary>], iteration_bounds = array<i64: 1>, scalar_prefetch = 0 : i64, scratch_operands = 0 : i64, tpu.core_type = #tpu.core_type<tc>, window_params = [{pipeline_mode = #tpu.pipeline_mode<synchronous>, transform_indices = @transform_0, window_bounds = array<i64: 32, 11>}, {pipeline_mode = #tpu.pipeline_mode<synchronous>, transform_indices = @transform_1, window_bounds = array<i64: 32, 64>}, {pipeline_mode = #tpu.pipeline_mode<synchronous>, transform_indices = @transform_2, window_bounds = array<i64: 11, 64>}, {pipeline_mode = #tpu.pipeline_mode<synchronous>, transform_indices = @transform_3, window_bounds = array<i64: 64, 192>}, {pipeline_mode = #tpu.pipeline_mode<synchronous>, transform_indices = @transform_4, window_bounds = array<i64: 64, 64>}, {pipeline_mode = #tpu.pipeline_mode<synchronous>, transform_indices = @transform_5, window_bounds = array<i64: 64, 128>}, {pipeline_mode = #tpu.pipeline_mode<synchronous>, transform_indices = @transform_6, window_bounds = array<i64: 128, 64>}, {pipeline_mode = #tpu.pipeline_mode<synchronous>, transform_indices = @transform_7, window_bounds = array<i64: 10, 192>}, {pipeline_mode = #tpu.pipeline_mode<synchronous>, transform_indices = @transform_8, window_bounds = array<i64: 1, 32>}]} {
    %c0 = arith.constant 0 : index
    %c0_0 = arith.constant 0 : index
    %0 = vector.load %arg8[%c0, %c0_0] : memref<10x192xf32, #tpu.memory_space<vmem>>, vector<1x192xf32>
    %c1 = arith.constant 1 : index
    %c0_1 = arith.constant 0 : index
    %1 = vector.load %arg8[%c1, %c0_1] : memref<10x192xf32, #tpu.memory_space<vmem>>, vector<1x128xf32>
    %c2 = arith.constant 2 : index
    %c0_2 = arith.constant 0 : index
    %2 = vector.load %arg8[%c2, %c0_2] : memref<10x192xf32, #tpu.memory_space<vmem>>, vector<1x64xf32>
    %c3 = arith.constant 3 : index
    %c0_3 = arith.constant 0 : index
    %3 = vector.load %arg8[%c3, %c0_3] : memref<10x192xf32, #tpu.memory_space<vmem>>, vector<1x64xf32>
    %c4 = arith.constant 4 : index
    %c0_4 = arith.constant 0 : index
    %4 = vector.load %arg8[%c4, %c0_4] : memref<10x192xf32, #tpu.memory_space<vmem>>, vector<1x64xf32>
    %c5 = arith.constant 5 : index
    %c0_5 = arith.constant 0 : index
    %5 = vector.load %arg8[%c5, %c0_5] : memref<10x192xf32, #tpu.memory_space<vmem>>, vector<1x64xf32>
    %c6 = arith.constant 6 : index
    %c0_6 = arith.constant 0 : index
    %6 = vector.load %arg8[%c6, %c0_6] : memref<10x192xf32, #tpu.memory_space<vmem>>, vector<1x64xf32>
    %c7 = arith.constant 7 : index
    %c0_7 = arith.constant 0 : index
    %7 = vector.load %arg8[%c7, %c0_7] : memref<10x192xf32, #tpu.memory_space<vmem>>, vector<1x64xf32>
    %c8 = arith.constant 8 : index
    %c0_8 = arith.constant 0 : index
    %8 = vector.load %arg8[%c8, %c0_8] : memref<10x192xf32, #tpu.memory_space<vmem>>, vector<1x64xf32>
    %c9 = arith.constant 9 : index
    %c0_9 = arith.constant 0 : index
    %9 = vector.load %arg8[%c9, %c0_9] : memref<10x192xf32, #tpu.memory_space<vmem>>, vector<1x1xf32>
    %c0_10 = arith.constant 0 : index
    %c0_11 = arith.constant 0 : index
    %10 = vector.load %arg1[%c0_10, %c0_11] : memref<32x11xf32, #tpu.memory_space<vmem>>, vector<32x11xf32>
    %11 = arith.truncf %10 : vector<32x11xf32> to vector<32x11xbf16>
    %c0_12 = arith.constant 0 : index
    %c0_13 = arith.constant 0 : index
    %12 = vector.load %arg3[%c0_12, %c0_13] : memref<11x64xf32, #tpu.memory_space<vmem>>, vector<11x64xf32>
    %13 = arith.truncf %12 : vector<11x64xf32> to vector<11x64xbf16>
    %cst = arith.constant dense<0.000000e+00> : vector<32x64xf32>
    %14 = tpu.matmul %11, %13, %cst {dimension_numbers = #tpu.dot_dimension_numbers<[1], [0], [0], [1], [0, 0, 1, 1], [], []>} : vector<32x11xbf16>, vector<11x64xbf16>, vector<32x64xf32> -> vector<32x64xf32>
    %c0_14 = arith.constant 0 : index
    %c0_15 = arith.constant 0 : index
    %15 = vector.load %arg2[%c0_14, %c0_15] : memref<32x64xf32, #tpu.memory_space<vmem>>, vector<32x64xf32>
    %16 = arith.addf %14, %15 : vector<32x64xf32>
    %17 = arith.truncf %16 : vector<32x64xf32> to vector<32x64xbf16>
    %c0_16 = arith.constant 0 : index
    %c0_17 = arith.constant 0 : index
    %18 = vector.load %arg4[%c0_16, %c0_17] : memref<64x192xf32, #tpu.memory_space<vmem>>, vector<64x192xf32>
    %19 = arith.truncf %18 : vector<64x192xf32> to vector<64x192xbf16>
    %cst_18 = arith.constant dense<0.000000e+00> : vector<32x192xf32>
    %20 = tpu.matmul %17, %19, %cst_18 {dimension_numbers = #tpu.dot_dimension_numbers<[1], [0], [0], [1], [0, 0, 1, 1], [], []>} : vector<32x64xbf16>, vector<64x192xbf16>, vector<32x192xf32> -> vector<32x192xf32>
    %21 = vector.broadcast %0 : vector<1x192xf32> to vector<32x192xf32>
    %22 = arith.addf %20, %21 : vector<32x192xf32>
    %23 = vector.extract_strided_slice %22 {offsets = [0, 0], sizes = [32, 64], strides = [1, 1]} : vector<32x192xf32> to vector<32x64xf32>
    %24 = vector.shape_cast %23 : vector<32x64xf32> to vector<4x8x4x16xf32>
    %25 = tpu.transpose %24, [0, 2, 1, 3] : vector<4x8x4x16xf32> -> vector<4x4x8x16xf32>
    %26 = vector.shape_cast %25 : vector<4x4x8x16xf32> to vector<16x8x16xf32>
    %cst_19 = arith.constant 2.500000e-01 : f32
    %27 = vector.broadcast %cst_19 : f32 to vector<16x8x16xf32>
    %28 = arith.mulf %26, %27 : vector<16x8x16xf32>
    %29 = vector.extract_strided_slice %22 {offsets = [0, 64], sizes = [32, 64], strides = [1, 1]} : vector<32x192xf32> to vector<32x64xf32>
    %30 = vector.shape_cast %29 : vector<32x64xf32> to vector<4x8x4x16xf32>
    %31 = tpu.transpose %30, [0, 2, 1, 3] : vector<4x8x4x16xf32> -> vector<4x4x8x16xf32>
    %32 = vector.shape_cast %31 : vector<4x4x8x16xf32> to vector<16x8x16xf32>
    %33 = vector.extract_strided_slice %22 {offsets = [0, 128], sizes = [32, 64], strides = [1, 1]} : vector<32x192xf32> to vector<32x64xf32>
    %34 = vector.shape_cast %33 : vector<32x64xf32> to vector<4x8x4x16xf32>
    %35 = tpu.transpose %34, [0, 2, 1, 3] : vector<4x8x4x16xf32> -> vector<4x4x8x16xf32>
    %36 = vector.shape_cast %35 : vector<4x4x8x16xf32> to vector<16x8x16xf32>
    %37 = tpu.iota {dimensions = array<i32: 0>} : vector<8x8xi32>
    %38 = tpu.iota {dimensions = array<i32: 1>} : vector<8x8xi32>
    %39 = arith.cmpi sle, %38, %37 : vector<8x8xi32>
    %40 = vector.shape_cast %39 : vector<8x8xi1> to vector<1x8x8xi1>
    %41 = arith.truncf %28 : vector<16x8x16xf32> to vector<16x8x16xbf16>
    %42 = arith.truncf %32 : vector<16x8x16xf32> to vector<16x8x16xbf16>
    "tpu.trace_start"() <{level = 10 : i32, message = "xqd,xkd->xqk"}> : () -> ()
    %cst_20 = arith.constant dense<0.000000e+00> : vector<16x8x8xf32>
    %43 = tpu.matmul %41, %42, %cst_20 {dimension_numbers = #tpu.dot_dimension_numbers<[2], [2], [1], [1], [0, 0, 0, 1, 1, 1], [0], [0]>} : vector<16x8x16xbf16>, vector<16x8x16xbf16>, vector<16x8x8xf32> -> vector<16x8x8xf32>
    %cst_21 = arith.constant -1.000000e+30 : f32
    "tpu.trace_stop"() : () -> ()
    %44 = vector.shape_cast %40 : vector<1x8x8xi1> to vector<1x8x8xi1>
    %45 = vector.broadcast %44 : vector<1x8x8xi1> to vector<16x8x8xi1>
    %46 = vector.broadcast %cst_21 : f32 to vector<16x8x8xf32>
    %47 = arith.select %45, %43, %46 : vector<16x8x8xi1>, vector<16x8x8xf32>
    %cst_22 = arith.constant dense<0xFF800000> : vector<16x8xf32>
    %48 = vector.multi_reduction <maximumf>, %47, %cst_22 [2] : vector<16x8x8xf32> to vector<16x8xf32>
    %49 = vector.shape_cast %48 : vector<16x8xf32> to vector<16x8x1xf32>
    %50 = vector.broadcast %49 : vector<16x8x1xf32> to vector<16x8x8xf32>
    %51 = arith.subf %47, %50 : vector<16x8x8xf32>
    %52 = math.exp %51 : vector<16x8x8xf32>
    %cst_23 = arith.constant dense<0.000000e+00> : vector<16x8xf32>
    %53 = vector.multi_reduction <add>, %52, %cst_23 [2] : vector<16x8x8xf32> to vector<16x8xf32>
    %54 = vector.shape_cast %53 : vector<16x8xf32> to vector<16x8x1xf32>
    %55 = tpu.reciprocal %54 {approx = true} : vector<16x8x1xf32> -> vector<16x8x1xf32>
    %56 = vector.broadcast %55 : vector<16x8x1xf32> to vector<16x8x8xf32>
    %57 = arith.mulf %52, %56 : vector<16x8x8xf32>
    %58 = arith.truncf %57 : vector<16x8x8xf32> to vector<16x8x8xbf16>
    %59 = arith.truncf %36 : vector<16x8x16xf32> to vector<16x8x16xbf16>
    "tpu.trace_start"() <{level = 10 : i32, message = "xqk,xkd->xqd"}> : () -> ()
    %cst_24 = arith.constant dense<0.000000e+00> : vector<16x8x16xf32>
    %60 = tpu.matmul %58, %59, %cst_24 {dimension_numbers = #tpu.dot_dimension_numbers<[2], [1], [1], [2], [0, 0, 0, 1, 1, 2], [0], [0]>} : vector<16x8x8xbf16>, vector<16x8x16xbf16>, vector<16x8x16xf32> -> vector<16x8x16xf32>
    "tpu.trace_stop"() : () -> ()
    %61 = vector.shape_cast %60 : vector<16x8x16xf32> to vector<4x4x8x16xf32>
    %62 = tpu.transpose %61, [0, 2, 1, 3] : vector<4x4x8x16xf32> -> vector<4x8x4x16xf32>
    %63 = vector.shape_cast %62 : vector<4x8x4x16xf32> to vector<32x64xf32>
    %64 = arith.truncf %63 : vector<32x64xf32> to vector<32x64xbf16>
    %c0_25 = arith.constant 0 : index
    %c0_26 = arith.constant 0 : index
    %65 = vector.load %arg5[%c0_25, %c0_26] : memref<64x64xf32, #tpu.memory_space<vmem>>, vector<64x64xf32>
    %66 = arith.truncf %65 : vector<64x64xf32> to vector<64x64xbf16>
    %cst_27 = arith.constant dense<0.000000e+00> : vector<32x64xf32>
    %67 = tpu.matmul %64, %66, %cst_27 {dimension_numbers = #tpu.dot_dimension_numbers<[1], [0], [0], [1], [0, 0, 1, 1], [], []>} : vector<32x64xbf16>, vector<64x64xbf16>, vector<32x64xf32> -> vector<32x64xf32>
    %68 = vector.broadcast %2 : vector<1x64xf32> to vector<32x64xf32>
    %69 = arith.addf %67, %68 : vector<32x64xf32>
    %70 = arith.addf %16, %69 : vector<32x64xf32>
    %cst_28 = arith.constant dense<0.000000e+00> : vector<32xf32>
    %71 = vector.multi_reduction <add>, %70, %cst_28 [1] : vector<32x64xf32> to vector<32xf32>
    %72 = vector.shape_cast %71 : vector<32xf32> to vector<32x1xf32>
    %cst_29 = arith.constant 6.400000e+01 : f32
    %73 = vector.broadcast %cst_29 : f32 to vector<32x1xf32>
    %74 = arith.divf %72, %73 : vector<32x1xf32>
    %75 = vector.broadcast %74 : vector<32x1xf32> to vector<32x64xf32>
    %76 = arith.subf %70, %75 : vector<32x64xf32>
    %77 = arith.mulf %76, %76 : vector<32x64xf32>
    %cst_30 = arith.constant dense<0.000000e+00> : vector<32xf32>
    %78 = vector.multi_reduction <add>, %77, %cst_30 [1] : vector<32x64xf32> to vector<32xf32>
    %79 = vector.shape_cast %78 : vector<32xf32> to vector<32x1xf32>
    %cst_31 = arith.constant 6.400000e+01 : f32
    %80 = vector.broadcast %cst_31 : f32 to vector<32x1xf32>
    %81 = arith.divf %79, %80 : vector<32x1xf32>
    %82 = vector.broadcast %74 : vector<32x1xf32> to vector<32x64xf32>
    %83 = arith.subf %70, %82 : vector<32x64xf32>
    %cst_32 = arith.constant 9.99999974E-6 : f32
    %84 = vector.broadcast %cst_32 : f32 to vector<32x1xf32>
    %85 = arith.addf %81, %84 : vector<32x1xf32>
    %86 = math.rsqrt %85 : vector<32x1xf32>
    %87 = vector.broadcast %86 : vector<32x1xf32> to vector<32x64xf32>
    %88 = arith.mulf %83, %87 : vector<32x64xf32>
    %89 = vector.broadcast %3 : vector<1x64xf32> to vector<32x64xf32>
    %90 = arith.mulf %88, %89 : vector<32x64xf32>
    %91 = vector.broadcast %4 : vector<1x64xf32> to vector<32x64xf32>
    %92 = arith.addf %90, %91 : vector<32x64xf32>
    %93 = arith.truncf %92 : vector<32x64xf32> to vector<32x64xbf16>
    %c0_33 = arith.constant 0 : index
    %c0_34 = arith.constant 0 : index
    %94 = vector.load %arg6[%c0_33, %c0_34] : memref<64x128xf32, #tpu.memory_space<vmem>>, vector<64x128xf32>
    %95 = arith.truncf %94 : vector<64x128xf32> to vector<64x128xbf16>
    %cst_35 = arith.constant dense<0.000000e+00> : vector<32x128xf32>
    %96 = tpu.matmul %93, %95, %cst_35 {dimension_numbers = #tpu.dot_dimension_numbers<[1], [0], [0], [1], [0, 0, 1, 1], [], []>} : vector<32x64xbf16>, vector<64x128xbf16>, vector<32x128xf32> -> vector<32x128xf32>
    %97 = vector.broadcast %1 : vector<1x128xf32> to vector<32x128xf32>
    %98 = arith.addf %96, %97 : vector<32x128xf32>
    %cst_36 = arith.constant 0.000000e+00 : f32
    %99 = vector.broadcast %cst_36 : f32 to vector<32x128xf32>
    %100 = arith.maximumf %98, %99 : vector<32x128xf32>
    %101 = arith.truncf %100 : vector<32x128xf32> to vector<32x128xbf16>
    %c0_37 = arith.constant 0 : index
    %c0_38 = arith.constant 0 : index
    %102 = vector.load %arg7[%c0_37, %c0_38] : memref<128x64xf32, #tpu.memory_space<vmem>>, vector<128x64xf32>
    %103 = arith.truncf %102 : vector<128x64xf32> to vector<128x64xbf16>
    %cst_39 = arith.constant dense<0.000000e+00> : vector<32x64xf32>
    %104 = tpu.matmul %101, %103, %cst_39 {dimension_numbers = #tpu.dot_dimension_numbers<[1], [0], [0], [1], [0, 0, 1, 1], [], []>} : vector<32x128xbf16>, vector<128x64xbf16>, vector<32x64xf32> -> vector<32x64xf32>
    %105 = vector.broadcast %5 : vector<1x64xf32> to vector<32x64xf32>
    %106 = arith.addf %104, %105 : vector<32x64xf32>
    %107 = arith.addf %92, %106 : vector<32x64xf32>
    %cst_40 = arith.constant dense<0.000000e+00> : vector<32xf32>
    %108 = vector.multi_reduction <add>, %107, %cst_40 [1] : vector<32x64xf32> to vector<32xf32>
    %109 = vector.shape_cast %108 : vector<32xf32> to vector<32x1xf32>
    %cst_41 = arith.constant 6.400000e+01 : f32
    %110 = vector.broadcast %cst_41 : f32 to vector<32x1xf32>
    %111 = arith.divf %109, %110 : vector<32x1xf32>
    %112 = vector.broadcast %111 : vector<32x1xf32> to vector<32x64xf32>
    %113 = arith.subf %107, %112 : vector<32x64xf32>
    %114 = arith.mulf %113, %113 : vector<32x64xf32>
    %cst_42 = arith.constant dense<0.000000e+00> : vector<32xf32>
    %115 = vector.multi_reduction <add>, %114, %cst_42 [1] : vector<32x64xf32> to vector<32xf32>
    %116 = vector.shape_cast %115 : vector<32xf32> to vector<32x1xf32>
    %cst_43 = arith.constant 6.400000e+01 : f32
    %117 = vector.broadcast %cst_43 : f32 to vector<32x1xf32>
    %118 = arith.divf %116, %117 : vector<32x1xf32>
    %119 = vector.broadcast %111 : vector<32x1xf32> to vector<32x64xf32>
    %120 = arith.subf %107, %119 : vector<32x64xf32>
    %cst_44 = arith.constant 9.99999974E-6 : f32
    %121 = vector.broadcast %cst_44 : f32 to vector<32x1xf32>
    %122 = arith.addf %118, %121 : vector<32x1xf32>
    %123 = math.rsqrt %122 : vector<32x1xf32>
    %124 = vector.broadcast %123 : vector<32x1xf32> to vector<32x64xf32>
    %125 = arith.mulf %120, %124 : vector<32x64xf32>
    %126 = vector.broadcast %6 : vector<1x64xf32> to vector<32x64xf32>
    %127 = arith.mulf %125, %126 : vector<32x64xf32>
    %128 = vector.broadcast %7 : vector<1x64xf32> to vector<32x64xf32>
    %129 = arith.addf %127, %128 : vector<32x64xf32>
    %130 = vector.shape_cast %129 : vector<32x64xf32> to vector<1x32x64xf32>
    %131 = vector.shape_cast %8 : vector<1x64xf32> to vector<1x1x64xf32>
    %132 = vector.broadcast %131 : vector<1x1x64xf32> to vector<1x32x64xf32>
    %133 = arith.mulf %130, %132 : vector<1x32x64xf32>
    %cst_45 = arith.constant dense<0.000000e+00> : vector<1x32xf32>
    %134 = vector.multi_reduction <add>, %133, %cst_45 [2] : vector<1x32x64xf32> to vector<1x32xf32>
    %135 = vector.broadcast %9 : vector<1x1xf32> to vector<1x32xf32>
    %136 = arith.addf %134, %135 : vector<1x32xf32>
    %c0_46 = arith.constant 0 : index
    %c0_47 = arith.constant 0 : index
    %137 = vector.load %arg9[%c0_46, %c0_47] : memref<1x32xf32, #tpu.memory_space<vmem>>, vector<1x32xf32>
    tpu.vector_store %arg9[%c0_46, %c0_47], %136 {strides = array<i32>} : memref<1x32xf32, #tpu.memory_space<vmem>>, vector<1x32xf32>,
    return
  }
  func.func @transform_0(%arg0: i32) -> (i32, i32) {
    %c0_i32 = arith.constant 0 : i32
    %c0_i32_0 = arith.constant 0 : i32
    %c0_i32_1 = arith.constant 0 : i32
    return %c0_i32, %c0_i32_0 : i32, i32
  }
  func.func @transform_1(%arg0: i32) -> (i32, i32) {
    %c0_i32 = arith.constant 0 : i32
    %c0_i32_0 = arith.constant 0 : i32
    %c0_i32_1 = arith.constant 0 : i32
    return %c0_i32, %c0_i32_0 : i32, i32
  }
  func.func @transform_2(%arg0: i32) -> (i32, i32) {
    %c0_i32 = arith.constant 0 : i32
    %c0_i32_0 = arith.constant 0 : i32
    %c0_i32_1 = arith.constant 0 : i32
    return %c0_i32, %c0_i32_0 : i32, i32
  }
  func.func @transform_3(%arg0: i32) -> (i32, i32) {
    %c0_i32 = arith.constant 0 : i32
    %c0_i32_0 = arith.constant 0 : i32
    %c0_i32_1 = arith.constant 0 : i32
    return %c0_i32, %c0_i32_0 : i32, i32
  }
  func.func @transform_4(%arg0: i32) -> (i32, i32) {
    %c0_i32 = arith.constant 0 : i32
    %c0_i32_0 = arith.constant 0 : i32
    %c0_i32_1 = arith.constant 0 : i32
    return %c0_i32, %c0_i32_0 : i32, i32
  }
  func.func @transform_5(%arg0: i32) -> (i32, i32) {
    %c0_i32 = arith.constant 0 : i32
    %c0_i32_0 = arith.constant 0 : i32
    %c0_i32_1 = arith.constant 0 : i32
    return %c0_i32, %c0_i32_0 : i32, i32
  }
  func.func @transform_6(%arg0: i32) -> (i32, i32) {
    %c0_i32 = arith.constant 0 : i32
    %c0_i32_0 = arith.constant 0 : i32
    %c0_i32_1 = arith.constant 0 : i32
    return %c0_i32, %c0_i32_0 : i32, i32
  }
  func.func @transform_7(%arg0: i32) -> (i32, i32) {
    %c0_i32 = arith.constant 0 : i32
    %c0_i32_0 = arith.constant 0 : i32
    %c0_i32_1 = arith.constant 0 : i32
    return %c0_i32, %c0_i32_0 : i32, i32
  }
  func.func @transform_8(%arg0: i32) -> (i32, i32) {
    %c0_i32 = arith.constant 0 : i32
    %c0_i32_0 = arith.constant 0 : i32
    %c0_i32_1 = arith.constant 0 : i32
    return %c0_i32, %c0_i32_0 : i32, i32
  }
}

</mosaic_0001>

<llo_original>
// kernel: tpu_custom_call.1
$region0: #{tpu_custom_call.1}
  #allocation0 [shape = 'u32[]', space=smem, size = 0x4, offset = 0x4, fixed_abs, tag = 'smem constant byte address 0x4 - core index']
  #allocation1 [shape = 'u32[144,128]{1,0:T(1,128)}', space=vmem, size = 0x12000, scoped, tag = 'internal scratch']
  %s0 = inlined_call_operand.vmem [shape: f32[32,11], index: 0, kind: input, shape index: {}]
  %s1 = inlined_call_operand.hbm [shape: f32[32,64], index: 1, kind: input, shape index: {}]
  %s2 = inlined_call_operand.hbm [shape: f32[11,64], index: 2, kind: input, shape index: {}]
  %s3 = inlined_call_operand.vmem [shape: f32[64,192], index: 3, kind: input, shape index: {}]
  %s4 = inlined_call_operand.vmem [shape: f32[64,64], index: 4, kind: input, shape index: {}]
  %s5 = inlined_call_operand.hbm [shape: f32[64,128], index: 5, kind: input, shape index: {}]
  %s6 = inlined_call_operand.vmem [shape: f32[128,64], index: 6, kind: input, shape index: {}]
  %s7 = inlined_call_operand.hbm [shape: f32[10,192], index: 7, kind: input, shape index: {}]
  %s8 = inlined_call_operand.hbm [shape: f32[1,32], index: 8, kind: output, shape index: {}]
  %s9 = sld [smem:[#allocation0]]
  $region58: #{tpu_custom_call.1} parent=0
    _
  %s11 = ssub.s32 1, %s9
  %s12 = scalar_select 0, %s11, %s9
  $region1: #{tpu_custom_call.1} parent=0
    #allocation2 [shape = 'u8[16384]{0}', space=vmem, size = 0x4000, scoped, tag = 'input window, operand 1, single buffered']
    #allocation3 [shape = 's32[1]{0}', space=sflag, size = 0x4, scoped, tag = 'scoped memory for tpu_custom_call.1']
    #allocation4 [shape = 's32[1]{0}', space=sflag, size = 0x4, scoped, tag = 'scoped memory for tpu_custom_call.1']
    #allocation5 [shape = 'u8[8192]{0}', space=vmem, size = 0x2000, scoped, tag = 'input window, operand 2, single buffered']
    #allocation6 [shape = 's32[1]{0}', space=sflag, size = 0x4, scoped, tag = 'scoped memory for tpu_custom_call.1']
    #allocation7 [shape = 'u8[32768]{0}', space=vmem, size = 0x8000, scoped, tag = 'input window, operand 5, single buffered']
    #allocation8 [shape = 'u8[16384]{0}', space=vmem, size = 0x4000, scoped, tag = 'input window, operand 7, single buffered']
    #allocation9 [shape = 's32[1]{0}', space=sflag, size = 0x4, scoped, tag = 'scoped memory for tpu_custom_call.1']
    #allocation10 [shape = 'u8[512]{0}', space=vmem, size = 0x400, scoped, tag = 'output window, operand 0, single buffered']
    %13 = vsyncpa [#allocation3], 0
    %14 = vsyncpa [#allocation6], 0
    %15 = vsyncpa [#allocation9], 0
    %16 = vsyncpa [#allocation4], 0
    // Predicated region
    $region2: #{tpu_custom_call.1} parent=1 // pred_check
      _
    $region3: #{tpu_custom_call.1} parent=1 // pred_check_branch
      %18 = sbr.rel (0) target = $region5
    $region4: #{tpu_custom_call.1} parent=1 // pred_region
      _
    $region5: #{tpu_custom_call.1} parent=1 // pred_fallthru
      _
    // Predicated region
    $region6: #{tpu_custom_call.1} parent=1 // pred_check
      _
    $region7: #{tpu_custom_call.1} parent=1 // pred_check_branch
      %20 = sbr.rel (0) target = $region9
    $region8: #{tpu_custom_call.1} parent=1 // pred_region
      %s22 = ssub.s32 512, 512
      %23 = vsyncadd [#allocation3], %s22
      %s24 = sshll.u32 [#allocation2], 4
      %s25 = int_to_ptr.vmem [resolvable:$true] %s24
      %30 = dma.hbm_to_vmem [thread:$0]  %s1, 512, %s25, [#allocation3], 128, 128, 8
    $region9: #{tpu_custom_call.1} parent=1 // pred_fallthru
      _
    // Predicated region
    $region10: #{tpu_custom_call.1} parent=1 // pred_check
      _
    $region11: #{tpu_custom_call.1} parent=1 // pred_check_branch
      %32 = sbr.rel (0) target = $region13
    $region12: #{tpu_custom_call.1} parent=1 // pred_region
      %s34 = ssub.s32 256, 256
      %35 = vsyncadd [#allocation6], %s34
      %s36 = sshll.u32 [#allocation5], 4
      %s37 = int_to_ptr.vmem [resolvable:$true] %s36
      %42 = dma.hbm_to_vmem [thread:$0]  %s2, 256, %s37, [#allocation6], 128, 128, 8
    $region13: #{tpu_custom_call.1} parent=1 // pred_fallthru
      _
    // Predicated region
    $region14: #{tpu_custom_call.1} parent=1 // pred_check
      _
    $region15: #{tpu_custom_call.1} parent=1 // pred_check_branch
      %44 = sbr.rel (0) target = $region17
    $region16: #{tpu_custom_call.1} parent=1 // pred_region
      _
    $region17: #{tpu_custom_call.1} parent=1 // pred_fallthru
      _
    // Predicated region
    $region18: #{tpu_custom_call.1} parent=1 // pred_check
      _
    $region19: #{tpu_custom_call.1} parent=1 // pred_check_branch
      %46 = sbr.rel (0) target = $region21
    $region20: #{tpu_custom_call.1} parent=1 // pred_region
      _
    $region21: #{tpu_custom_call.1} parent=1 // pred_fallthru
      _
    // Predicated region
    $region22: #{tpu_custom_call.1} parent=1 // pred_check
      _
    $region23: #{tpu_custom_call.1} parent=1 // pred_check_branch
      %48 = sbr.rel (0) target = $region25
    $region24: #{tpu_custom_call.1} parent=1 // pred_region
      %s50 = ssub.s32 1024, 1024
      %51 = vsyncadd [#allocation6], %s50
      %s52 = sshll.u32 [#allocation7], 4
      %s53 = int_to_ptr.vmem [resolvable:$true] %s52
      %58 = dma.hbm_to_vmem [thread:$0]  %s5, 1024, %s53, [#allocation6], 128, 128, 8
    $region25: #{tpu_custom_call.1} parent=1 // pred_fallthru
      _
    // Predicated region
    $region26: #{tpu_custom_call.1} parent=1 // pred_check
      _
    $region27: #{tpu_custom_call.1} parent=1 // pred_check_branch
      %60 = sbr.rel (0) target = $region29
    $region28: #{tpu_custom_call.1} parent=1 // pred_region
      _
    $region29: #{tpu_custom_call.1} parent=1 // pred_fallthru
      _
    // Predicated region
    $region30: #{tpu_custom_call.1} parent=1 // pred_check
      _
    $region31: #{tpu_custom_call.1} parent=1 // pred_check_branch
      %62 = sbr.rel (0) target = $region33
    $region32: #{tpu_custom_call.1} parent=1 // pred_region
      %s64 = ssub.s32 512, 512
      %65 = vsyncadd [#allocation9], %s64
      %s66 = sshll.u32 [#allocation8], 4
      %s67 = int_to_ptr.vmem [resolvable:$true] %s66
      %72 = dma.hbm_to_vmem [thread:$0]  %s7, 512, %s67, [#allocation9], 256, 256, 16
    $region33: #{tpu_custom_call.1} parent=1 // pred_fallthru
      _
    // Predicated region
    $region34: #{tpu_custom_call.1} parent=1 // pred_check
      _
    $region35: #{tpu_custom_call.1} parent=1 // pred_check_branch
      %74 = sbr.rel (0) target = $region37
    $region36: #{tpu_custom_call.1} parent=1 // pred_region
      %75 = dma.done [#allocation3], 512
    $region37: #{tpu_custom_call.1} parent=1 // pred_fallthru
      _
    // Predicated region
    $region38: #{tpu_custom_call.1} parent=1 // pred_check
      _
    $region39: #{tpu_custom_call.1} parent=1 // pred_check_branch
      %77 = sbr.rel (0) target = $region41
    $region40: #{tpu_custom_call.1} parent=1 // pred_region
      %78 = dma.done [#allocation6], 256
    $region41: #{tpu_custom_call.1} parent=1 // pred_fallthru
      _
    // Predicated region
    $region42: #{tpu_custom_call.1} parent=1 // pred_check
      _
    $region43: #{tpu_custom_call.1} parent=1 // pred_check_branch
      %80 = sbr.rel (0) target = $region45
    $region44: #{tpu_custom_call.1} parent=1 // pred_region
      %81 = dma.done [#allocation6], 1024
    $region45: #{tpu_custom_call.1} parent=1 // pred_fallthru
      _
    // Predicated region
    $region46: #{tpu_custom_call.1} parent=1 // pred_check
      _
    $region47: #{tpu_custom_call.1} parent=1 // pred_check_branch
      %83 = sbr.rel (0) target = $region49
    $region48: #{tpu_custom_call.1} parent=1 // pred_region
      %84 = dma.done [#allocation9], 512
    $region49: #{tpu_custom_call.1} parent=1 // pred_fallthru
      _
    %v86 = vld [vmem:[#allocation8] ss:$8 sm:$0x3]
    %v87 = vld [vmem:[#allocation8 + $0x1] ss:$0 sm:$0xff]
    %v88 = vld [vmem:[#allocation8 + $0x2] ss:$0 sm:$0xff]
    %v89 = vld [vmem:[#allocation8 + $0x3] ss:$0 sm:$0xff]
    %v90 = vld [vmem:[#allocation8 + $0x4] ss:$0 sm:$0xff]
    %v91 = vld [vmem:[#allocation8 + $0x5] ss:$0 sm:$0xff]
    %v92 = vld [vmem:[#allocation8 + $0x6] ss:$0 sm:$0xff]
    %v93 = vld [vmem:[#allocation8 + $0x7] ss:$0 sm:$0xff]
    %v94 = vld [vmem:[#allocation8 + $0x10] ss:$0 sm:$0xff]
    %v95 = vld [vmem:[#allocation8 + $0x11] ss:$0 sm:$0xff]
    %v96 = vld [vmem:[%s0] sm:$0xff]
    %v97 = vld [vmem:[%s0 + $0x8] sm:$0xff]
    %v98 = vld [vmem:[%s0 + $0x10] sm:$0xff]
    %v99 = vld [vmem:[%s0 + $0x18] sm:$0xff]
    %v100 = vpack.c.bf16 %v97, %v96
    %v101 = vpack.c.bf16 %v99, %v98
    %v102 = vld [vmem:[#allocation5] sm:$0xff]
    %v103 = vld [vmem:[#allocation5 + $0x8] sm:$0x7]
    %v104 = vpack.c.bf16 %v103, %v102
    %v105 = vld [vmem:[#allocation2] sm:$0xff]
    %v106 = vld [vmem:[#allocation2 + $0x8] sm:$0xff]
    %v107 = vld [vmem:[#allocation2 + $0x10] sm:$0xff]
    %v108 = vld [vmem:[#allocation2 + $0x18] sm:$0xff]
    %vm109 = vcmask 89088
    %v111 = vsel %vm109, %v100, 0
    %v114 = vsel %vm109, %v101, 0
    %vm116 = vcmask 1044480
    %vm117 = vcmask 1045504
    %v118 = vsel %vm116, 4294967295, 65535
    %v119 = vsel %vm117, %v118, 0
    %v121 = vand.u32 %v104, %v119
    %123 = vmatprep.subr.bf16.mxu0 0
    %124 = vmatpush1.bf16.msra.mxu0 %v121
    %125 = vmatprep.subr.bf16.mxu0 0
    %126 = vmatpush1.bf16.msra.mxu0 0
    %127 = vmatprep.subr.bf16.mxu0 0
    %128 = vmatpush1.bf16.msra.mxu0 0
    %129 = vmatprep.subr.bf16.mxu0 0
    %130 = vmatpush1.bf16.msra.mxu0 0
    %131 = vmatprep.subr.bf16.mxu0 0
    %132 = vmatpush1.bf16.msra.mxu0 0
    %133 = vmatprep.subr.bf16.mxu0 0
    %134 = vmatpush1.bf16.msra.mxu0 0
    %135 = vmatprep.subr.bf16.mxu0 0
    %136 = vmatpush1.bf16.msra.mxu0 0
    %137 = vmatprep.subr.bf16.mxu0 0
    %138 = vmatpush1.bf16.msra.mxu0 0
    %139 = vmatprep.subr.bf16.mxu0 0
    %140 = vmatpush1.bf16.msra.mxu0 0
    %141 = vmatprep.subr.bf16.mxu0 0
    %142 = vmatpush1.bf16.msra.mxu0 0
    %143 = vmatprep.subr.bf16.mxu0 0
    %144 = vmatpush1.bf16.msra.mxu0 0
    %145 = vmatprep.subr.bf16.mxu0 0
    %146 = vmatpush1.bf16.msra.mxu0 0
    %147 = vmatprep.subr.bf16.mxu0 0
    %148 = vmatpush1.bf16.msra.mxu0 0
    %149 = vmatprep.subr.bf16.mxu0 0
    %150 = vmatpush1.bf16.msra.mxu0 0
    %151 = vmatprep.subr.bf16.mxu0 0
    %152 = vmatpush1.bf16.msra.mxu0 0
    %153 = vmatprep.subr.bf16.mxu0 0
    %154 = vmatpush1.bf16.msra.mxu0 0
    %155 = vmatprep.mubr.bf16.mxu0 0
    %156 = vmatmul.mubr.bf16.gmra.mrb[0].mxu0 %v111
    %v157 = vpop.f32.mrb[0].mxu0
    %v158 = vadd.f32 %v105, %v157
    %v159 = vpop.f32.mrb[0].mxu0
    %v160 = vpop.f32.mrb[0].mxu0
    %v161 = vadd.f32 %v106, %v160
    %v162 = vpop.f32.mrb[0].mxu0
    %163 = vmatprep.mubr.bf16.mxu0 0
    %164 = vmatmul.mubr.bf16.gmra.mrb[0].mxu0 %v114
    %v165 = vpop.f32.mrb[0].mxu0
    %v166 = vadd.f32 %v107, %v165
    %v167 = vpop.f32.mrb[0].mxu0
    %v168 = vpop.f32.mrb[0].mxu0
    %v169 = vadd.f32 %v108, %v168
    %v170 = vpop.f32.mrb[0].mxu0
    %171 = vdwg.mxu0
    %v172 = vpack.c.bf16 %v161, %v158
    %v173 = vpack.c.bf16 %v169, %v166
    %v174 = vld [vmem:[%s3] sm:$0xff]
    %v175 = vld [vmem:[%s3 + $0x8] sm:$0xff]
    %v176 = vld [vmem:[%s3 + $0x10] sm:$0xff]
    %v177 = vld [vmem:[%s3 + $0x18] sm:$0xff]
    %v178 = vld [vmem:[%s3 + $0x20] sm:$0xff]
    %v179 = vld [vmem:[%s3 + $0x28] sm:$0xff]
    %v180 = vld [vmem:[%s3 + $0x30] sm:$0xff]
    %v181 = vld [vmem:[%s3 + $0x38] sm:$0xff]
    %v182 = vld [vmem:[%s3 + $0x40] sm:$0xff]
    %v183 = vld [vmem:[%s3 + $0x48] sm:$0xff]
    %v184 = vld [vmem:[%s3 + $0x50] sm:$0xff]
    %v185 = vld [vmem:[%s3 + $0x58] sm:$0xff]
    %v186 = vld [vmem:[%s3 + $0x60] sm:$0xff]
    %v187 = vld [vmem:[%s3 + $0x68] sm:$0xff]
    %v188 = vld [vmem:[%s3 + $0x70] sm:$0xff]
    %v189 = vld [vmem:[%s3 + $0x78] sm:$0xff]
    %v190 = vpack.c.bf16 %v176, %v174
    %v191 = vpack.c.bf16 %v177, %v175
    %v192 = vpack.c.bf16 %v180, %v178
    %v193 = vpack.c.bf16 %v181, %v179
    %v194 = vpack.c.bf16 %v184, %v182
    %v195 = vpack.c.bf16 %v185, %v183
    %v196 = vpack.c.bf16 %v188, %v186
    %v197 = vpack.c.bf16 %v189, %v187
    %v199 = vlaneseq
    %v200 = vshrl.u32 %v199, 7
    %v201 = vsub.s32 0, %v200
    %v202 = vrot.slane %v86, %v201
    %v203 = vlaneseq
    %v204 = vshrl.u32 %v203, 7
    %v205 = vsub.s32 1, %v204
    %v206 = vrot.slane %v86, %v205
    %vm209 = vcmask 523264
    %v211 = vsel %vm209, %v172, 0
    %v214 = vsel %vm209, %v173, 0
    %216 = vmatprep.subr.bf16.mxu0 %v191
    %217 = vmatpush1.bf16.msra.mxu0 %v190
    %218 = vmatprep.subr.bf16.mxu0 %v193
    %219 = vmatpush1.bf16.msra.mxu0 %v192
    %220 = vmatprep.subr.bf16.mxu0 %v195
    %221 = vmatpush1.bf16.msra.mxu0 %v194
    %222 = vmatprep.subr.bf16.mxu0 %v197
    %223 = vmatpush1.bf16.msra.mxu0 %v196
    %224 = vmatprep.subr.bf16.mxu0 0
    %225 = vmatpush1.bf16.msra.mxu0 0
    %226 = vmatprep.subr.bf16.mxu0 0
    %227 = vmatpush1.bf16.msra.mxu0 0
    %228 = vmatprep.subr.bf16.mxu0 0
    %229 = vmatpush1.bf16.msra.mxu0 0
    %230 = vmatprep.subr.bf16.mxu0 0
    %231 = vmatpush1.bf16.msra.mxu0 0
    %232 = vmatprep.subr.bf16.mxu0 0
    %233 = vmatpush1.bf16.msra.mxu0 0
    %234 = vmatprep.subr.bf16.mxu0 0
    %235 = vmatpush1.bf16.msra.mxu0 0
    %236 = vmatprep.subr.bf16.mxu0 0
    %237 = vmatpush1.bf16.msra.mxu0 0
    %238 = vmatprep.subr.bf16.mxu0 0
    %239 = vmatpush1.bf16.msra.mxu0 0
    %240 = vmatprep.subr.bf16.mxu0 0
    %241 = vmatpush1.bf16.msra.mxu0 0
    %242 = vmatprep.subr.bf16.mxu0 0
    %243 = vmatpush1.bf16.msra.mxu0 0
    %244 = vmatprep.subr.bf16.mxu0 0
    %245 = vmatpush1.bf16.msra.mxu0 0
    %246 = vmatprep.subr.bf16.mxu0 0
    %247 = vmatpush1.bf16.msra.mxu0 0
    %248 = vmatprep.mubr.bf16.mxu0 0
    %249 = vmatmul.mubr.bf16.gmra.mrb[0].mxu0 %v211
    %v250 = vpop.f32.mrb[0].mxu0
    %v251 = vadd.f32 %v202, %v250
    %v252 = vpop.f32.mrb[0].mxu0
    %v253 = vadd.f32 %v206, %v252
    %v254 = vpop.f32.mrb[0].mxu0
    %v255 = vadd.f32 %v202, %v254
    %v256 = vpop.f32.mrb[0].mxu0
    %v257 = vadd.f32 %v206, %v256
    %258 = vmatprep.mubr.bf16.mxu0 0
    %259 = vmatmul.mubr.bf16.gmra.mrb[0].mxu0 %v214
    %v260 = vpop.f32.mrb[0].mxu0
    %v261 = vadd.f32 %v202, %v260
    %v262 = vpop.f32.mrb[0].mxu0
    %v263 = vadd.f32 %v206, %v262
    %v264 = vpop.f32.mrb[0].mxu0
    %v265 = vadd.f32 %v202, %v264
    %v266 = vpop.f32.mrb[0].mxu0
    %v267 = vadd.f32 %v206, %v266
    %268 = vdwg.mxu0
    %273 = vrot.lane.b32.xlu0 %v251, 112
    %v274 = vpop.permute.xlu0 %273
    %275 = vrot.lane.b32.xlu0 %v255, 112
    %v276 = vpop.permute.xlu0 %275
    %277 = vrot.lane.b32.xlu0 %v261, 112
    %v278 = vpop.permute.xlu0 %277
    %279 = vrot.lane.b32.xlu0 %v265, 112
    %v280 = vpop.permute.xlu0 %279
    %285 = vrot.lane.b32.xlu0 %v251, 96
    %v286 = vpop.permute.xlu0 %285
    %287 = vrot.lane.b32.xlu0 %v255, 96
    %v288 = vpop.permute.xlu0 %287
    %289 = vrot.lane.b32.xlu0 %v261, 96
    %v290 = vpop.permute.xlu0 %289
    %291 = vrot.lane.b32.xlu0 %v265, 96
    %v292 = vpop.permute.xlu0 %291
    %297 = vrot.lane.b32.xlu0 %v251, 80
    %v298 = vpop.permute.xlu0 %297
    %299 = vrot.lane.b32.xlu0 %v255, 80
    %v300 = vpop.permute.xlu0 %299
    %301 = vrot.lane.b32.xlu0 %v261, 80
    %v302 = vpop.permute.xlu0 %301
    %303 = vrot.lane.b32.xlu0 %v265, 80
    %v304 = vpop.permute.xlu0 %303
    %v309 = vcombine.low %v251, %v286
    %v310 = vcombine.high %v251, %v286
    %v312 = vunpack.c.l.s4 1983009808
    %v313 = vunpack.c.0.s8 %v312
    %v314 = vlaneseq
    %v315 = vshrl.u32 %v314, 7
    %v316 = vsub.s32 %v313, %v315
    %v317 = vrot.slane %v309, %v316
    %v319 = vunpack.c.l.s4 1983009808
    %v320 = vunpack.c.0.s8 %v319
    %v321 = vlaneseq
    %v322 = vshrl.u32 %v321, 7
    %v323 = vsub.s32 %v320, %v322
    %v324 = vrot.slane %v310, %v323
    %v325 = vcombine.low %v274, %v298
    %v326 = vcombine.high %v274, %v298
    %v328 = vunpack.c.l.s4 1983009808
    %v329 = vunpack.c.0.s8 %v328
    %v330 = vlaneseq
    %v331 = vshrl.u32 %v330, 7
    %v332 = vsub.s32 %v329, %v331
    %v333 = vrot.slane %v325, %v332
    %v335 = vunpack.c.l.s4 1983009808
    %v336 = vunpack.c.0.s8 %v335
    %v337 = vlaneseq
    %v338 = vshrl.u32 %v337, 7
    %v339 = vsub.s32 %v336, %v338
    %v340 = vrot.slane %v326, %v339
    %v341 = vcombine.low %v317, %v333
    %v342 = vcombine.high %v317, %v333
    %v344 = vunpack.c.l.s4 1934713408
    %v345 = vunpack.c.0.s8 %v344
    %v346 = vlaneseq
    %v347 = vshrl.u32 %v346, 7
    %v348 = vsub.s32 %v345, %v347
    %v349 = vrot.slane %v341, %v348
    %v351 = vunpack.c.l.s4 1934713408
    %v352 = vunpack.c.0.s8 %v351
    %v353 = vlaneseq
    %v354 = vshrl.u32 %v353, 7
    %v355 = vsub.s32 %v352, %v354
    %v356 = vrot.slane %v342, %v355
    %v357 = vcombine.low %v324, %v340
    %v358 = vcombine.high %v324, %v340
    %v360 = vunpack.c.l.s4 1934713408
    %v361 = vunpack.c.0.s8 %v360
    %v362 = vlaneseq
    %v363 = vshrl.u32 %v362, 7
    %v364 = vsub.s32 %v361, %v363
    %v365 = vrot.slane %v357, %v364
    %v367 = vunpack.c.l.s4 1934713408
    %v368 = vunpack.c.0.s8 %v367
    %v369 = vlaneseq
    %v370 = vshrl.u32 %v369, 7
    %v371 = vsub.s32 %v368, %v370
    %v372 = vrot.slane %v358, %v371
    %v373 = vcombine.high %v349, 0.0
    %v374 = vcombine.high %v356, 0.0
    %v375 = vcombine.high %v365, 0.0
    %v376 = vcombine.high %v372, 0.0
    %v377 = vcombine.low %v255, %v288
    %v378 = vcombine.high %v255, %v288
    %v380 = vunpack.c.l.s4 1983009808
    %v381 = vunpack.c.0.s8 %v380
    %v382 = vlaneseq
    %v383 = vshrl.u32 %v382, 7
    %v384 = vsub.s32 %v381, %v383
    %v385 = vrot.slane %v377, %v384
    %v387 = vunpack.c.l.s4 1983009808
    %v388 = vunpack.c.0.s8 %v387
    %v389 = vlaneseq
    %v390 = vshrl.u32 %v389, 7
    %v391 = vsub.s32 %v388, %v390
    %v392 = vrot.slane %v378, %v391
    %v393 = vcombine.low %v276, %v300
    %v394 = vcombine.high %v276, %v300
    %v396 = vunpack.c.l.s4 1983009808
    %v397 = vunpack.c.0.s8 %v396
    %v398 = vlaneseq
    %v399 = vshrl.u32 %v398, 7
    %v400 = vsub.s32 %v397, %v399
    %v401 = vrot.slane %v393, %v400
    %v403 = vunpack.c.l.s4 1983009808
    %v404 = vunpack.c.0.s8 %v403
    %v405 = vlaneseq
    %v406 = vshrl.u32 %v405, 7
    %v407 = vsub.s32 %v404, %v406
    %v408 = vrot.slane %v394, %v407
    %v409 = vcombine.low %v385, %v401
    %v410 = vcombine.high %v385, %v401
    %v412 = vunpack.c.l.s4 1934713408
    %v413 = vunpack.c.0.s8 %v412
    %v414 = vlaneseq
    %v415 = vshrl.u32 %v414, 7
    %v416 = vsub.s32 %v413, %v415
    %v417 = vrot.slane %v409, %v416
    %v419 = vunpack.c.l.s4 1934713408
    %v420 = vunpack.c.0.s8 %v419
    %v421 = vlaneseq
    %v422 = vshrl.u32 %v421, 7
    %v423 = vsub.s32 %v420, %v422
    %v424 = vrot.slane %v410, %v423
    %v425 = vcombine.low %v392, %v408
    %v426 = vcombine.high %v392, %v408
    %v428 = vunpack.c.l.s4 1934713408
    %v429 = vunpack.c.0.s8 %v428
    %v430 = vlaneseq
    %v431 = vshrl.u32 %v430, 7
    %v432 = vsub.s32 %v429, %v431
    %v433 = vrot.slane %v425, %v432
    %v435 = vunpack.c.l.s4 1934713408
    %v436 = vunpack.c.0.s8 %v435
    %v437 = vlaneseq
    %v438 = vshrl.u32 %v437, 7
    %v439 = vsub.s32 %v436, %v438
    %v440 = vrot.slane %v426, %v439
    %v441 = vcombine.high %v417, 0.0
    %v442 = vcombine.high %v424, 0.0
    %v443 = vcombine.high %v433, 0.0
    %v444 = vcombine.high %v440, 0.0
    %v445 = vcombine.low %v261, %v290
    %v446 = vcombine.high %v261, %v290
    %v448 = vunpack.c.l.s4 1983009808
    %v449 = vunpack.c.0.s8 %v448
    %v450 = vlaneseq
    %v451 = vshrl.u32 %v450, 7
    %v452 = vsub.s32 %v449, %v451
    %v453 = vrot.slane %v445, %v452
    %v455 = vunpack.c.l.s4 1983009808
    %v456 = vunpack.c.0.s8 %v455
    %v457 = vlaneseq
    %v458 = vshrl.u32 %v457, 7
    %v459 = vsub.s32 %v456, %v458
    %v460 = vrot.slane %v446, %v459
    %v461 = vcombine.low %v278, %v302
    %v462 = vcombine.high %v278, %v302
    %v464 = vunpack.c.l.s4 1983009808
    %v465 = vunpack.c.0.s8 %v464
    %v466 = vlaneseq
    %v467 = vshrl.u32 %v466, 7
    %v468 = vsub.s32 %v465, %v467
    %v469 = vrot.slane %v461, %v468
    %v471 = vunpack.c.l.s4 1983009808
    %v472 = vunpack.c.0.s8 %v471
    %v473 = vlaneseq
    %v474 = vshrl.u32 %v473, 7
    %v475 = vsub.s32 %v472, %v474
    %v476 = vrot.slane %v462, %v475
    %v477 = vcombine.low %v453, %v469
    %v478 = vcombine.high %v453, %v469
    %v480 = vunpack.c.l.s4 1934713408
    %v481 = vunpack.c.0.s8 %v480
    %v482 = vlaneseq
    %v483 = vshrl.u32 %v482, 7
    %v484 = vsub.s32 %v481, %v483
    %v485 = vrot.slane %v477, %v484
    %v487 = vunpack.c.l.s4 1934713408
    %v488 = vunpack.c.0.s8 %v487
    %v489 = vlaneseq
    %v490 = vshrl.u32 %v489, 7
    %v491 = vsub.s32 %v488, %v490
    %v492 = vrot.slane %v478, %v491
    %v493 = vcombine.low %v460, %v476
    %v494 = vcombine.high %v460, %v476
    %v496 = vunpack.c.l.s4 1934713408
    %v497 = vunpack.c.0.s8 %v496
    %v498 = vlaneseq
    %v499 = vshrl.u32 %v498, 7
    %v500 = vsub.s32 %v497, %v499
    %v501 = vrot.slane %v493, %v500
    %v503 = vunpack.c.l.s4 1934713408
    %v504 = vunpack.c.0.s8 %v503
    %v505 = vlaneseq
    %v506 = vshrl.u32 %v505, 7
    %v507 = vsub.s32 %v504, %v506
    %v508 = vrot.slane %v494, %v507
    %v509 = vcombine.high %v485, 0.0
    %v510 = vcombine.high %v492, 0.0
    %v511 = vcombine.high %v501, 0.0
    %v512 = vcombine.high %v508, 0.0
    %v513 = vcombine.low %v265, %v292
    %v514 = vcombine.high %v265, %v292
    %v516 = vunpack.c.l.s4 1983009808
    %v517 = vunpack.c.0.s8 %v516
    %v518 = vlaneseq
    %v519 = vshrl.u32 %v518, 7
    %v520 = vsub.s32 %v517, %v519
    %v521 = vrot.slane %v513, %v520
    %v523 = vunpack.c.l.s4 1983009808
    %v524 = vunpack.c.0.s8 %v523
    %v525 = vlaneseq
    %v526 = vshrl.u32 %v525, 7
    %v527 = vsub.s32 %v524, %v526
    %v528 = vrot.slane %v514, %v527
    %v529 = vcombine.low %v280, %v304
    %v530 = vcombine.high %v280, %v304
    %v532 = vunpack.c.l.s4 1983009808
    %v533 = vunpack.c.0.s8 %v532
    %v534 = vlaneseq
    %v535 = vshrl.u32 %v534, 7
    %v536 = vsub.s32 %v533, %v535
    %v537 = vrot.slane %v529, %v536
    %v539 = vunpack.c.l.s4 1983009808
    %v540 = vunpack.c.0.s8 %v539
    %v541 = vlaneseq
    %v542 = vshrl.u32 %v541, 7
    %v543 = vsub.s32 %v540, %v542
    %v544 = vrot.slane %v530, %v543
    %v545 = vcombine.low %v521, %v537
    %v546 = vcombine.high %v521, %v537
    %v548 = vunpack.c.l.s4 1934713408
    %v549 = vunpack.c.0.s8 %v548
    %v550 = vlaneseq
    %v551 = vshrl.u32 %v550, 7
    %v552 = vsub.s32 %v549, %v551
    %v553 = vrot.slane %v545, %v552
    %v555 = vunpack.c.l.s4 1934713408
    %v556 = vunpack.c.0.s8 %v555
    %v557 = vlaneseq
    %v558 = vshrl.u32 %v557, 7
    %v559 = vsub.s32 %v556, %v558
    %v560 = vrot.slane %v546, %v559
    %v561 = vcombine.low %v528, %v544
    %v562 = vcombine.high %v528, %v544
    %v564 = vunpack.c.l.s4 1934713408
    %v565 = vunpack.c.0.s8 %v564
    %v566 = vlaneseq
    %v567 = vshrl.u32 %v566, 7
    %v568 = vsub.s32 %v565, %v567
    %v569 = vrot.slane %v561, %v568
    %v571 = vunpack.c.l.s4 1934713408
    %v572 = vunpack.c.0.s8 %v571
    %v573 = vlaneseq
    %v574 = vshrl.u32 %v573, 7
    %v575 = vsub.s32 %v572, %v574
    %v576 = vrot.slane %v562, %v575
    %v577 = vcombine.high %v553, 0.0
    %v578 = vcombine.high %v560, 0.0
    %v579 = vcombine.high %v569, 0.0
    %v580 = vcombine.high %v576, 0.0
    %v581 = vcombine.low %v349, %v356
    %v583 = vunpack.c.l.s4 1983009808
    %v584 = vunpack.c.0.s8 %v583
    %v585 = vlaneseq
    %v586 = vshrl.u32 %v585, 7
    %v587 = vsub.s32 %v584, %v586
    %v588 = vrot.slane %v581, %v587
    %v589 = vcombine.low %v373, %v374
    %v591 = vunpack.c.l.s4 1983009808
    %v592 = vunpack.c.0.s8 %v591
    %v593 = vlaneseq
    %v594 = vshrl.u32 %v593, 7
    %v595 = vsub.s32 %v592, %v594
    %v596 = vrot.slane %v589, %v595
    %v597 = vcombine.low %v365, %v372
    %v599 = vunpack.c.l.s4 1983009808
    %v600 = vunpack.c.0.s8 %v599
    %v601 = vlaneseq
    %v602 = vshrl.u32 %v601, 7
    %v603 = vsub.s32 %v600, %v602
    %v604 = vrot.slane %v597, %v603
    %v605 = vcombine.low %v375, %v376
    %v607 = vunpack.c.l.s4 1983009808
    %v608 = vunpack.c.0.s8 %v607
    %v609 = vlaneseq
    %v610 = vshrl.u32 %v609, 7
    %v611 = vsub.s32 %v608, %v610
    %v612 = vrot.slane %v605, %v611
    %v613 = vcombine.low %v588, %v596
    %v614 = vcombine.high %v588, %v596
    %v616 = vunpack.c.l.s4 1934713408
    %v617 = vunpack.c.0.s8 %v616
    %v618 = vlaneseq
    %v619 = vshrl.u32 %v618, 7
    %v620 = vsub.s32 %v617, %v619
    %v621 = vrot.slane %v613, %v620
    %v623 = vunpack.c.l.s4 1934713408
    %v624 = vunpack.c.0.s8 %v623
    %v625 = vlaneseq
    %v626 = vshrl.u32 %v625, 7
    %v627 = vsub.s32 %v624, %v626
    %v628 = vrot.slane %v614, %v627
    %v629 = vcombine.low %v604, %v612
    %v630 = vcombine.high %v604, %v612
    %v632 = vunpack.c.l.s4 1934713408
    %v633 = vunpack.c.0.s8 %v632
    %v634 = vlaneseq
    %v635 = vshrl.u32 %v634, 7
    %v636 = vsub.s32 %v633, %v635
    %v637 = vrot.slane %v629, %v636
    %v639 = vunpack.c.l.s4 1934713408
    %v640 = vunpack.c.0.s8 %v639
    %v641 = vlaneseq
    %v642 = vshrl.u32 %v641, 7
    %v643 = vsub.s32 %v640, %v642
    %v644 = vrot.slane %v630, %v643
    %v645 = vcombine.low %v621, %v637
    %v646 = vcombine.high %v621, %v637
    %v647 = vcombine.low %v628, %v644
    %v648 = vcombine.high %v628, %v644
    %v649 = vcombine.low %v417, %v424
    %v651 = vunpack.c.l.s4 1983009808
    %v652 = vunpack.c.0.s8 %v651
    %v653 = vlaneseq
    %v654 = vshrl.u32 %v653, 7
    %v655 = vsub.s32 %v652, %v654
    %v656 = vrot.slane %v649, %v655
    %v657 = vcombine.low %v441, %v442
    %v659 = vunpack.c.l.s4 1983009808
    %v660 = vunpack.c.0.s8 %v659
    %v661 = vlaneseq
    %v662 = vshrl.u32 %v661, 7
    %v663 = vsub.s32 %v660, %v662
    %v664 = vrot.slane %v657, %v663
    %v665 = vcombine.low %v433, %v440
    %v667 = vunpack.c.l.s4 1983009808
    %v668 = vunpack.c.0.s8 %v667
    %v669 = vlaneseq
    %v670 = vshrl.u32 %v669, 7
    %v671 = vsub.s32 %v668, %v670
    %v672 = vrot.slane %v665, %v671
    %v673 = vcombine.low %v443, %v444
    %v675 = vunpack.c.l.s4 1983009808
    %v676 = vunpack.c.0.s8 %v675
    %v677 = vlaneseq
    %v678 = vshrl.u32 %v677, 7
    %v679 = vsub.s32 %v676, %v678
    %v680 = vrot.slane %v673, %v679
    %v681 = vcombine.low %v656, %v664
    %v682 = vcombine.high %v656, %v664
    %v684 = vunpack.c.l.s4 1934713408
    %v685 = vunpack.c.0.s8 %v684
    %v686 = vlaneseq
    %v687 = vshrl.u32 %v686, 7
    %v688 = vsub.s32 %v685, %v687
    %v689 = vrot.slane %v681, %v688
    %v691 = vunpack.c.l.s4 1934713408
    %v692 = vunpack.c.0.s8 %v691
    %v693 = vlaneseq
    %v694 = vshrl.u32 %v693, 7
    %v695 = vsub.s32 %v692, %v694
    %v696 = vrot.slane %v682, %v695
    %v697 = vcombine.low %v672, %v680
    %v698 = vcombine.high %v672, %v680
    %v700 = vunpack.c.l.s4 1934713408
    %v701 = vunpack.c.0.s8 %v700
    %v702 = vlaneseq
    %v703 = vshrl.u32 %v702, 7
    %v704 = vsub.s32 %v701, %v703
    %v705 = vrot.slane %v697, %v704
    %v707 = vunpack.c.l.s4 1934713408
    %v708 = vunpack.c.0.s8 %v707
    %v709 = vlaneseq
    %v710 = vshrl.u32 %v709, 7
    %v711 = vsub.s32 %v708, %v710
    %v712 = vrot.slane %v698, %v711
    %v713 = vcombine.low %v689, %v705
    %v714 = vcombine.high %v689, %v705
    %v715 = vcombine.low %v696, %v712
    %v716 = vcombine.high %v696, %v712
    %v717 = vcombine.low %v485, %v492
    %v719 = vunpack.c.l.s4 1983009808
    %v720 = vunpack.c.0.s8 %v719
    %v721 = vlaneseq
    %v722 = vshrl.u32 %v721, 7
    %v723 = vsub.s32 %v720, %v722
    %v724 = vrot.slane %v717, %v723
    %v725 = vcombine.low %v509, %v510
    %v727 = vunpack.c.l.s4 1983009808
    %v728 = vunpack.c.0.s8 %v727
    %v729 = vlaneseq
    %v730 = vshrl.u32 %v729, 7
    %v731 = vsub.s32 %v728, %v730
    %v732 = vrot.slane %v725, %v731
    %v733 = vcombine.low %v501, %v508
    %v735 = vunpack.c.l.s4 1983009808
    %v736 = vunpack.c.0.s8 %v735
    %v737 = vlaneseq
    %v738 = vshrl.u32 %v737, 7
    %v739 = vsub.s32 %v736, %v738
    %v740 = vrot.slane %v733, %v739
    %v741 = vcombine.low %v511, %v512
    %v743 = vunpack.c.l.s4 1983009808
    %v744 = vunpack.c.0.s8 %v743
    %v745 = vlaneseq
    %v746 = vshrl.u32 %v745, 7
    %v747 = vsub.s32 %v744, %v746
    %v748 = vrot.slane %v741, %v747
    %v749 = vcombine.low %v724, %v732
    %v750 = vcombine.high %v724, %v732
    %v752 = vunpack.c.l.s4 1934713408
    %v753 = vunpack.c.0.s8 %v752
    %v754 = vlaneseq
    %v755 = vshrl.u32 %v754, 7
    %v756 = vsub.s32 %v753, %v755
    %v757 = vrot.slane %v749, %v756
    %v759 = vunpack.c.l.s4 1934713408
    %v760 = vunpack.c.0.s8 %v759
    %v761 = vlaneseq
    %v762 = vshrl.u32 %v761, 7
    %v763 = vsub.s32 %v760, %v762
    %v764 = vrot.slane %v750, %v763
    %v765 = vcombine.low %v740, %v748
    %v766 = vcombine.high %v740, %v748
    %v768 = vunpack.c.l.s4 1934713408
    %v769 = vunpack.c.0.s8 %v768
    %v770 = vlaneseq
    %v771 = vshrl.u32 %v770, 7
    %v772 = vsub.s32 %v769, %v771
    %v773 = vrot.slane %v765, %v772
    %v775 = vunpack.c.l.s4 1934713408
    %v776 = vunpack.c.0.s8 %v775
    %v777 = vlaneseq
    %v778 = vshrl.u32 %v777, 7
    %v779 = vsub.s32 %v776, %v778
    %v780 = vrot.slane %v766, %v779
    %v781 = vcombine.low %v757, %v773
    %v782 = vcombine.high %v757, %v773
    %v783 = vcombine.low %v764, %v780
    %v784 = vcombine.high %v764, %v780
    %v785 = vcombine.low %v553, %v560
    %v787 = vunpack.c.l.s4 1983009808
    %v788 = vunpack.c.0.s8 %v787
    %v789 = vlaneseq
    %v790 = vshrl.u32 %v789, 7
    %v791 = vsub.s32 %v788, %v790
    %v792 = vrot.slane %v785, %v791
    %v793 = vcombine.low %v577, %v578
    %v795 = vunpack.c.l.s4 1983009808
    %v796 = vunpack.c.0.s8 %v795
    %v797 = vlaneseq
    %v798 = vshrl.u32 %v797, 7
    %v799 = vsub.s32 %v796, %v798
    %v800 = vrot.slane %v793, %v799
    %v801 = vcombine.low %v569, %v576
    %v803 = vunpack.c.l.s4 1983009808
    %v804 = vunpack.c.0.s8 %v803
    %v805 = vlaneseq
    %v806 = vshrl.u32 %v805, 7
    %v807 = vsub.s32 %v804, %v806
    %v808 = vrot.slane %v801, %v807
    %v809 = vcombine.low %v579, %v580
    %v811 = vunpack.c.l.s4 1983009808
    %v812 = vunpack.c.0.s8 %v811
    %v813 = vlaneseq
    %v814 = vshrl.u32 %v813, 7
    %v815 = vsub.s32 %v812, %v814
    %v816 = vrot.slane %v809, %v815
    %v817 = vcombine.low %v792, %v800
    %v818 = vcombine.high %v792, %v800
    %v820 = vunpack.c.l.s4 1934713408
    %v821 = vunpack.c.0.s8 %v820
    %v822 = vlaneseq
    %v823 = vshrl.u32 %v822, 7
    %v824 = vsub.s32 %v821, %v823
    %v825 = vrot.slane %v817, %v824
    %v827 = vunpack.c.l.s4 1934713408
    %v828 = vunpack.c.0.s8 %v827
    %v829 = vlaneseq
    %v830 = vshrl.u32 %v829, 7
    %v831 = vsub.s32 %v828, %v830
    %v832 = vrot.slane %v818, %v831
    %v833 = vcombine.low %v808, %v816
    %v834 = vcombine.high %v808, %v816
    %v836 = vunpack.c.l.s4 1934713408
    %v837 = vunpack.c.0.s8 %v836
    %v838 = vlaneseq
    %v839 = vshrl.u32 %v838, 7
    %v840 = vsub.s32 %v837, %v839
    %v841 = vrot.slane %v833, %v840
    %v843 = vunpack.c.l.s4 1934713408
    %v844 = vunpack.c.0.s8 %v843
    %v845 = vlaneseq
    %v846 = vshrl.u32 %v845, 7
    %v847 = vsub.s32 %v844, %v846
    %v848 = vrot.slane %v834, %v847
    %v849 = vcombine.low %v825, %v841
    %v850 = vcombine.high %v825, %v841
    %v851 = vcombine.low %v832, %v848
    %v852 = vcombine.high %v832, %v848
    %v853 = vmul.f32 %v645, 0.25
    %v854 = vmul.f32 %v646, 0.25
    %v855 = vmul.f32 %v647, 0.25
    %v856 = vmul.f32 %v648, 0.25
    %v857 = vmul.f32 %v713, 0.25
    %v858 = vmul.f32 %v714, 0.25
    %v859 = vmul.f32 %v715, 0.25
    %v860 = vmul.f32 %v716, 0.25
    %v861 = vmul.f32 %v781, 0.25
    %v862 = vmul.f32 %v782, 0.25
    %v863 = vmul.f32 %v783, 0.25
    %v864 = vmul.f32 %v784, 0.25
    %v865 = vmul.f32 %v849, 0.25
    %v866 = vmul.f32 %v850, 0.25
    %v867 = vmul.f32 %v851, 0.25
    %v868 = vmul.f32 %v852, 0.25
    %869 = vrot.lane.b32.xlu0 %v251, 64
    %v870 = vpop.permute.xlu0 %869
    %871 = vrot.lane.b32.xlu0 %v255, 64
    %v872 = vpop.permute.xlu0 %871
    %873 = vrot.lane.b32.xlu0 %v261, 64
    %v874 = vpop.permute.xlu0 %873
    %875 = vrot.lane.b32.xlu0 %v265, 64
    %v876 = vpop.permute.xlu0 %875
    %877 = vrot.lane.b32.xlu0 %v274, 64
    %v878 = vpop.permute.xlu0 %877
    %879 = vrot.lane.b32.xlu0 %v276, 64
    %v880 = vpop.permute.xlu0 %879
    %881 = vrot.lane.b32.xlu0 %v278, 64
    %v882 = vpop.permute.xlu0 %881
    %883 = vrot.lane.b32.xlu0 %v280, 64
    %v884 = vpop.permute.xlu0 %883
    %885 = vrot.lane.b32.xlu0 %v286, 64
    %v886 = vpop.permute.xlu0 %885
    %887 = vrot.lane.b32.xlu0 %v288, 64
    %v888 = vpop.permute.xlu0 %887
    %889 = vrot.lane.b32.xlu0 %v290, 64
    %v890 = vpop.permute.xlu0 %889
    %891 = vrot.lane.b32.xlu0 %v292, 64
    %v892 = vpop.permute.xlu0 %891
    %893 = vrot.lane.b32.xlu0 %v298, 64
    %v894 = vpop.permute.xlu0 %893
    %895 = vrot.lane.b32.xlu0 %v300, 64
    %v896 = vpop.permute.xlu0 %895
    %897 = vrot.lane.b32.xlu0 %v302, 64
    %v898 = vpop.permute.xlu0 %897
    %899 = vrot.lane.b32.xlu0 %v304, 64
    %v900 = vpop.permute.xlu0 %899
    %v917 = vcombine.low %v870, %v886
    %v918 = vcombine.high %v870, %v886
    %v920 = vunpack.c.l.s4 1983009808
    %v921 = vunpack.c.0.s8 %v920
    %v922 = vlaneseq
    %v923 = vshrl.u32 %v922, 7
    %v924 = vsub.s32 %v921, %v923
    %v925 = vrot.slane %v917, %v924
    %v927 = vunpack.c.l.s4 1983009808
    %v928 = vunpack.c.0.s8 %v927
    %v929 = vlaneseq
    %v930 = vshrl.u32 %v929, 7
    %v931 = vsub.s32 %v928, %v930
    %v932 = vrot.slane %v918, %v931
    %v933 = vcombine.low %v878, %v894
    %v934 = vcombine.high %v878, %v894
    %v936 = vunpack.c.l.s4 1983009808
    %v937 = vunpack.c.0.s8 %v936
    %v938 = vlaneseq
    %v939 = vshrl.u32 %v938, 7
    %v940 = vsub.s32 %v937, %v939
    %v941 = vrot.slane %v933, %v940
    %v943 = vunpack.c.l.s4 1983009808
    %v944 = vunpack.c.0.s8 %v943
    %v945 = vlaneseq
    %v946 = vshrl.u32 %v945, 7
    %v947 = vsub.s32 %v944, %v946
    %v948 = vrot.slane %v934, %v947
    %v949 = vcombine.low %v925, %v941
    %v950 = vcombine.high %v925, %v941
    %v952 = vunpack.c.l.s4 1934713408
    %v953 = vunpack.c.0.s8 %v952
    %v954 = vlaneseq
    %v955 = vshrl.u32 %v954, 7
    %v956 = vsub.s32 %v953, %v955
    %v957 = vrot.slane %v949, %v956
    %v959 = vunpack.c.l.s4 1934713408
    %v960 = vunpack.c.0.s8 %v959
    %v961 = vlaneseq
    %v962 = vshrl.u32 %v961, 7
    %v963 = vsub.s32 %v960, %v962
    %v964 = vrot.slane %v950, %v963
    %v965 = vcombine.low %v932, %v948
    %v966 = vcombine.high %v932, %v948
    %v968 = vunpack.c.l.s4 1934713408
    %v969 = vunpack.c.0.s8 %v968
    %v970 = vlaneseq
    %v971 = vshrl.u32 %v970, 7
    %v972 = vsub.s32 %v969, %v971
    %v973 = vrot.slane %v965, %v972
    %v975 = vunpack.c.l.s4 1934713408
    %v976 = vunpack.c.0.s8 %v975
    %v977 = vlaneseq
    %v978 = vshrl.u32 %v977, 7
    %v979 = vsub.s32 %v976, %v978
    %v980 = vrot.slane %v966, %v979
    %v981 = vcombine.high %v957, 0.0
    %v982 = vcombine.high %v964, 0.0
    %v983 = vcombine.high %v973, 0.0
    %v984 = vcombine.high %v980, 0.0
    %v985 = vcombine.low %v872, %v888
    %v986 = vcombine.high %v872, %v888
    %v988 = vunpack.c.l.s4 1983009808
    %v989 = vunpack.c.0.s8 %v988
    %v990 = vlaneseq
    %v991 = vshrl.u32 %v990, 7
    %v992 = vsub.s32 %v989, %v991
    %v993 = vrot.slane %v985, %v992
    %v995 = vunpack.c.l.s4 1983009808
    %v996 = vunpack.c.0.s8 %v995
    %v997 = vlaneseq
    %v998 = vshrl.u32 %v997, 7
    %v999 = vsub.s32 %v996, %v998
    %v1000 = vrot.slane %v986, %v999
    %v1001 = vcombine.low %v880, %v896
    %v1002 = vcombine.high %v880, %v896
    %v1004 = vunpack.c.l.s4 1983009808
    %v1005 = vunpack.c.0.s8 %v1004
    %v1006 = vlaneseq
    %v1007 = vshrl.u32 %v1006, 7
    %v1008 = vsub.s32 %v1005, %v1007
    %v1009 = vrot.slane %v1001, %v1008
    %v1011 = vunpack.c.l.s4 1983009808
    %v1012 = vunpack.c.0.s8 %v1011
    %v1013 = vlaneseq
    %v1014 = vshrl.u32 %v1013, 7
    %v1015 = vsub.s32 %v1012, %v1014
    %v1016 = vrot.slane %v1002, %v1015
    %v1017 = vcombine.low %v993, %v1009
    %v1018 = vcombine.high %v993, %v1009
    %v1020 = vunpack.c.l.s4 1934713408
    %v1021 = vunpack.c.0.s8 %v1020
    %v1022 = vlaneseq
    %v1023 = vshrl.u32 %v1022, 7
    %v1024 = vsub.s32 %v1021, %v1023
    %v1025 = vrot.slane %v1017, %v1024
    %v1027 = vunpack.c.l.s4 1934713408
    %v1028 = vunpack.c.0.s8 %v1027
    %v1029 = vlaneseq
    %v1030 = vshrl.u32 %v1029, 7
    %v1031 = vsub.s32 %v1028, %v1030
    %v1032 = vrot.slane %v1018, %v1031
    %v1033 = vcombine.low %v1000, %v1016
    %v1034 = vcombine.high %v1000, %v1016
    %v1036 = vunpack.c.l.s4 1934713408
    %v1037 = vunpack.c.0.s8 %v1036
    %v1038 = vlaneseq
    %v1039 = vshrl.u32 %v1038, 7
    %v1040 = vsub.s32 %v1037, %v1039
    %v1041 = vrot.slane %v1033, %v1040
    %v1043 = vunpack.c.l.s4 1934713408
    %v1044 = vunpack.c.0.s8 %v1043
    %v1045 = vlaneseq
    %v1046 = vshrl.u32 %v1045, 7
    %v1047 = vsub.s32 %v1044, %v1046
    %v1048 = vrot.slane %v1034, %v1047
    %v1049 = vcombine.high %v1025, 0.0
    %v1050 = vcombine.high %v1032, 0.0
    %v1051 = vcombine.high %v1041, 0.0
    %v1052 = vcombine.high %v1048, 0.0
    %v1053 = vcombine.low %v874, %v890
    %v1054 = vcombine.high %v874, %v890
    %v1056 = vunpack.c.l.s4 1983009808
    %v1057 = vunpack.c.0.s8 %v1056
    %v1058 = vlaneseq
    %v1059 = vshrl.u32 %v1058, 7
    %v1060 = vsub.s32 %v1057, %v1059
    %v1061 = vrot.slane %v1053, %v1060
    %v1063 = vunpack.c.l.s4 1983009808
    %v1064 = vunpack.c.0.s8 %v1063
    %v1065 = vlaneseq
    %v1066 = vshrl.u32 %v1065, 7
    %v1067 = vsub.s32 %v1064, %v1066
    %v1068 = vrot.slane %v1054, %v1067
    %v1069 = vcombine.low %v882, %v898
    %v1070 = vcombine.high %v882, %v898
    %v1072 = vunpack.c.l.s4 1983009808
    %v1073 = vunpack.c.0.s8 %v1072
    %v1074 = vlaneseq
    %v1075 = vshrl.u32 %v1074, 7
    %v1076 = vsub.s32 %v1073, %v1075
    %v1077 = vrot.slane %v1069, %v1076
    %v1079 = vunpack.c.l.s4 1983009808
    %v1080 = vunpack.c.0.s8 %v1079
    %v1081 = vlaneseq
    %v1082 = vshrl.u32 %v1081, 7
    %v1083 = vsub.s32 %v1080, %v1082
    %v1084 = vrot.slane %v1070, %v1083
    %v1085 = vcombine.low %v1061, %v1077
    %v1086 = vcombine.high %v1061, %v1077
    %v1088 = vunpack.c.l.s4 1934713408
    %v1089 = vunpack.c.0.s8 %v1088
    %v1090 = vlaneseq
    %v1091 = vshrl.u32 %v1090, 7
    %v1092 = vsub.s32 %v1089, %v1091
    %v1093 = vrot.slane %v1085, %v1092
    %v1095 = vunpack.c.l.s4 1934713408
    %v1096 = vunpack.c.0.s8 %v1095
    %v1097 = vlaneseq
    %v1098 = vshrl.u32 %v1097, 7
    %v1099 = vsub.s32 %v1096, %v1098
    %v1100 = vrot.slane %v1086, %v1099
    %v1101 = vcombine.low %v1068, %v1084
    %v1102 = vcombine.high %v1068, %v1084
    %v1104 = vunpack.c.l.s4 1934713408
    %v1105 = vunpack.c.0.s8 %v1104
    %v1106 = vlaneseq
    %v1107 = vshrl.u32 %v1106, 7
    %v1108 = vsub.s32 %v1105, %v1107
    %v1109 = vrot.slane %v1101, %v1108
    %v1111 = vunpack.c.l.s4 1934713408
    %v1112 = vunpack.c.0.s8 %v1111
    %v1113 = vlaneseq
    %v1114 = vshrl.u32 %v1113, 7
    %v1115 = vsub.s32 %v1112, %v1114
    %v1116 = vrot.slane %v1102, %v1115
    %v1117 = vcombine.high %v1093, 0.0
    %v1118 = vcombine.high %v1100, 0.0
    %v1119 = vcombine.high %v1109, 0.0
    %v1120 = vcombine.high %v1116, 0.0
    %v1121 = vcombine.low %v876, %v892
    %v1122 = vcombine.high %v876, %v892
    %v1124 = vunpack.c.l.s4 1983009808
    %v1125 = vunpack.c.0.s8 %v1124
    %v1126 = vlaneseq
    %v1127 = vshrl.u32 %v1126, 7
    %v1128 = vsub.s32 %v1125, %v1127
    %v1129 = vrot.slane %v1121, %v1128
    %v1131 = vunpack.c.l.s4 1983009808
    %v1132 = vunpack.c.0.s8 %v1131
    %v1133 = vlaneseq
    %v1134 = vshrl.u32 %v1133, 7
    %v1135 = vsub.s32 %v1132, %v1134
    %v1136 = vrot.slane %v1122, %v1135
    %v1137 = vcombine.low %v884, %v900
    %v1138 = vcombine.high %v884, %v900
    %v1140 = vunpack.c.l.s4 1983009808
    %v1141 = vunpack.c.0.s8 %v1140
    %v1142 = vlaneseq
    %v1143 = vshrl.u32 %v1142, 7
    %v1144 = vsub.s32 %v1141, %v1143
    %v1145 = vrot.slane %v1137, %v1144
    %v1147 = vunpack.c.l.s4 1983009808
    %v1148 = vunpack.c.0.s8 %v1147
    %v1149 = vlaneseq
    %v1150 = vshrl.u32 %v1149, 7
    %v1151 = vsub.s32 %v1148, %v1150
    %v1152 = vrot.slane %v1138, %v1151
    %v1153 = vcombine.low %v1129, %v1145
    %v1154 = vcombine.high %v1129, %v1145
    %v1156 = vunpack.c.l.s4 1934713408
    %v1157 = vunpack.c.0.s8 %v1156
    %v1158 = vlaneseq
    %v1159 = vshrl.u32 %v1158, 7
    %v1160 = vsub.s32 %v1157, %v1159
    %v1161 = vrot.slane %v1153, %v1160
    %v1163 = vunpack.c.l.s4 1934713408
    %v1164 = vunpack.c.0.s8 %v1163
    %v1165 = vlaneseq
    %v1166 = vshrl.u32 %v1165, 7
    %v1167 = vsub.s32 %v1164, %v1166
    %v1168 = vrot.slane %v1154, %v1167
    %v1169 = vcombine.low %v1136, %v1152
    %v1170 = vcombine.high %v1136, %v1152
    %v1172 = vunpack.c.l.s4 1934713408
    %v1173 = vunpack.c.0.s8 %v1172
    %v1174 = vlaneseq
    %v1175 = vshrl.u32 %v1174, 7
    %v1176 = vsub.s32 %v1173, %v1175
    %v1177 = vrot.slane %v1169, %v1176
    %v1179 = vunpack.c.l.s4 1934713408
    %v1180 = vunpack.c.0.s8 %v1179
    %v1181 = vlaneseq
    %v1182 = vshrl.u32 %v1181, 7
    %v1183 = vsub.s32 %v1180, %v1182
    %v1184 = vrot.slane %v1170, %v1183
    %v1185 = vcombine.high %v1161, 0.0
    %v1186 = vcombine.high %v1168, 0.0
    %v1187 = vcombine.high %v1177, 0.0
    %v1188 = vcombine.high %v1184, 0.0
    %v1189 = vcombine.low %v957, %v964
    %v1191 = vunpack.c.l.s4 1983009808
    %v1192 = vunpack.c.0.s8 %v1191
    %v1193 = vlaneseq
    %v1194 = vshrl.u32 %v1193, 7
    %v1195 = vsub.s32 %v1192, %v1194
    %v1196 = vrot.slane %v1189, %v1195
    %v1197 = vcombine.low %v981, %v982
    %v1199 = vunpack.c.l.s4 1983009808
    %v1200 = vunpack.c.0.s8 %v1199
    %v1201 = vlaneseq
    %v1202 = vshrl.u32 %v1201, 7
    %v1203 = vsub.s32 %v1200, %v1202
    %v1204 = vrot.slane %v1197, %v1203
    %v1205 = vcombine.low %v973, %v980
    %v1207 = vunpack.c.l.s4 1983009808
    %v1208 = vunpack.c.0.s8 %v1207
    %v1209 = vlaneseq
    %v1210 = vshrl.u32 %v1209, 7
    %v1211 = vsub.s32 %v1208, %v1210
    %v1212 = vrot.slane %v1205, %v1211
    %v1213 = vcombine.low %v983, %v984
    %v1215 = vunpack.c.l.s4 1983009808
    %v1216 = vunpack.c.0.s8 %v1215
    %v1217 = vlaneseq
    %v1218 = vshrl.u32 %v1217, 7
    %v1219 = vsub.s32 %v1216, %v1218
    %v1220 = vrot.slane %v1213, %v1219
    %v1221 = vcombine.low %v1196, %v1204
    %v1222 = vcombine.high %v1196, %v1204
    %v1224 = vunpack.c.l.s4 1934713408
    %v1225 = vunpack.c.0.s8 %v1224
    %v1226 = vlaneseq
    %v1227 = vshrl.u32 %v1226, 7
    %v1228 = vsub.s32 %v1225, %v1227
    %v1229 = vrot.slane %v1221, %v1228
    %v1231 = vunpack.c.l.s4 1934713408
    %v1232 = vunpack.c.0.s8 %v1231
    %v1233 = vlaneseq
    %v1234 = vshrl.u32 %v1233, 7
    %v1235 = vsub.s32 %v1232, %v1234
    %v1236 = vrot.slane %v1222, %v1235
    %v1237 = vcombine.low %v1212, %v1220
    %v1238 = vcombine.high %v1212, %v1220
    %v1240 = vunpack.c.l.s4 1934713408
    %v1241 = vunpack.c.0.s8 %v1240
    %v1242 = vlaneseq
    %v1243 = vshrl.u32 %v1242, 7
    %v1244 = vsub.s32 %v1241, %v1243
    %v1245 = vrot.slane %v1237, %v1244
    %v1247 = vunpack.c.l.s4 1934713408
    %v1248 = vunpack.c.0.s8 %v1247
    %v1249 = vlaneseq
    %v1250 = vshrl.u32 %v1249, 7
    %v1251 = vsub.s32 %v1248, %v1250
    %v1252 = vrot.slane %v1238, %v1251
    %v1253 = vcombine.low %v1229, %v1245
    %v1254 = vcombine.high %v1229, %v1245
    %v1255 = vcombine.low %v1236, %v1252
    %v1256 = vcombine.high %v1236, %v1252
    %v1257 = vcombine.low %v1025, %v1032
    %v1259 = vunpack.c.l.s4 1983009808
    %v1260 = vunpack.c.0.s8 %v1259
    %v1261 = vlaneseq
    %v1262 = vshrl.u32 %v1261, 7
    %v1263 = vsub.s32 %v1260, %v1262
    %v1264 = vrot.slane %v1257, %v1263
    %v1265 = vcombine.low %v1049, %v1050
    %v1267 = vunpack.c.l.s4 1983009808
    %v1268 = vunpack.c.0.s8 %v1267
    %v1269 = vlaneseq
    %v1270 = vshrl.u32 %v1269, 7
    %v1271 = vsub.s32 %v1268, %v1270
    %v1272 = vrot.slane %v1265, %v1271
    %v1273 = vcombine.low %v1041, %v1048
    %v1275 = vunpack.c.l.s4 1983009808
    %v1276 = vunpack.c.0.s8 %v1275
    %v1277 = vlaneseq
    %v1278 = vshrl.u32 %v1277, 7
    %v1279 = vsub.s32 %v1276, %v1278
    %v1280 = vrot.slane %v1273, %v1279
    %v1281 = vcombine.low %v1051, %v1052
    %v1283 = vunpack.c.l.s4 1983009808
    %v1284 = vunpack.c.0.s8 %v1283
    %v1285 = vlaneseq
    %v1286 = vshrl.u32 %v1285, 7
    %v1287 = vsub.s32 %v1284, %v1286
    %v1288 = vrot.slane %v1281, %v1287
    %v1289 = vcombine.low %v1264, %v1272
    %v1290 = vcombine.high %v1264, %v1272
    %v1292 = vunpack.c.l.s4 1934713408
    %v1293 = vunpack.c.0.s8 %v1292
    %v1294 = vlaneseq
    %v1295 = vshrl.u32 %v1294, 7
    %v1296 = vsub.s32 %v1293, %v1295
    %v1297 = vrot.slane %v1289, %v1296
    %v1299 = vunpack.c.l.s4 1934713408
    %v1300 = vunpack.c.0.s8 %v1299
    %v1301 = vlaneseq
    %v1302 = vshrl.u32 %v1301, 7
    %v1303 = vsub.s32 %v1300, %v1302
    %v1304 = vrot.slane %v1290, %v1303
    %v1305 = vcombine.low %v1280, %v1288
    %v1306 = vcombine.high %v1280, %v1288
    %v1308 = vunpack.c.l.s4 1934713408
    %v1309 = vunpack.c.0.s8 %v1308
    %v1310 = vlaneseq
    %v1311 = vshrl.u32 %v1310, 7
    %v1312 = vsub.s32 %v1309, %v1311
    %v1313 = vrot.slane %v1305, %v1312
    %v1315 = vunpack.c.l.s4 1934713408
    %v1316 = vunpack.c.0.s8 %v1315
    %v1317 = vlaneseq
    %v1318 = vshrl.u32 %v1317, 7
    %v1319 = vsub.s32 %v1316, %v1318
    %v1320 = vrot.slane %v1306, %v1319
    %v1321 = vcombine.low %v1297, %v1313
    %v1322 = vcombine.high %v1297, %v1313
    %v1323 = vcombine.low %v1304, %v1320
    %v1324 = vcombine.high %v1304, %v1320
    %v1325 = vcombine.low %v1093, %v1100
    %v1327 = vunpack.c.l.s4 1983009808
    %v1328 = vunpack.c.0.s8 %v1327
    %v1329 = vlaneseq
    %v1330 = vshrl.u32 %v1329, 7
    %v1331 = vsub.s32 %v1328, %v1330
    %v1332 = vrot.slane %v1325, %v1331
    %v1333 = vcombine.low %v1117, %v1118
    %v1335 = vunpack.c.l.s4 1983009808
    %v1336 = vunpack.c.0.s8 %v1335
    %v1337 = vlaneseq
    %v1338 = vshrl.u32 %v1337, 7
    %v1339 = vsub.s32 %v1336, %v1338
    %v1340 = vrot.slane %v1333, %v1339
    %v1341 = vcombine.low %v1109, %v1116
    %v1343 = vunpack.c.l.s4 1983009808
    %v1344 = vunpack.c.0.s8 %v1343
    %v1345 = vlaneseq
    %v1346 = vshrl.u32 %v1345, 7
    %v1347 = vsub.s32 %v1344, %v1346
    %v1348 = vrot.slane %v1341, %v1347
    %v1349 = vcombine.low %v1119, %v1120
    %v1351 = vunpack.c.l.s4 1983009808
    %v1352 = vunpack.c.0.s8 %v1351
    %v1353 = vlaneseq
    %v1354 = vshrl.u32 %v1353, 7
    %v1355 = vsub.s32 %v1352, %v1354
    %v1356 = vrot.slane %v1349, %v1355
    %v1357 = vcombine.low %v1332, %v1340
    %v1358 = vcombine.high %v1332, %v1340
    %v1360 = vunpack.c.l.s4 1934713408
    %v1361 = vunpack.c.0.s8 %v1360
    %v1362 = vlaneseq
    %v1363 = vshrl.u32 %v1362, 7
    %v1364 = vsub.s32 %v1361, %v1363
    %v1365 = vrot.slane %v1357, %v1364
    %v1367 = vunpack.c.l.s4 1934713408
    %v1368 = vunpack.c.0.s8 %v1367
    %v1369 = vlaneseq
    %v1370 = vshrl.u32 %v1369, 7
    %v1371 = vsub.s32 %v1368, %v1370
    %v1372 = vrot.slane %v1358, %v1371
    %v1373 = vcombine.low %v1348, %v1356
    %v1374 = vcombine.high %v1348, %v1356
    %v1376 = vunpack.c.l.s4 1934713408
    %v1377 = vunpack.c.0.s8 %v1376
    %v1378 = vlaneseq
    %v1379 = vshrl.u32 %v1378, 7
    %v1380 = vsub.s32 %v1377, %v1379
    %v1381 = vrot.slane %v1373, %v1380
    %v1383 = vunpack.c.l.s4 1934713408
    %v1384 = vunpack.c.0.s8 %v1383
    %v1385 = vlaneseq
    %v1386 = vshrl.u32 %v1385, 7
    %v1387 = vsub.s32 %v1384, %v1386
    %v1388 = vrot.slane %v1374, %v1387
    %v1389 = vcombine.low %v1365, %v1381
    %v1390 = vcombine.high %v1365, %v1381
    %v1391 = vcombine.low %v1372, %v1388
    %v1392 = vcombine.high %v1372, %v1388
    %v1393 = vcombine.low %v1161, %v1168
    %v1395 = vunpack.c.l.s4 1983009808
    %v1396 = vunpack.c.0.s8 %v1395
    %v1397 = vlaneseq
    %v1398 = vshrl.u32 %v1397, 7
    %v1399 = vsub.s32 %v1396, %v1398
    %v1400 = vrot.slane %v1393, %v1399
    %v1401 = vcombine.low %v1185, %v1186
    %v1403 = vunpack.c.l.s4 1983009808
    %v1404 = vunpack.c.0.s8 %v1403
    %v1405 = vlaneseq
    %v1406 = vshrl.u32 %v1405, 7
    %v1407 = vsub.s32 %v1404, %v1406
    %v1408 = vrot.slane %v1401, %v1407
    %v1409 = vcombine.low %v1177, %v1184
    %v1411 = vunpack.c.l.s4 1983009808
    %v1412 = vunpack.c.0.s8 %v1411
    %v1413 = vlaneseq
    %v1414 = vshrl.u32 %v1413, 7
    %v1415 = vsub.s32 %v1412, %v1414
    %v1416 = vrot.slane %v1409, %v1415
    %v1417 = vcombine.low %v1187, %v1188
    %v1419 = vunpack.c.l.s4 1983009808
    %v1420 = vunpack.c.0.s8 %v1419
    %v1421 = vlaneseq
    %v1422 = vshrl.u32 %v1421, 7
    %v1423 = vsub.s32 %v1420, %v1422
    %v1424 = vrot.slane %v1417, %v1423
    %v1425 = vcombine.low %v1400, %v1408
    %v1426 = vcombine.high %v1400, %v1408
    %v1428 = vunpack.c.l.s4 1934713408
    %v1429 = vunpack.c.0.s8 %v1428
    %v1430 = vlaneseq
    %v1431 = vshrl.u32 %v1430, 7
    %v1432 = vsub.s32 %v1429, %v1431
    %v1433 = vrot.slane %v1425, %v1432
    %v1435 = vunpack.c.l.s4 1934713408
    %v1436 = vunpack.c.0.s8 %v1435
    %v1437 = vlaneseq
    %v1438 = vshrl.u32 %v1437, 7
    %v1439 = vsub.s32 %v1436, %v1438
    %v1440 = vrot.slane %v1426, %v1439
    %v1441 = vcombine.low %v1416, %v1424
    %v1442 = vcombine.high %v1416, %v1424
    %v1444 = vunpack.c.l.s4 1934713408
    %v1445 = vunpack.c.0.s8 %v1444
    %v1446 = vlaneseq
    %v1447 = vshrl.u32 %v1446, 7
    %v1448 = vsub.s32 %v1445, %v1447
    %v1449 = vrot.slane %v1441, %v1448
    %v1451 = vunpack.c.l.s4 1934713408
    %v1452 = vunpack.c.0.s8 %v1451
    %v1453 = vlaneseq
    %v1454 = vshrl.u32 %v1453, 7
    %v1455 = vsub.s32 %v1452, %v1454
    %v1456 = vrot.slane %v1442, %v1455
    %v1457 = vcombine.low %v1433, %v1449
    %v1458 = vcombine.high %v1433, %v1449
    %v1459 = vcombine.low %v1440, %v1456
    %v1460 = vcombine.high %v1440, %v1456
    %1465 = vrot.lane.b32.xlu0 %v253, 112
    %v1466 = vpop.permute.xlu0 %1465
    %1467 = vrot.lane.b32.xlu0 %v257, 112
    %v1468 = vpop.permute.xlu0 %1467
    %1469 = vrot.lane.b32.xlu0 %v263, 112
    %v1470 = vpop.permute.xlu0 %1469
    %1471 = vrot.lane.b32.xlu0 %v267, 112
    %v1472 = vpop.permute.xlu0 %1471
    %1477 = vrot.lane.b32.xlu0 %v253, 96
    %v1478 = vpop.permute.xlu0 %1477
    %1479 = vrot.lane.b32.xlu0 %v257, 96
    %v1480 = vpop.permute.xlu0 %1479
    %1481 = vrot.lane.b32.xlu0 %v263, 96
    %v1482 = vpop.permute.xlu0 %1481
    %1483 = vrot.lane.b32.xlu0 %v267, 96
    %v1484 = vpop.permute.xlu0 %1483
    %1489 = vrot.lane.b32.xlu0 %v253, 80
    %v1490 = vpop.permute.xlu0 %1489
    %1491 = vrot.lane.b32.xlu0 %v257, 80
    %v1492 = vpop.permute.xlu0 %1491
    %1493 = vrot.lane.b32.xlu0 %v263, 80
    %v1494 = vpop.permute.xlu0 %1493
    %1495 = vrot.lane.b32.xlu0 %v267, 80
    %v1496 = vpop.permute.xlu0 %1495
    %v1501 = vcombine.low %v253, %v1478
    %v1502 = vcombine.high %v253, %v1478
    %v1504 = vunpack.c.l.s4 1983009808
    %v1505 = vunpack.c.0.s8 %v1504
    %v1506 = vlaneseq
    %v1507 = vshrl.u32 %v1506, 7
    %v1508 = vsub.s32 %v1505, %v1507
    %v1509 = vrot.slane %v1501, %v1508
    %v1511 = vunpack.c.l.s4 1983009808
    %v1512 = vunpack.c.0.s8 %v1511
    %v1513 = vlaneseq
    %v1514 = vshrl.u32 %v1513, 7
    %v1515 = vsub.s32 %v1512, %v1514
    %v1516 = vrot.slane %v1502, %v1515
    %v1517 = vcombine.low %v1466, %v1490
    %v1518 = vcombine.high %v1466, %v1490
    %v1520 = vunpack.c.l.s4 1983009808
    %v1521 = vunpack.c.0.s8 %v1520
    %v1522 = vlaneseq
    %v1523 = vshrl.u32 %v1522, 7
    %v1524 = vsub.s32 %v1521, %v1523
    %v1525 = vrot.slane %v1517, %v1524
    %v1527 = vunpack.c.l.s4 1983009808
    %v1528 = vunpack.c.0.s8 %v1527
    %v1529 = vlaneseq
    %v1530 = vshrl.u32 %v1529, 7
    %v1531 = vsub.s32 %v1528, %v1530
    %v1532 = vrot.slane %v1518, %v1531
    %v1533 = vcombine.low %v1509, %v1525
    %v1534 = vcombine.high %v1509, %v1525
    %v1536 = vunpack.c.l.s4 1934713408
    %v1537 = vunpack.c.0.s8 %v1536
    %v1538 = vlaneseq
    %v1539 = vshrl.u32 %v1538, 7
    %v1540 = vsub.s32 %v1537, %v1539
    %v1541 = vrot.slane %v1533, %v1540
    %v1543 = vunpack.c.l.s4 1934713408
    %v1544 = vunpack.c.0.s8 %v1543
    %v1545 = vlaneseq
    %v1546 = vshrl.u32 %v1545, 7
    %v1547 = vsub.s32 %v1544, %v1546
    %v1548 = vrot.slane %v1534, %v1547
    %v1549 = vcombine.low %v1516, %v1532
    %v1550 = vcombine.high %v1516, %v1532
    %v1552 = vunpack.c.l.s4 1934713408
    %v1553 = vunpack.c.0.s8 %v1552
    %v1554 = vlaneseq
    %v1555 = vshrl.u32 %v1554, 7
    %v1556 = vsub.s32 %v1553, %v1555
    %v1557 = vrot.slane %v1549, %v1556
    %v1559 = vunpack.c.l.s4 1934713408
    %v1560 = vunpack.c.0.s8 %v1559
    %v1561 = vlaneseq
    %v1562 = vshrl.u32 %v1561, 7
    %v1563 = vsub.s32 %v1560, %v1562
    %v1564 = vrot.slane %v1550, %v1563
    %v1565 = vcombine.high %v1541, 0.0
    %v1566 = vcombine.high %v1548, 0.0
    %v1567 = vcombine.high %v1557, 0.0
    %v1568 = vcombine.high %v1564, 0.0
    %v1569 = vcombine.low %v257, %v1480
    %v1570 = vcombine.high %v257, %v1480
    %v1572 = vunpack.c.l.s4 1983009808
    %v1573 = vunpack.c.0.s8 %v1572
    %v1574 = vlaneseq
    %v1575 = vshrl.u32 %v1574, 7
    %v1576 = vsub.s32 %v1573, %v1575
    %v1577 = vrot.slane %v1569, %v1576
    %v1579 = vunpack.c.l.s4 1983009808
    %v1580 = vunpack.c.0.s8 %v1579
    %v1581 = vlaneseq
    %v1582 = vshrl.u32 %v1581, 7
    %v1583 = vsub.s32 %v1580, %v1582
    %v1584 = vrot.slane %v1570, %v1583
    %v1585 = vcombine.low %v1468, %v1492
    %v1586 = vcombine.high %v1468, %v1492
    %v1588 = vunpack.c.l.s4 1983009808
    %v1589 = vunpack.c.0.s8 %v1588
    %v1590 = vlaneseq
    %v1591 = vshrl.u32 %v1590, 7
    %v1592 = vsub.s32 %v1589, %v1591
    %v1593 = vrot.slane %v1585, %v1592
    %v1595 = vunpack.c.l.s4 1983009808
    %v1596 = vunpack.c.0.s8 %v1595
    %v1597 = vlaneseq
    %v1598 = vshrl.u32 %v1597, 7
    %v1599 = vsub.s32 %v1596, %v1598
    %v1600 = vrot.slane %v1586, %v1599
    %v1601 = vcombine.low %v1577, %v1593
    %v1602 = vcombine.high %v1577, %v1593
    %v1604 = vunpack.c.l.s4 1934713408
    %v1605 = vunpack.c.0.s8 %v1604
    %v1606 = vlaneseq
    %v1607 = vshrl.u32 %v1606, 7
    %v1608 = vsub.s32 %v1605, %v1607
    %v1609 = vrot.slane %v1601, %v1608
    %v1611 = vunpack.c.l.s4 1934713408
    %v1612 = vunpack.c.0.s8 %v1611
    %v1613 = vlaneseq
    %v1614 = vshrl.u32 %v1613, 7
    %v1615 = vsub.s32 %v1612, %v1614
    %v1616 = vrot.slane %v1602, %v1615
    %v1617 = vcombine.low %v1584, %v1600
    %v1618 = vcombine.high %v1584, %v1600
    %v1620 = vunpack.c.l.s4 1934713408
    %v1621 = vunpack.c.0.s8 %v1620
    %v1622 = vlaneseq
    %v1623 = vshrl.u32 %v1622, 7
    %v1624 = vsub.s32 %v1621, %v1623
    %v1625 = vrot.slane %v1617, %v1624
    %v1627 = vunpack.c.l.s4 1934713408
    %v1628 = vunpack.c.0.s8 %v1627
    %v1629 = vlaneseq
    %v1630 = vshrl.u32 %v1629, 7
    %v1631 = vsub.s32 %v1628, %v1630
    %v1632 = vrot.slane %v1618, %v1631
    %v1633 = vcombine.high %v1609, 0.0
    %v1634 = vcombine.high %v1616, 0.0
    %v1635 = vcombine.high %v1625, 0.0
    %v1636 = vcombine.high %v1632, 0.0
    %v1637 = vcombine.low %v263, %v1482
    %v1638 = vcombine.high %v263, %v1482
    %v1640 = vunpack.c.l.s4 1983009808
    %v1641 = vunpack.c.0.s8 %v1640
    %v1642 = vlaneseq
    %v1643 = vshrl.u32 %v1642, 7
    %v1644 = vsub.s32 %v1641, %v1643
    %v1645 = vrot.slane %v1637, %v1644
    %v1647 = vunpack.c.l.s4 1983009808
    %v1648 = vunpack.c.0.s8 %v1647
    %v1649 = vlaneseq
    %v1650 = vshrl.u32 %v1649, 7
    %v1651 = vsub.s32 %v1648, %v1650
    %v1652 = vrot.slane %v1638, %v1651
    %v1653 = vcombine.low %v1470, %v1494
    %v1654 = vcombine.high %v1470, %v1494
    %v1656 = vunpack.c.l.s4 1983009808
    %v1657 = vunpack.c.0.s8 %v1656
    %v1658 = vlaneseq
    %v1659 = vshrl.u32 %v1658, 7
    %v1660 = vsub.s32 %v1657, %v1659
    %v1661 = vrot.slane %v1653, %v1660
    %v1663 = vunpack.c.l.s4 1983009808
    %v1664 = vunpack.c.0.s8 %v1663
    %v1665 = vlaneseq
    %v1666 = vshrl.u32 %v1665, 7
    %v1667 = vsub.s32 %v1664, %v1666
    %v1668 = vrot.slane %v1654, %v1667
    %v1669 = vcombine.low %v1645, %v1661
    %v1670 = vcombine.high %v1645, %v1661
    %v1672 = vunpack.c.l.s4 1934713408
    %v1673 = vunpack.c.0.s8 %v1672
    %v1674 = vlaneseq
    %v1675 = vshrl.u32 %v1674, 7
    %v1676 = vsub.s32 %v1673, %v1675
    %v1677 = vrot.slane %v1669, %v1676
    %v1679 = vunpack.c.l.s4 1934713408
    %v1680 = vunpack.c.0.s8 %v1679
    %v1681 = vlaneseq
    %v1682 = vshrl.u32 %v1681, 7
    %v1683 = vsub.s32 %v1680, %v1682
    %v1684 = vrot.slane %v1670, %v1683
    %v1685 = vcombine.low %v1652, %v1668
    %v1686 = vcombine.high %v1652, %v1668
    %v1688 = vunpack.c.l.s4 1934713408
    %v1689 = vunpack.c.0.s8 %v1688
    %v1690 = vlaneseq
    %v1691 = vshrl.u32 %v1690, 7
    %v1692 = vsub.s32 %v1689, %v1691
    %v1693 = vrot.slane %v1685, %v1692
    %v1695 = vunpack.c.l.s4 1934713408
    %v1696 = vunpack.c.0.s8 %v1695
    %v1697 = vlaneseq
    %v1698 = vshrl.u32 %v1697, 7
    %v1699 = vsub.s32 %v1696, %v1698
    %v1700 = vrot.slane %v1686, %v1699
    %v1701 = vcombine.high %v1677, 0.0
    %v1702 = vcombine.high %v1684, 0.0
    %v1703 = vcombine.high %v1693, 0.0
    %v1704 = vcombine.high %v1700, 0.0
    %v1705 = vcombine.low %v267, %v1484
    %v1706 = vcombine.high %v267, %v1484
    %v1708 = vunpack.c.l.s4 1983009808
    %v1709 = vunpack.c.0.s8 %v1708
    %v1710 = vlaneseq
    %v1711 = vshrl.u32 %v1710, 7
    %v1712 = vsub.s32 %v1709, %v1711
    %v1713 = vrot.slane %v1705, %v1712
    %v1715 = vunpack.c.l.s4 1983009808
    %v1716 = vunpack.c.0.s8 %v1715
    %v1717 = vlaneseq
    %v1718 = vshrl.u32 %v1717, 7
    %v1719 = vsub.s32 %v1716, %v1718
    %v1720 = vrot.slane %v1706, %v1719
    %v1721 = vcombine.low %v1472, %v1496
    %v1722 = vcombine.high %v1472, %v1496
    %v1724 = vunpack.c.l.s4 1983009808
    %v1725 = vunpack.c.0.s8 %v1724
    %v1726 = vlaneseq
    %v1727 = vshrl.u32 %v1726, 7
    %v1728 = vsub.s32 %v1725, %v1727
    %v1729 = vrot.slane %v1721, %v1728
    %v1731 = vunpack.c.l.s4 1983009808
    %v1732 = vunpack.c.0.s8 %v1731
    %v1733 = vlaneseq
    %v1734 = vshrl.u32 %v1733, 7
    %v1735 = vsub.s32 %v1732, %v1734
    %v1736 = vrot.slane %v1722, %v1735
    %v1737 = vcombine.low %v1713, %v1729
    %v1738 = vcombine.high %v1713, %v1729
    %v1740 = vunpack.c.l.s4 1934713408
    %v1741 = vunpack.c.0.s8 %v1740
    %v1742 = vlaneseq
    %v1743 = vshrl.u32 %v1742, 7
    %v1744 = vsub.s32 %v1741, %v1743
    %v1745 = vrot.slane %v1737, %v1744
    %v1747 = vunpack.c.l.s4 1934713408
    %v1748 = vunpack.c.0.s8 %v1747
    %v1749 = vlaneseq
    %v1750 = vshrl.u32 %v1749, 7
    %v1751 = vsub.s32 %v1748, %v1750
    %v1752 = vrot.slane %v1738, %v1751
    %v1753 = vcombine.low %v1720, %v1736
    %v1754 = vcombine.high %v1720, %v1736
    %v1756 = vunpack.c.l.s4 1934713408
    %v1757 = vunpack.c.0.s8 %v1756
    %v1758 = vlaneseq
    %v1759 = vshrl.u32 %v1758, 7
    %v1760 = vsub.s32 %v1757, %v1759
    %v1761 = vrot.slane %v1753, %v1760
    %v1763 = vunpack.c.l.s4 1934713408
    %v1764 = vunpack.c.0.s8 %v1763
    %v1765 = vlaneseq
    %v1766 = vshrl.u32 %v1765, 7
    %v1767 = vsub.s32 %v1764, %v1766
    %v1768 = vrot.slane %v1754, %v1767
    %v1769 = vcombine.high %v1745, 0.0
    %v1770 = vcombine.high %v1752, 0.0
    %v1771 = vcombine.high %v1761, 0.0
    %v1772 = vcombine.high %v1768, 0.0
    %v1773 = vcombine.low %v1541, %v1548
    %v1775 = vunpack.c.l.s4 1983009808
    %v1776 = vunpack.c.0.s8 %v1775
    %v1777 = vlaneseq
    %v1778 = vshrl.u32 %v1777, 7
    %v1779 = vsub.s32 %v1776, %v1778
    %v1780 = vrot.slane %v1773, %v1779
    %v1781 = vcombine.low %v1565, %v1566
    %v1783 = vunpack.c.l.s4 1983009808
    %v1784 = vunpack.c.0.s8 %v1783
    %v1785 = vlaneseq
    %v1786 = vshrl.u32 %v1785, 7
    %v1787 = vsub.s32 %v1784, %v1786
    %v1788 = vrot.slane %v1781, %v1787
    %v1789 = vcombine.low %v1557, %v1564
    %v1791 = vunpack.c.l.s4 1983009808
    %v1792 = vunpack.c.0.s8 %v1791
    %v1793 = vlaneseq
    %v1794 = vshrl.u32 %v1793, 7
    %v1795 = vsub.s32 %v1792, %v1794
    %v1796 = vrot.slane %v1789, %v1795
    %v1797 = vcombine.low %v1567, %v1568
    %v1799 = vunpack.c.l.s4 1983009808
    %v1800 = vunpack.c.0.s8 %v1799
    %v1801 = vlaneseq
    %v1802 = vshrl.u32 %v1801, 7
    %v1803 = vsub.s32 %v1800, %v1802
    %v1804 = vrot.slane %v1797, %v1803
    %v1805 = vcombine.low %v1780, %v1788
    %v1806 = vcombine.high %v1780, %v1788
    %v1808 = vunpack.c.l.s4 1934713408
    %v1809 = vunpack.c.0.s8 %v1808
    %v1810 = vlaneseq
    %v1811 = vshrl.u32 %v1810, 7
    %v1812 = vsub.s32 %v1809, %v1811
    %v1813 = vrot.slane %v1805, %v1812
    %v1815 = vunpack.c.l.s4 1934713408
    %v1816 = vunpack.c.0.s8 %v1815
    %v1817 = vlaneseq
    %v1818 = vshrl.u32 %v1817, 7
    %v1819 = vsub.s32 %v1816, %v1818
    %v1820 = vrot.slane %v1806, %v1819
    %v1821 = vcombine.low %v1796, %v1804
    %v1822 = vcombine.high %v1796, %v1804
    %v1824 = vunpack.c.l.s4 1934713408
    %v1825 = vunpack.c.0.s8 %v1824
    %v1826 = vlaneseq
    %v1827 = vshrl.u32 %v1826, 7
    %v1828 = vsub.s32 %v1825, %v1827
    %v1829 = vrot.slane %v1821, %v1828
    %v1831 = vunpack.c.l.s4 1934713408
    %v1832 = vunpack.c.0.s8 %v1831
    %v1833 = vlaneseq
    %v1834 = vshrl.u32 %v1833, 7
    %v1835 = vsub.s32 %v1832, %v1834
    %v1836 = vrot.slane %v1822, %v1835
    %v1837 = vcombine.low %v1813, %v1829
    %v1838 = vcombine.high %v1813, %v1829
    %v1839 = vcombine.low %v1820, %v1836
    %v1840 = vcombine.high %v1820, %v1836
    %v1841 = vcombine.low %v1609, %v1616
    %v1843 = vunpack.c.l.s4 1983009808
    %v1844 = vunpack.c.0.s8 %v1843
    %v1845 = vlaneseq
    %v1846 = vshrl.u32 %v1845, 7
    %v1847 = vsub.s32 %v1844, %v1846
    %v1848 = vrot.slane %v1841, %v1847
    %v1849 = vcombine.low %v1633, %v1634
    %v1851 = vunpack.c.l.s4 1983009808
    %v1852 = vunpack.c.0.s8 %v1851
    %v1853 = vlaneseq
    %v1854 = vshrl.u32 %v1853, 7
    %v1855 = vsub.s32 %v1852, %v1854
    %v1856 = vrot.slane %v1849, %v1855
    %v1857 = vcombine.low %v1625, %v1632
    %v1859 = vunpack.c.l.s4 1983009808
    %v1860 = vunpack.c.0.s8 %v1859
    %v1861 = vlaneseq
    %v1862 = vshrl.u32 %v1861, 7
    %v1863 = vsub.s32 %v1860, %v1862
    %v1864 = vrot.slane %v1857, %v1863
    %v1865 = vcombine.low %v1635, %v1636
    %v1867 = vunpack.c.l.s4 1983009808
    %v1868 = vunpack.c.0.s8 %v1867
    %v1869 = vlaneseq
    %v1870 = vshrl.u32 %v1869, 7
    %v1871 = vsub.s32 %v1868, %v1870
    %v1872 = vrot.slane %v1865, %v1871
    %v1873 = vcombine.low %v1848, %v1856
    %v1874 = vcombine.high %v1848, %v1856
    %v1876 = vunpack.c.l.s4 1934713408
    %v1877 = vunpack.c.0.s8 %v1876
    %v1878 = vlaneseq
    %v1879 = vshrl.u32 %v1878, 7
    %v1880 = vsub.s32 %v1877, %v1879
    %v1881 = vrot.slane %v1873, %v1880
    %v1883 = vunpack.c.l.s4 1934713408
    %v1884 = vunpack.c.0.s8 %v1883
    %v1885 = vlaneseq
    %v1886 = vshrl.u32 %v1885, 7
    %v1887 = vsub.s32 %v1884, %v1886
    %v1888 = vrot.slane %v1874, %v1887
    %v1889 = vcombine.low %v1864, %v1872
    %v1890 = vcombine.high %v1864, %v1872
    %v1892 = vunpack.c.l.s4 1934713408
    %v1893 = vunpack.c.0.s8 %v1892
    %v1894 = vlaneseq
    %v1895 = vshrl.u32 %v1894, 7
    %v1896 = vsub.s32 %v1893, %v1895
    %v1897 = vrot.slane %v1889, %v1896
    %v1899 = vunpack.c.l.s4 1934713408
    %v1900 = vunpack.c.0.s8 %v1899
    %v1901 = vlaneseq
    %v1902 = vshrl.u32 %v1901, 7
    %v1903 = vsub.s32 %v1900, %v1902
    %v1904 = vrot.slane %v1890, %v1903
    %v1905 = vcombine.low %v1881, %v1897
    %v1906 = vcombine.high %v1881, %v1897
    %v1907 = vcombine.low %v1888, %v1904
    %v1908 = vcombine.high %v1888, %v1904
    %v1909 = vcombine.low %v1677, %v1684
    %v1911 = vunpack.c.l.s4 1983009808
    %v1912 = vunpack.c.0.s8 %v1911
    %v1913 = vlaneseq
    %v1914 = vshrl.u32 %v1913, 7
    %v1915 = vsub.s32 %v1912, %v1914
    %v1916 = vrot.slane %v1909, %v1915
    %v1917 = vcombine.low %v1701, %v1702
    %v1919 = vunpack.c.l.s4 1983009808
    %v1920 = vunpack.c.0.s8 %v1919
    %v1921 = vlaneseq
    %v1922 = vshrl.u32 %v1921, 7
    %v1923 = vsub.s32 %v1920, %v1922
    %v1924 = vrot.slane %v1917, %v1923
    %v1925 = vcombine.low %v1693, %v1700
    %v1927 = vunpack.c.l.s4 1983009808
    %v1928 = vunpack.c.0.s8 %v1927
    %v1929 = vlaneseq
    %v1930 = vshrl.u32 %v1929, 7
    %v1931 = vsub.s32 %v1928, %v1930
    %v1932 = vrot.slane %v1925, %v1931
    %v1933 = vcombine.low %v1703, %v1704
    %v1935 = vunpack.c.l.s4 1983009808
    %v1936 = vunpack.c.0.s8 %v1935
    %v1937 = vlaneseq
    %v1938 = vshrl.u32 %v1937, 7
    %v1939 = vsub.s32 %v1936, %v1938
    %v1940 = vrot.slane %v1933, %v1939
    %v1941 = vcombine.low %v1916, %v1924
    %v1942 = vcombine.high %v1916, %v1924
    %v1944 = vunpack.c.l.s4 1934713408
    %v1945 = vunpack.c.0.s8 %v1944
    %v1946 = vlaneseq
    %v1947 = vshrl.u32 %v1946, 7
    %v1948 = vsub.s32 %v1945, %v1947
    %v1949 = vrot.slane %v1941, %v1948
    %v1951 = vunpack.c.l.s4 1934713408
    %v1952 = vunpack.c.0.s8 %v1951
    %v1953 = vlaneseq
    %v1954 = vshrl.u32 %v1953, 7
    %v1955 = vsub.s32 %v1952, %v1954
    %v1956 = vrot.slane %v1942, %v1955
    %v1957 = vcombine.low %v1932, %v1940
    %v1958 = vcombine.high %v1932, %v1940
    %v1960 = vunpack.c.l.s4 1934713408
    %v1961 = vunpack.c.0.s8 %v1960
    %v1962 = vlaneseq
    %v1963 = vshrl.u32 %v1962, 7
    %v1964 = vsub.s32 %v1961, %v1963
    %v1965 = vrot.slane %v1957, %v1964
    %v1967 = vunpack.c.l.s4 1934713408
    %v1968 = vunpack.c.0.s8 %v1967
    %v1969 = vlaneseq
    %v1970 = vshrl.u32 %v1969, 7
    %v1971 = vsub.s32 %v1968, %v1970
    %v1972 = vrot.slane %v1958, %v1971
    %v1973 = vcombine.low %v1949, %v1965
    %v1974 = vcombine.high %v1949, %v1965
    %v1975 = vcombine.low %v1956, %v1972
    %v1976 = vcombine.high %v1956, %v1972
    %v1977 = vcombine.low %v1745, %v1752
    %v1979 = vunpack.c.l.s4 1983009808
    %v1980 = vunpack.c.0.s8 %v1979
    %v1981 = vlaneseq
    %v1982 = vshrl.u32 %v1981, 7
    %v1983 = vsub.s32 %v1980, %v1982
    %v1984 = vrot.slane %v1977, %v1983
    %v1985 = vcombine.low %v1769, %v1770
    %v1987 = vunpack.c.l.s4 1983009808
    %v1988 = vunpack.c.0.s8 %v1987
    %v1989 = vlaneseq
    %v1990 = vshrl.u32 %v1989, 7
    %v1991 = vsub.s32 %v1988, %v1990
    %v1992 = vrot.slane %v1985, %v1991
    %v1993 = vcombine.low %v1761, %v1768
    %v1995 = vunpack.c.l.s4 1983009808
    %v1996 = vunpack.c.0.s8 %v1995
    %v1997 = vlaneseq
    %v1998 = vshrl.u32 %v1997, 7
    %v1999 = vsub.s32 %v1996, %v1998
    %v2000 = vrot.slane %v1993, %v1999
    %v2001 = vcombine.low %v1771, %v1772
    %v2003 = vunpack.c.l.s4 1983009808
    %v2004 = vunpack.c.0.s8 %v2003
    %v2005 = vlaneseq
    %v2006 = vshrl.u32 %v2005, 7
    %v2007 = vsub.s32 %v2004, %v2006
    %v2008 = vrot.slane %v2001, %v2007
    %v2009 = vcombine.low %v1984, %v1992
    %v2010 = vcombine.high %v1984, %v1992
    %v2012 = vunpack.c.l.s4 1934713408
    %v2013 = vunpack.c.0.s8 %v2012
    %v2014 = vlaneseq
    %v2015 = vshrl.u32 %v2014, 7
    %v2016 = vsub.s32 %v2013, %v2015
    %v2017 = vrot.slane %v2009, %v2016
    %v2019 = vunpack.c.l.s4 1934713408
    %v2020 = vunpack.c.0.s8 %v2019
    %v2021 = vlaneseq
    %v2022 = vshrl.u32 %v2021, 7
    %v2023 = vsub.s32 %v2020, %v2022
    %v2024 = vrot.slane %v2010, %v2023
    %v2025 = vcombine.low %v2000, %v2008
    %v2026 = vcombine.high %v2000, %v2008
    %v2028 = vunpack.c.l.s4 1934713408
    %v2029 = vunpack.c.0.s8 %v2028
    %v2030 = vlaneseq
    %v2031 = vshrl.u32 %v2030, 7
    %v2032 = vsub.s32 %v2029, %v2031
    %v2033 = vrot.slane %v2025, %v2032
    %v2035 = vunpack.c.l.s4 1934713408
    %v2036 = vunpack.c.0.s8 %v2035
    %v2037 = vlaneseq
    %v2038 = vshrl.u32 %v2037, 7
    %v2039 = vsub.s32 %v2036, %v2038
    %v2040 = vrot.slane %v2026, %v2039
    %v2041 = vcombine.low %v2017, %v2033
    %v2042 = vcombine.high %v2017, %v2033
    %v2043 = vcombine.low %v2024, %v2040
    %v2044 = vcombine.high %v2024, %v2040
    %v2045 = vlaneseq
    %v2046 = vshrl.u32 %v2045, 7
    %v2047 = vlaneseq
    %v2048 = vand.u32 %v2047, 127
    %vm2049 = vcmp.le.s32.totalorder %v2048, %v2046
    %v2050 = vpack.c.bf16 %v853, %v853
    %v2051 = vpack.c.bf16 %v854, %v854
    %v2052 = vpack.c.bf16 %v855, %v855
    %v2053 = vpack.c.bf16 %v856, %v856
    %v2054 = vpack.c.bf16 %v857, %v857
    %v2055 = vpack.c.bf16 %v858, %v858
    %v2056 = vpack.c.bf16 %v859, %v859
    %v2057 = vpack.c.bf16 %v860, %v860
    %v2058 = vpack.c.bf16 %v861, %v861
    %v2059 = vpack.c.bf16 %v862, %v862
    %v2060 = vpack.c.bf16 %v863, %v863
    %v2061 = vpack.c.bf16 %v864, %v864
    %v2062 = vpack.c.bf16 %v865, %v865
    %v2063 = vpack.c.bf16 %v866, %v866
    %v2064 = vpack.c.bf16 %v867, %v867
    %v2065 = vpack.c.bf16 %v868, %v868
    %v2066 = vpack.c.bf16 %v1253, %v1253
    %v2067 = vpack.c.bf16 %v1254, %v1254
    %v2068 = vpack.c.bf16 %v1255, %v1255
    %v2069 = vpack.c.bf16 %v1256, %v1256
    %v2070 = vpack.c.bf16 %v1321, %v1321
    %v2071 = vpack.c.bf16 %v1322, %v1322
    %v2072 = vpack.c.bf16 %v1323, %v1323
    %v2073 = vpack.c.bf16 %v1324, %v1324
    %v2074 = vpack.c.bf16 %v1389, %v1389
    %v2075 = vpack.c.bf16 %v1390, %v1390
    %v2076 = vpack.c.bf16 %v1391, %v1391
    %v2077 = vpack.c.bf16 %v1392, %v1392
    %v2078 = vpack.c.bf16 %v1457, %v1457
    %v2079 = vpack.c.bf16 %v1458, %v1458
    %v2080 = vpack.c.bf16 %v1459, %v1459
    %v2081 = vpack.c.bf16 %v1460, %v1460
    %vm2082 = vcmask 130048
    %v2084 = vsel %vm2082, %v2050, 0
    %v2087 = vsel %vm2082, %v2066, 0
    %2089 = vmatprep.subr.bf16.mxu0 0
    %2090 = vmatpush1.bf16.xpose.msra.mxu0 %v2087
    %2091 = vmatprep.subr.bf16.mxu0 0
    %2092 = vmatpush1.bf16.xpose.msra.mxu0 0
    %2093 = vmatprep.subr.bf16.mxu0 0
    %2094 = vmatpush1.bf16.xpose.msra.mxu0 0
    %2095 = vmatprep.subr.bf16.mxu0 0
    %2096 = vmatpush1.bf16.xpose.msra.mxu0 0
    %2097 = vmatprep.subr.bf16.mxu0 0
    %2098 = vmatpush1.bf16.xpose.msra.mxu0 0
    %2099 = vmatprep.subr.bf16.mxu0 0
    %2100 = vmatpush1.bf16.xpose.msra.mxu0 0
    %2101 = vmatprep.subr.bf16.mxu0 0
    %2102 = vmatpush1.bf16.xpose.msra.mxu0 0
    %2103 = vmatprep.subr.bf16.mxu0 0
    %2104 = vmatpush1.bf16.xpose.msra.mxu0 0
    %2105 = vmatprep.subr.bf16.mxu0 0
    %2106 = vmatpush1.bf16.xpose.msra.mxu0 0
    %2107 = vmatprep.subr.bf16.mxu0 0
    %2108 = vmatpush1.bf16.xpose.msra.mxu0 0
    %2109 = vmatprep.subr.bf16.mxu0 0
    %2110 = vmatpush1.bf16.xpose.msra.mxu0 0
    %2111 = vmatprep.subr.bf16.mxu0 0
    %2112 = vmatpush1.bf16.xpose.msra.mxu0 0
    %2113 = vmatprep.subr.bf16.mxu0 0
    %2114 = vmatpush1.bf16.xpose.msra.mxu0 0
    %2115 = vmatprep.subr.bf16.mxu0 0
    %2116 = vmatpush1.bf16.xpose.msra.mxu0 0
    %2117 = vmatprep.subr.bf16.mxu0 0
    %2118 = vmatpush1.bf16.xpose.msra.mxu0 0
    %2119 = vmatprep.subr.bf16.mxu0 0
    %2120 = vmatpush1.bf16.xpose.msra.mxu0 0
    %2121 = vmatprep.mubr.bf16.mxu0 0
    %2122 = vmatmul.mubr.bf16.gmra.mrb[0].mxu0 %v2084
    %v2123 = vpop.f32.mrb[0].mxu0
    %v2124 = vadd.f32 0.0, %v2123
    %v2125 = vpop.f32.mrb[0].mxu0
    %v2126 = vpop.f32.mrb[0].mxu0
    %v2127 = vpop.f32.mrb[0].mxu0
    %2128 = vdwg.mxu0
    %v2130 = vsel %vm2082, %v2051, 0
    %v2133 = vsel %vm2082, %v2067, 0
    %2135 = vmatprep.subr.bf16.mxu0 0
    %2136 = vmatpush1.bf16.xpose.msra.mxu0 %v2133
    %2137 = vmatprep.subr.bf16.mxu0 0
    %2138 = vmatpush1.bf16.xpose.msra.mxu0 0
    %2139 = vmatprep.subr.bf16.mxu0 0
    %2140 = vmatpush1.bf16.xpose.msra.mxu0 0
    %2141 = vmatprep.subr.bf16.mxu0 0
    %2142 = vmatpush1.bf16.xpose.msra.mxu0 0
    %2143 = vmatprep.subr.bf16.mxu0 0
    %2144 = vmatpush1.bf16.xpose.msra.mxu0 0
    %2145 = vmatprep.subr.bf16.mxu0 0
    %2146 = vmatpush1.bf16.xpose.msra.mxu0 0
    %2147 = vmatprep.subr.bf16.mxu0 0
    %2148 = vmatpush1.bf16.xpose.msra.mxu0 0
    %2149 = vmatprep.subr.bf16.mxu0 0
    %2150 = vmatpush1.bf16.xpose.msra.mxu0 0
    %2151 = vmatprep.subr.bf16.mxu0 0
    %2152 = vmatpush1.bf16.xpose.msra.mxu0 0
    %2153 = vmatprep.subr.bf16.mxu0 0
    %2154 = vmatpush1.bf16.xpose.msra.mxu0 0
    %2155 = vmatprep.subr.bf16.mxu0 0
    %2156 = vmatpush1.bf16.xpose.msra.mxu0 0
    %2157 = vmatprep.subr.bf16.mxu0 0
    %2158 = vmatpush1.bf16.xpose.msra.mxu0 0
    %2159 = vmatprep.subr.bf16.mxu0 0
    %2160 = vmatpush1.bf16.xpose.msra.mxu0 0
    %2161 = vmatprep.subr.bf16.mxu0 0
    %2162 = vmatpush1.bf16.xpose.msra.mxu0 0
    %2163 = vmatprep.subr.bf16.mxu0 0
    %2164 = vmatpush1.bf16.xpose.msra.mxu0 0
    %2165 = vmatprep.subr.bf16.mxu0 0
    %2166 = vmatpush1.bf16.xpose.msra.mxu0 0
    %2167 = vmatprep.mubr.bf16.mxu0 0
    %2168 = vmatmul.mubr.bf16.gmra.mrb[0].mxu0 %v2130
    %v2169 = vpop.f32.mrb[0].mxu0
    %v2170 = vadd.f32 0.0, %v2169
    %v2171 = vpop.f32.mrb[0].mxu0
    %v2172 = vpop.f32.mrb[0].mxu0
    %v2173 = vpop.f32.mrb[0].mxu0
    %2174 = vdwg.mxu0
    %v2176 = vsel %vm2082, %v2052, 0
    %v2179 = vsel %vm2082, %v2068, 0
    %2181 = vmatprep.subr.bf16.mxu0 0
    %2182 = vmatpush1.bf16.xpose.msra.mxu0 %v2179
    %2183 = vmatprep.subr.bf16.mxu0 0
    %2184 = vmatpush1.bf16.xpose.msra.mxu0 0
    %2185 = vmatprep.subr.bf16.mxu0 0
    %2186 = vmatpush1.bf16.xpose.msra.mxu0 0
    %2187 = vmatprep.subr.bf16.mxu0 0
    %2188 = vmatpush1.bf16.xpose.msra.mxu0 0
    %2189 = vmatprep.subr.bf16.mxu0 0
    %2190 = vmatpush1.bf16.xpose.msra.mxu0 0
    %2191 = vmatprep.subr.bf16.mxu0 0
    %2192 = vmatpush1.bf16.xpose.msra.mxu0 0
    %2193 = vmatprep.subr.bf16.mxu0 0
    %2194 = vmatpush1.bf16.xpose.msra.mxu0 0
    %2195 = vmatprep.subr.bf16.mxu0 0
    %2196 = vmatpush1.bf16.xpose.msra.mxu0 0
    %2197 = vmatprep.subr.bf16.mxu0 0
    %2198 = vmatpush1.bf16.xpose.msra.mxu0 0
    %2199 = vmatprep.subr.bf16.mxu0 0
    %2200 = vmatpush1.bf16.xpose.msra.mxu0 0
    %2201 = vmatprep.subr.bf16.mxu0 0
    %2202 = vmatpush1.bf16.xpose.msra.mxu0 0
    %2203 = vmatprep.subr.bf16.mxu0 0
    %2204 = vmatpush1.bf16.xpose.msra.mxu0 0
    %2205 = vmatprep.subr.bf16.mxu0 0
    %2206 = vmatpush1.bf16.xpose.msra.mxu0 0
    %2207 = vmatprep.subr.bf16.mxu0 0
    %2208 = vmatpush1.bf16.xpose.msra.mxu0 0
    %2209 = vmatprep.subr.bf16.mxu0 0
    %2210 = vmatpush1.bf16.xpose.msra.mxu0 0
    %2211 = vmatprep.subr.bf16.mxu0 0
    %2212 = vmatpush1.bf16.xpose.msra.mxu0 0
    %2213 = vmatprep.mubr.bf16.mxu0 0
    %2214 = vmatmul.mubr.bf16.gmra.mrb[0].mxu0 %v2176
    %v2215 = vpop.f32.mrb[0].mxu0
    %v2216 = vadd.f32 0.0, %v2215
    %v2217 = vpop.f32.mrb[0].mxu0
    %v2218 = vpop.f32.mrb[0].mxu0
    %v2219 = vpop.f32.mrb[0].mxu0
    %2220 = vdwg.mxu0
    %v2222 = vsel %vm2082, %v2053, 0
    %v2225 = vsel %vm2082, %v2069, 0
    %2227 = vmatprep.subr.bf16.mxu0 0
    %2228 = vmatpush1.bf16.xpose.msra.mxu0 %v2225
    %2229 = vmatprep.subr.bf16.mxu0 0
    %2230 = vmatpush1.bf16.xpose.msra.mxu0 0
    %2231 = vmatprep.subr.bf16.mxu0 0
    %2232 = vmatpush1.bf16.xpose.msra.mxu0 0
    %2233 = vmatprep.subr.bf16.mxu0 0
    %2234 = vmatpush1.bf16.xpose.msra.mxu0 0
    %2235 = vmatprep.subr.bf16.mxu0 0
    %2236 = vmatpush1.bf16.xpose.msra.mxu0 0
    %2237 = vmatprep.subr.bf16.mxu0 0
    %2238 = vmatpush1.bf16.xpose.msra.mxu0 0
    %2239 = vmatprep.subr.bf16.mxu0 0
    %2240 = vmatpush1.bf16.xpose.msra.mxu0 0
    %2241 = vmatprep.subr.bf16.mxu0 0
    %2242 = vmatpush1.bf16.xpose.msra.mxu0 0
    %2243 = vmatprep.subr.bf16.mxu0 0
    %2244 = vmatpush1.bf16.xpose.msra.mxu0 0
    %2245 = vmatprep.subr.bf16.mxu0 0
    %2246 = vmatpush1.bf16.xpose.msra.mxu0 0
    %2247 = vmatprep.subr.bf16.mxu0 0
    %2248 = vmatpush1.bf16.xpose.msra.mxu0 0
    %2249 = vmatprep.subr.bf16.mxu0 0
    %2250 = vmatpush1.bf16.xpose.msra.mxu0 0
    %2251 = vmatprep.subr.bf16.mxu0 0
    %2252 = vmatpush1.bf16.xpose.msra.mxu0 0
    %2253 = vmatprep.subr.bf16.mxu0 0
    %2254 = vmatpush1.bf16.xpose.msra.mxu0 0
    %2255 = vmatprep.subr.bf16.mxu0 0
    %2256 = vmatpush1.bf16.xpose.msra.mxu0 0
    %2257 = vmatprep.subr.bf16.mxu0 0
    %2258 = vmatpush1.bf16.xpose.msra.mxu0 0
    %2259 = vmatprep.mubr.bf16.mxu0 0
    %2260 = vmatmul.mubr.bf16.gmra.mrb[0].mxu0 %v2222
    %v2261 = vpop.f32.mrb[0].mxu0
    %v2262 = vadd.f32 0.0, %v2261
    %v2263 = vpop.f32.mrb[0].mxu0
    %v2264 = vpop.f32.mrb[0].mxu0
    %v2265 = vpop.f32.mrb[0].mxu0
    %2266 = vdwg.mxu0
    %v2268 = vsel %vm2082, %v2054, 0
    %v2271 = vsel %vm2082, %v2070, 0
    %2273 = vmatprep.subr.bf16.mxu0 0
    %2274 = vmatpush1.bf16.xpose.msra.mxu0 %v2271
    %2275 = vmatprep.subr.bf16.mxu0 0
    %2276 = vmatpush1.bf16.xpose.msra.mxu0 0
    %2277 = vmatprep.subr.bf16.mxu0 0
    %2278 = vmatpush1.bf16.xpose.msra.mxu0 0
    %2279 = vmatprep.subr.bf16.mxu0 0
    %2280 = vmatpush1.bf16.xpose.msra.mxu0 0
    %2281 = vmatprep.subr.bf16.mxu0 0
    %2282 = vmatpush1.bf16.xpose.msra.mxu0 0
    %2283 = vmatprep.subr.bf16.mxu0 0
    %2284 = vmatpush1.bf16.xpose.msra.mxu0 0
    %2285 = vmatprep.subr.bf16.mxu0 0
    %2286 = vmatpush1.bf16.xpose.msra.mxu0 0
    %2287 = vmatprep.subr.bf16.mxu0 0
    %2288 = vmatpush1.bf16.xpose.msra.mxu0 0
    %2289 = vmatprep.subr.bf16.mxu0 0
    %2290 = vmatpush1.bf16.xpose.msra.mxu0 0
    %2291 = vmatprep.subr.bf16.mxu0 0
    %2292 = vmatpush1.bf16.xpose.msra.mxu0 0
    %2293 = vmatprep.subr.bf16.mxu0 0
    %2294 = vmatpush1.bf16.xpose.msra.mxu0 0
    %2295 = vmatprep.subr.bf16.mxu0 0
    %2296 = vmatpush1.bf16.xpose.msra.mxu0 0
    %2297 = vmatprep.subr.bf16.mxu0 0
    %2298 = vmatpush1.bf16.xpose.msra.mxu0 0
    %2299 = vmatprep.subr.bf16.mxu0 0
    %2300 = vmatpush1.bf16.xpose.msra.mxu0 0
    %2301 = vmatprep.subr.bf16.mxu0 0
    %2302 = vmatpush1.bf16.xpose.msra.mxu0 0
    %2303 = vmatprep.subr.bf16.mxu0 0
    %2304 = vmatpush1.bf16.xpose.msra.mxu0 0
    %2305 = vmatprep.mubr.bf16.mxu0 0
    %2306 = vmatmul.mubr.bf16.gmra.mrb[0].mxu0 %v2268
    %v2307 = vpop.f32.mrb[0].mxu0
    %v2308 = vadd.f32 0.0, %v2307
    %v2309 = vpop.f32.mrb[0].mxu0
    %v2310 = vpop.f32.mrb[0].mxu0
    %v2311 = vpop.f32.mrb[0].mxu0
    %2312 = vdwg.mxu0
    %v2314 = vsel %vm2082, %v2055, 0
    %v2317 = vsel %vm2082, %v2071, 0
    %2319 = vmatprep.subr.bf16.mxu0 0
    %2320 = vmatpush1.bf16.xpose.msra.mxu0 %v2317
    %2321 = vmatprep.subr.bf16.mxu0 0
    %2322 = vmatpush1.bf16.xpose.msra.mxu0 0
    %2323 = vmatprep.subr.bf16.mxu0 0
    %2324 = vmatpush1.bf16.xpose.msra.mxu0 0
    %2325 = vmatprep.subr.bf16.mxu0 0
    %2326 = vmatpush1.bf16.xpose.msra.mxu0 0
    %2327 = vmatprep.subr.bf16.mxu0 0
    %2328 = vmatpush1.bf16.xpose.msra.mxu0 0
    %2329 = vmatprep.subr.bf16.mxu0 0
    %2330 = vmatpush1.bf16.xpose.msra.mxu0 0
    %2331 = vmatprep.subr.bf16.mxu0 0
    %2332 = vmatpush1.bf16.xpose.msra.mxu0 0
    %2333 = vmatprep.subr.bf16.mxu0 0
    %2334 = vmatpush1.bf16.xpose.msra.mxu0 0
    %2335 = vmatprep.subr.bf16.mxu0 0
    %2336 = vmatpush1.bf16.xpose.msra.mxu0 0
    %2337 = vmatprep.subr.bf16.mxu0 0
    %2338 = vmatpush1.bf16.xpose.msra.mxu0 0
    %2339 = vmatprep.subr.bf16.mxu0 0
    %2340 = vmatpush1.bf16.xpose.msra.mxu0 0
    %2341 = vmatprep.subr.bf16.mxu0 0
    %2342 = vmatpush1.bf16.xpose.msra.mxu0 0
    %2343 = vmatprep.subr.bf16.mxu0 0
    %2344 = vmatpush1.bf16.xpose.msra.mxu0 0
    %2345 = vmatprep.subr.bf16.mxu0 0
    %2346 = vmatpush1.bf16.xpose.msra.mxu0 0
    %2347 = vmatprep.subr.bf16.mxu0 0
    %2348 = vmatpush1.bf16.xpose.msra.mxu0 0
    %2349 = vmatprep.subr.bf16.mxu0 0
    %2350 = vmatpush1.bf16.xpose.msra.mxu0 0
    %2351 = vmatprep.mubr.bf16.mxu0 0
    %2352 = vmatmul.mubr.bf16.gmra.mrb[0].mxu0 %v2314
    %v2353 = vpop.f32.mrb[0].mxu0
    %v2354 = vadd.f32 0.0, %v2353
    %v2355 = vpop.f32.mrb[0].mxu0
    %v2356 = vpop.f32.mrb[0].mxu0
    %v2357 = vpop.f32.mrb[0].mxu0
    %2358 = vdwg.mxu0
    %v2360 = vsel %vm2082, %v2056, 0
    %v2363 = vsel %vm2082, %v2072, 0
    %2365 = vmatprep.subr.bf16.mxu0 0
    %2366 = vmatpush1.bf16.xpose.msra.mxu0 %v2363
    %2367 = vmatprep.subr.bf16.mxu0 0
    %2368 = vmatpush1.bf16.xpose.msra.mxu0 0
    %2369 = vmatprep.subr.bf16.mxu0 0
    %2370 = vmatpush1.bf16.xpose.msra.mxu0 0
    %2371 = vmatprep.subr.bf16.mxu0 0
    %2372 = vmatpush1.bf16.xpose.msra.mxu0 0
    %2373 = vmatprep.subr.bf16.mxu0 0
    %2374 = vmatpush1.bf16.xpose.msra.mxu0 0
    %2375 = vmatprep.subr.bf16.mxu0 0
    %2376 = vmatpush1.bf16.xpose.msra.mxu0 0
    %2377 = vmatprep.subr.bf16.mxu0 0
    %2378 = vmatpush1.bf16.xpose.msra.mxu0 0
    %2379 = vmatprep.subr.bf16.mxu0 0
    %2380 = vmatpush1.bf16.xpose.msra.mxu0 0
    %2381 = vmatprep.subr.bf16.mxu0 0
    %2382 = vmatpush1.bf16.xpose.msra.mxu0 0
    %2383 = vmatprep.subr.bf16.mxu0 0
    %2384 = vmatpush1.bf16.xpose.msra.mxu0 0
    %2385 = vmatprep.subr.bf16.mxu0 0
    %2386 = vmatpush1.bf16.xpose.msra.mxu0 0
    %2387 = vmatprep.subr.bf16.mxu0 0
    %2388 = vmatpush1.bf16.xpose.msra.mxu0 0
    %2389 = vmatprep.subr.bf16.mxu0 0
    %2390 = vmatpush1.bf16.xpose.msra.mxu0 0
    %2391 = vmatprep.subr.bf16.mxu0 0
    %2392 = vmatpush1.bf16.xpose.msra.mxu0 0
    %2393 = vmatprep.subr.bf16.mxu0 0
    %2394 = vmatpush1.bf16.xpose.msra.mxu0 0
    %2395 = vmatprep.subr.bf16.mxu0 0
    %2396 = vmatpush1.bf16.xpose.msra.mxu0 0
    %2397 = vmatprep.mubr.bf16.mxu0 0
    %2398 = vmatmul.mubr.bf16.gmra.mrb[0].mxu0 %v2360
    %v2399 = vpop.f32.mrb[0].mxu0
    %v2400 = vadd.f32 0.0, %v2399
    %v2401 = vpop.f32.mrb[0].mxu0
    %v2402 = vpop.f32.mrb[0].mxu0
    %v2403 = vpop.f32.mrb[0].mxu0
    %2404 = vdwg.mxu0
    %v2406 = vsel %vm2082, %v2057, 0
    %v2409 = vsel %vm2082, %v2073, 0
    %2411 = vmatprep.subr.bf16.mxu0 0
    %2412 = vmatpush1.bf16.xpose.msra.mxu0 %v2409
    %2413 = vmatprep.subr.bf16.mxu0 0
    %2414 = vmatpush1.bf16.xpose.msra.mxu0 0
    %2415 = vmatprep.subr.bf16.mxu0 0
    %2416 = vmatpush1.bf16.xpose.msra.mxu0 0
    %2417 = vmatprep.subr.bf16.mxu0 0
    %2418 = vmatpush1.bf16.xpose.msra.mxu0 0
    %2419 = vmatprep.subr.bf16.mxu0 0
    %2420 = vmatpush1.bf16.xpose.msra.mxu0 0
    %2421 = vmatprep.subr.bf16.mxu0 0
    %2422 = vmatpush1.bf16.xpose.msra.mxu0 0
    %2423 = vmatprep.subr.bf16.mxu0 0
    %2424 = vmatpush1.bf16.xpose.msra.mxu0 0
    %2425 = vmatprep.subr.bf16.mxu0 0
    %2426 = vmatpush1.bf16.xpose.msra.mxu0 0
    %2427 = vmatprep.subr.bf16.mxu0 0
    %2428 = vmatpush1.bf16.xpose.msra.mxu0 0
    %2429 = vmatprep.subr.bf16.mxu0 0
    %2430 = vmatpush1.bf16.xpose.msra.mxu0 0
    %2431 = vmatprep.subr.bf16.mxu0 0
    %2432 = vmatpush1.bf16.xpose.msra.mxu0 0
    %2433 = vmatprep.subr.bf16.mxu0 0
    %2434 = vmatpush1.bf16.xpose.msra.mxu0 0
    %2435 = vmatprep.subr.bf16.mxu0 0
    %2436 = vmatpush1.bf16.xpose.msra.mxu0 0
    %2437 = vmatprep.subr.bf16.mxu0 0
    %2438 = vmatpush1.bf16.xpose.msra.mxu0 0
    %2439 = vmatprep.subr.bf16.mxu0 0
    %2440 = vmatpush1.bf16.xpose.msra.mxu0 0
    %2441 = vmatprep.subr.bf16.mxu0 0
    %2442 = vmatpush1.bf16.xpose.msra.mxu0 0
    %2443 = vmatprep.mubr.bf16.mxu0 0
    %2444 = vmatmul.mubr.bf16.gmra.mrb[0].mxu0 %v2406
    %v2445 = vpop.f32.mrb[0].mxu0
    %v2446 = vadd.f32 0.0, %v2445
    %v2447 = vpop.f32.mrb[0].mxu0
    %v2448 = vpop.f32.mrb[0].mxu0
    %v2449 = vpop.f32.mrb[0].mxu0
    %2450 = vdwg.mxu0
    %v2452 = vsel %vm2082, %v2058, 0
    %v2455 = vsel %vm2082, %v2074, 0
    %2457 = vmatprep.subr.bf16.mxu0 0
    %2458 = vmatpush1.bf16.xpose.msra.mxu0 %v2455
    %2459 = vmatprep.subr.bf16.mxu0 0
    %2460 = vmatpush1.bf16.xpose.msra.mxu0 0
    %2461 = vmatprep.subr.bf16.mxu0 0
    %2462 = vmatpush1.bf16.xpose.msra.mxu0 0
    %2463 = vmatprep.subr.bf16.mxu0 0
    %2464 = vmatpush1.bf16.xpose.msra.mxu0 0
    %2465 = vmatprep.subr.bf16.mxu0 0
    %2466 = vmatpush1.bf16.xpose.msra.mxu0 0
    %2467 = vmatprep.subr.bf16.mxu0 0
    %2468 = vmatpush1.bf16.xpose.msra.mxu0 0
    %2469 = vmatprep.subr.bf16.mxu0 0
    %2470 = vmatpush1.bf16.xpose.msra.mxu0 0
    %2471 = vmatprep.subr.bf16.mxu0 0
    %2472 = vmatpush1.bf16.xpose.msra.mxu0 0
    %2473 = vmatprep.subr.bf16.mxu0 0
    %2474 = vmatpush1.bf16.xpose.msra.mxu0 0
    %2475 = vmatprep.subr.bf16.mxu0 0
    %2476 = vmatpush1.bf16.xpose.msra.mxu0 0
    %2477 = vmatprep.subr.bf16.mxu0 0
    %2478 = vmatpush1.bf16.xpose.msra.mxu0 0
    %2479 = vmatprep.subr.bf16.mxu0 0
    %2480 = vmatpush1.bf16.xpose.msra.mxu0 0
    %2481 = vmatprep.subr.bf16.mxu0 0
    %2482 = vmatpush1.bf16.xpose.msra.mxu0 0
    %2483 = vmatprep.subr.bf16.mxu0 0
    %2484 = vmatpush1.bf16.xpose.msra.mxu0 0
    %2485 = vmatprep.subr.bf16.mxu0 0
    %2486 = vmatpush1.bf16.xpose.msra.mxu0 0
    %2487 = vmatprep.subr.bf16.mxu0 0
    %2488 = vmatpush1.bf16.xpose.msra.mxu0 0
    %2489 = vmatprep.mubr.bf16.mxu0 0
    %2490 = vmatmul.mubr.bf16.gmra.mrb[0].mxu0 %v2452
    %v2491 = vpop.f32.mrb[0].mxu0
    %v2492 = vadd.f32 0.0, %v2491
    %v2493 = vpop.f32.mrb[0].mxu0
    %v2494 = vpop.f32.mrb[0].mxu0
    %v2495 = vpop.f32.mrb[0].mxu0
    %2496 = vdwg.mxu0
    %v2498 = vsel %vm2082, %v2059, 0
    %v2501 = vsel %vm2082, %v2075, 0
    %2503 = vmatprep.subr.bf16.mxu0 0
    %2504 = vmatpush1.bf16.xpose.msra.mxu0 %v2501
    %2505 = vmatprep.subr.bf16.mxu0 0
    %2506 = vmatpush1.bf16.xpose.msra.mxu0 0
    %2507 = vmatprep.subr.bf16.mxu0 0
    %2508 = vmatpush1.bf16.xpose.msra.mxu0 0
    %2509 = vmatprep.subr.bf16.mxu0 0
    %2510 = vmatpush1.bf16.xpose.msra.mxu0 0
    %2511 = vmatprep.subr.bf16.mxu0 0
    %2512 = vmatpush1.bf16.xpose.msra.mxu0 0
    %2513 = vmatprep.subr.bf16.mxu0 0
    %2514 = vmatpush1.bf16.xpose.msra.mxu0 0
    %2515 = vmatprep.subr.bf16.mxu0 0
    %2516 = vmatpush1.bf16.xpose.msra.mxu0 0
    %2517 = vmatprep.subr.bf16.mxu0 0
    %2518 = vmatpush1.bf16.xpose.msra.mxu0 0
    %2519 = vmatprep.subr.bf16.mxu0 0
    %2520 = vmatpush1.bf16.xpose.msra.mxu0 0
    %2521 = vmatprep.subr.bf16.mxu0 0
    %2522 = vmatpush1.bf16.xpose.msra.mxu0 0
    %2523 = vmatprep.subr.bf16.mxu0 0
    %2524 = vmatpush1.bf16.xpose.msra.mxu0 0
    %2525 = vmatprep.subr.bf16.mxu0 0
    %2526 = vmatpush1.bf16.xpose.msra.mxu0 0
    %2527 = vmatprep.subr.bf16.mxu0 0
    %2528 = vmatpush1.bf16.xpose.msra.mxu0 0
    %2529 = vmatprep.subr.bf16.mxu0 0
    %2530 = vmatpush1.bf16.xpose.msra.mxu0 0
    %2531 = vmatprep.subr.bf16.mxu0 0
    %2532 = vmatpush1.bf16.xpose.msra.mxu0 0
    %2533 = vmatprep.subr.bf16.mxu0 0
    %2534 = vmatpush1.bf16.xpose.msra.mxu0 0
    %2535 = vmatprep.mubr.bf16.mxu0 0
    %2536 = vmatmul.mubr.bf16.gmra.mrb[0].mxu0 %v2498
    %v2537 = vpop.f32.mrb[0].mxu0
    %v2538 = vadd.f32 0.0, %v2537
    %v2539 = vpop.f32.mrb[0].mxu0
    %v2540 = vpop.f32.mrb[0].mxu0
    %v2541 = vpop.f32.mrb[0].mxu0
    %2542 = vdwg.mxu0
    %v2544 = vsel %vm2082, %v2060, 0
    %v2547 = vsel %vm2082, %v2076, 0
    %2549 = vmatprep.subr.bf16.mxu0 0
    %2550 = vmatpush1.bf16.xpose.msra.mxu0 %v2547
    %2551 = vmatprep.subr.bf16.mxu0 0
    %2552 = vmatpush1.bf16.xpose.msra.mxu0 0
    %2553 = vmatprep.subr.bf16.mxu0 0
    %2554 = vmatpush1.bf16.xpose.msra.mxu0 0
    %2555 = vmatprep.subr.bf16.mxu0 0
    %2556 = vmatpush1.bf16.xpose.msra.mxu0 0
    %2557 = vmatprep.subr.bf16.mxu0 0
    %2558 = vmatpush1.bf16.xpose.msra.mxu0 0
    %2559 = vmatprep.subr.bf16.mxu0 0
    %2560 = vmatpush1.bf16.xpose.msra.mxu0 0
    %2561 = vmatprep.subr.bf16.mxu0 0
    %2562 = vmatpush1.bf16.xpose.msra.mxu0 0
    %2563 = vmatprep.subr.bf16.mxu0 0
    %2564 = vmatpush1.bf16.xpose.msra.mxu0 0
    %2565 = vmatprep.subr.bf16.mxu0 0
    %2566 = vmatpush1.bf16.xpose.msra.mxu0 0
    %2567 = vmatprep.subr.bf16.mxu0 0
    %2568 = vmatpush1.bf16.xpose.msra.mxu0 0
    %2569 = vmatprep.subr.bf16.mxu0 0
    %2570 = vmatpush1.bf16.xpose.msra.mxu0 0
    %2571 = vmatprep.subr.bf16.mxu0 0
    %2572 = vmatpush1.bf16.xpose.msra.mxu0 0
    %2573 = vmatprep.subr.bf16.mxu0 0
    %2574 = vmatpush1.bf16.xpose.msra.mxu0 0
    %2575 = vmatprep.subr.bf16.mxu0 0
    %2576 = vmatpush1.bf16.xpose.msra.mxu0 0
    %2577 = vmatprep.subr.bf16.mxu0 0
    %2578 = vmatpush1.bf16.xpose.msra.mxu0 0
    %2579 = vmatprep.subr.bf16.mxu0 0
    %2580 = vmatpush1.bf16.xpose.msra.mxu0 0
    %2581 = vmatprep.mubr.bf16.mxu0 0
    %2582 = vmatmul.mubr.bf16.gmra.mrb[0].mxu0 %v2544
    %v2583 = vpop.f32.mrb[0].mxu0
    %v2584 = vadd.f32 0.0, %v2583
    %v2585 = vpop.f32.mrb[0].mxu0
    %v2586 = vpop.f32.mrb[0].mxu0
    %v2587 = vpop.f32.mrb[0].mxu0
    %2588 = vdwg.mxu0
    %v2590 = vsel %vm2082, %v2061, 0
    %v2593 = vsel %vm2082, %v2077, 0
    %2595 = vmatprep.subr.bf16.mxu0 0
    %2596 = vmatpush1.bf16.xpose.msra.mxu0 %v2593
    %2597 = vmatprep.subr.bf16.mxu0 0
    %2598 = vmatpush1.bf16.xpose.msra.mxu0 0
    %2599 = vmatprep.subr.bf16.mxu0 0
    %2600 = vmatpush1.bf16.xpose.msra.mxu0 0
    %2601 = vmatprep.subr.bf16.mxu0 0
    %2602 = vmatpush1.bf16.xpose.msra.mxu0 0
    %2603 = vmatprep.subr.bf16.mxu0 0
    %2604 = vmatpush1.bf16.xpose.msra.mxu0 0
    %2605 = vmatprep.subr.bf16.mxu0 0
    %2606 = vmatpush1.bf16.xpose.msra.mxu0 0
    %2607 = vmatprep.subr.bf16.mxu0 0
    %2608 = vmatpush1.bf16.xpose.msra.mxu0 0
    %2609 = vmatprep.subr.bf16.mxu0 0
    %2610 = vmatpush1.bf16.xpose.msra.mxu0 0
    %2611 = vmatprep.subr.bf16.mxu0 0
    %2612 = vmatpush1.bf16.xpose.msra.mxu0 0
    %2613 = vmatprep.subr.bf16.mxu0 0
    %2614 = vmatpush1.bf16.xpose.msra.mxu0 0
    %2615 = vmatprep.subr.bf16.mxu0 0
    %2616 = vmatpush1.bf16.xpose.msra.mxu0 0
    %2617 = vmatprep.subr.bf16.mxu0 0
    %2618 = vmatpush1.bf16.xpose.msra.mxu0 0
    %2619 = vmatprep.subr.bf16.mxu0 0
    %2620 = vmatpush1.bf16.xpose.msra.mxu0 0
    %2621 = vmatprep.subr.bf16.mxu0 0
    %2622 = vmatpush1.bf16.xpose.msra.mxu0 0
    %2623 = vmatprep.subr.bf16.mxu0 0
    %2624 = vmatpush1.bf16.xpose.msra.mxu0 0
    %2625 = vmatprep.subr.bf16.mxu0 0
    %2626 = vmatpush1.bf16.xpose.msra.mxu0 0
    %2627 = vmatprep.mubr.bf16.mxu0 0
    %2628 = vmatmul.mubr.bf16.gmra.mrb[0].mxu0 %v2590
    %v2629 = vpop.f32.mrb[0].mxu0
    %v2630 = vadd.f32 0.0, %v2629
    %v2631 = vpop.f32.mrb[0].mxu0
    %v2632 = vpop.f32.mrb[0].mxu0
    %v2633 = vpop.f32.mrb[0].mxu0
    %2634 = vdwg.mxu0
    %v2636 = vsel %vm2082, %v2062, 0
    %v2639 = vsel %vm2082, %v2078, 0
    %2641 = vmatprep.subr.bf16.mxu0 0
    %2642 = vmatpush1.bf16.xpose.msra.mxu0 %v2639
    %2643 = vmatprep.subr.bf16.mxu0 0
    %2644 = vmatpush1.bf16.xpose.msra.mxu0 0
    %2645 = vmatprep.subr.bf16.mxu0 0
    %2646 = vmatpush1.bf16.xpose.msra.mxu0 0
    %2647 = vmatprep.subr.bf16.mxu0 0
    %2648 = vmatpush1.bf16.xpose.msra.mxu0 0
    %2649 = vmatprep.subr.bf16.mxu0 0
    %2650 = vmatpush1.bf16.xpose.msra.mxu0 0
    %2651 = vmatprep.subr.bf16.mxu0 0
    %2652 = vmatpush1.bf16.xpose.msra.mxu0 0
    %2653 = vmatprep.subr.bf16.mxu0 0
    %2654 = vmatpush1.bf16.xpose.msra.mxu0 0
    %2655 = vmatprep.subr.bf16.mxu0 0
    %2656 = vmatpush1.bf16.xpose.msra.mxu0 0
    %2657 = vmatprep.subr.bf16.mxu0 0
    %2658 = vmatpush1.bf16.xpose.msra.mxu0 0
    %2659 = vmatprep.subr.bf16.mxu0 0
    %2660 = vmatpush1.bf16.xpose.msra.mxu0 0
    %2661 = vmatprep.subr.bf16.mxu0 0
    %2662 = vmatpush1.bf16.xpose.msra.mxu0 0
    %2663 = vmatprep.subr.bf16.mxu0 0
    %2664 = vmatpush1.bf16.xpose.msra.mxu0 0
    %2665 = vmatprep.subr.bf16.mxu0 0
    %2666 = vmatpush1.bf16.xpose.msra.mxu0 0
    %2667 = vmatprep.subr.bf16.mxu0 0
    %2668 = vmatpush1.bf16.xpose.msra.mxu0 0
    %2669 = vmatprep.subr.bf16.mxu0 0
    %2670 = vmatpush1.bf16.xpose.msra.mxu0 0
    %2671 = vmatprep.subr.bf16.mxu0 0
    %2672 = vmatpush1.bf16.xpose.msra.mxu0 0
    %2673 = vmatprep.mubr.bf16.mxu0 0
    %2674 = vmatmul.mubr.bf16.gmra.mrb[0].mxu0 %v2636
    %v2675 = vpop.f32.mrb[0].mxu0
    %v2676 = vadd.f32 0.0, %v2675
    %v2677 = vpop.f32.mrb[0].mxu0
    %v2678 = vpop.f32.mrb[0].mxu0
    %v2679 = vpop.f32.mrb[0].mxu0
    %2680 = vdwg.mxu0
    %v2682 = vsel %vm2082, %v2063, 0
    %v2685 = vsel %vm2082, %v2079, 0
    %2687 = vmatprep.subr.bf16.mxu0 0
    %2688 = vmatpush1.bf16.xpose.msra.mxu0 %v2685
    %2689 = vmatprep.subr.bf16.mxu0 0
    %2690 = vmatpush1.bf16.xpose.msra.mxu0 0
    %2691 = vmatprep.subr.bf16.mxu0 0
    %2692 = vmatpush1.bf16.xpose.msra.mxu0 0
    %2693 = vmatprep.subr.bf16.mxu0 0
    %2694 = vmatpush1.bf16.xpose.msra.mxu0 0
    %2695 = vmatprep.subr.bf16.mxu0 0
    %2696 = vmatpush1.bf16.xpose.msra.mxu0 0
    %2697 = vmatprep.subr.bf16.mxu0 0
    %2698 = vmatpush1.bf16.xpose.msra.mxu0 0
    %2699 = vmatprep.subr.bf16.mxu0 0
    %2700 = vmatpush1.bf16.xpose.msra.mxu0 0
    %2701 = vmatprep.subr.bf16.mxu0 0
    %2702 = vmatpush1.bf16.xpose.msra.mxu0 0
    %2703 = vmatprep.subr.bf16.mxu0 0
    %2704 = vmatpush1.bf16.xpose.msra.mxu0 0
    %2705 = vmatprep.subr.bf16.mxu0 0
    %2706 = vmatpush1.bf16.xpose.msra.mxu0 0
    %2707 = vmatprep.subr.bf16.mxu0 0
    %2708 = vmatpush1.bf16.xpose.msra.mxu0 0
    %2709 = vmatprep.subr.bf16.mxu0 0
    %2710 = vmatpush1.bf16.xpose.msra.mxu0 0
    %2711 = vmatprep.subr.bf16.mxu0 0
    %2712 = vmatpush1.bf16.xpose.msra.mxu0 0
    %2713 = vmatprep.subr.bf16.mxu0 0
    %2714 = vmatpush1.bf16.xpose.msra.mxu0 0
    %2715 = vmatprep.subr.bf16.mxu0 0
    %2716 = vmatpush1.bf16.xpose.msra.mxu0 0
    %2717 = vmatprep.subr.bf16.mxu0 0
    %2718 = vmatpush1.bf16.xpose.msra.mxu0 0
    %2719 = vmatprep.mubr.bf16.mxu0 0
    %2720 = vmatmul.mubr.bf16.gmra.mrb[0].mxu0 %v2682
    %v2721 = vpop.f32.mrb[0].mxu0
    %v2722 = vadd.f32 0.0, %v2721
    %v2723 = vpop.f32.mrb[0].mxu0
    %v2724 = vpop.f32.mrb[0].mxu0
    %v2725 = vpop.f32.mrb[0].mxu0
    %2726 = vdwg.mxu0
    %v2728 = vsel %vm2082, %v2064, 0
    %v2731 = vsel %vm2082, %v2080, 0
    %2733 = vmatprep.subr.bf16.mxu0 0
    %2734 = vmatpush1.bf16.xpose.msra.mxu0 %v2731
    %2735 = vmatprep.subr.bf16.mxu0 0
    %2736 = vmatpush1.bf16.xpose.msra.mxu0 0
    %2737 = vmatprep.subr.bf16.mxu0 0
    %2738 = vmatpush1.bf16.xpose.msra.mxu0 0
    %2739 = vmatprep.subr.bf16.mxu0 0
    %2740 = vmatpush1.bf16.xpose.msra.mxu0 0
    %2741 = vmatprep.subr.bf16.mxu0 0
    %2742 = vmatpush1.bf16.xpose.msra.mxu0 0
    %2743 = vmatprep.subr.bf16.mxu0 0
    %2744 = vmatpush1.bf16.xpose.msra.mxu0 0
    %2745 = vmatprep.subr.bf16.mxu0 0
    %2746 = vmatpush1.bf16.xpose.msra.mxu0 0
    %2747 = vmatprep.subr.bf16.mxu0 0
    %2748 = vmatpush1.bf16.xpose.msra.mxu0 0
    %2749 = vmatprep.subr.bf16.mxu0 0
    %2750 = vmatpush1.bf16.xpose.msra.mxu0 0
    %2751 = vmatprep.subr.bf16.mxu0 0
    %2752 = vmatpush1.bf16.xpose.msra.mxu0 0
    %2753 = vmatprep.subr.bf16.mxu0 0
    %2754 = vmatpush1.bf16.xpose.msra.mxu0 0
    %2755 = vmatprep.subr.bf16.mxu0 0
    %2756 = vmatpush1.bf16.xpose.msra.mxu0 0
    %2757 = vmatprep.subr.bf16.mxu0 0
    %2758 = vmatpush1.bf16.xpose.msra.mxu0 0
    %2759 = vmatprep.subr.bf16.mxu0 0
    %2760 = vmatpush1.bf16.xpose.msra.mxu0 0
    %2761 = vmatprep.subr.bf16.mxu0 0
    %2762 = vmatpush1.bf16.xpose.msra.mxu0 0
    %2763 = vmatprep.subr.bf16.mxu0 0
    %2764 = vmatpush1.bf16.xpose.msra.mxu0 0
    %2765 = vmatprep.mubr.bf16.mxu0 0
    %2766 = vmatmul.mubr.bf16.gmra.mrb[0].mxu0 %v2728
    %v2767 = vpop.f32.mrb[0].mxu0
    %v2768 = vadd.f32 0.0, %v2767
    %v2769 = vpop.f32.mrb[0].mxu0
    %v2770 = vpop.f32.mrb[0].mxu0
    %v2771 = vpop.f32.mrb[0].mxu0
    %2772 = vdwg.mxu0
    %v2774 = vsel %vm2082, %v2065, 0
    %v2777 = vsel %vm2082, %v2081, 0
    %2779 = vmatprep.subr.bf16.mxu0 0
    %2780 = vmatpush1.bf16.xpose.msra.mxu0 %v2777
    %2781 = vmatprep.subr.bf16.mxu0 0
    %2782 = vmatpush1.bf16.xpose.msra.mxu0 0
    %2783 = vmatprep.subr.bf16.mxu0 0
    %2784 = vmatpush1.bf16.xpose.msra.mxu0 0
    %2785 = vmatprep.subr.bf16.mxu0 0
    %2786 = vmatpush1.bf16.xpose.msra.mxu0 0
    %2787 = vmatprep.subr.bf16.mxu0 0
    %2788 = vmatpush1.bf16.xpose.msra.mxu0 0
    %2789 = vmatprep.subr.bf16.mxu0 0
    %2790 = vmatpush1.bf16.xpose.msra.mxu0 0
    %2791 = vmatprep.subr.bf16.mxu0 0
    %2792 = vmatpush1.bf16.xpose.msra.mxu0 0
    %2793 = vmatprep.subr.bf16.mxu0 0
    %2794 = vmatpush1.bf16.xpose.msra.mxu0 0
    %2795 = vmatprep.subr.bf16.mxu0 0
    %2796 = vmatpush1.bf16.xpose.msra.mxu0 0
    %2797 = vmatprep.subr.bf16.mxu0 0
    %2798 = vmatpush1.bf16.xpose.msra.mxu0 0
    %2799 = vmatprep.subr.bf16.mxu0 0
    %2800 = vmatpush1.bf16.xpose.msra.mxu0 0
    %2801 = vmatprep.subr.bf16.mxu0 0
    %2802 = vmatpush1.bf16.xpose.msra.mxu0 0
    %2803 = vmatprep.subr.bf16.mxu0 0
    %2804 = vmatpush1.bf16.xpose.msra.mxu0 0
    %2805 = vmatprep.subr.bf16.mxu0 0
    %2806 = vmatpush1.bf16.xpose.msra.mxu0 0
    %2807 = vmatprep.subr.bf16.mxu0 0
    %2808 = vmatpush1.bf16.xpose.msra.mxu0 0
    %2809 = vmatprep.subr.bf16.mxu0 0
    %2810 = vmatpush1.bf16.xpose.msra.mxu0 0
    %2811 = vmatprep.mubr.bf16.mxu0 0
    %2812 = vmatmul.mubr.bf16.gmra.mrb[0].mxu0 %v2774
    %v2813 = vpop.f32.mrb[0].mxu0
    %v2814 = vadd.f32 0.0, %v2813
    %v2815 = vpop.f32.mrb[0].mxu0
    %v2816 = vpop.f32.mrb[0].mxu0
    %v2817 = vpop.f32.mrb[0].mxu0
    %2818 = vdwg.mxu0
    %v2819 = vsel %vm2049, 1, 0
    %vm2820 = vcmp.eq.s32.totalorder %v2819, 1
    %v2821 = vsel %vm2820, %v2124, -1e+30
    %v2822 = vsel %vm2820, %v2170, -1e+30
    %v2823 = vsel %vm2820, %v2216, -1e+30
    %v2824 = vsel %vm2820, %v2262, -1e+30
    %v2825 = vsel %vm2820, %v2308, -1e+30
    %v2826 = vsel %vm2820, %v2354, -1e+30
    %v2827 = vsel %vm2820, %v2400, -1e+30
    %v2828 = vsel %vm2820, %v2446, -1e+30
    %v2829 = vsel %vm2820, %v2492, -1e+30
    %v2830 = vsel %vm2820, %v2538, -1e+30
    %v2831 = vsel %vm2820, %v2584, -1e+30
    %v2832 = vsel %vm2820, %v2630, -1e+30
    %v2833 = vsel %vm2820, %v2676, -1e+30
    %v2834 = vsel %vm2820, %v2722, -1e+30
    %v2835 = vsel %vm2820, %v2768, -1e+30
    %v2836 = vsel %vm2820, %v2814, -1e+30
    %vm2837 = vcmask 64512
    %v2838 = vsel %vm2837, %v2821, -inf
    %2839 = vmax.xlane.f32.xlu0 %v2838
    %v2840 = vpop.xlane.xlu0 %2839
    %v2841 = vsel %vm2837, %v2822, -inf
    %2842 = vmax.xlane.f32.xlu0 %v2841
    %v2843 = vpop.xlane.xlu0 %2842
    %v2844 = vsel %vm2837, %v2823, -inf
    %2845 = vmax.xlane.f32.xlu0 %v2844
    %v2846 = vpop.xlane.xlu0 %2845
    %v2847 = vsel %vm2837, %v2824, -inf
    %2848 = vmax.xlane.f32.xlu0 %v2847
    %v2849 = vpop.xlane.xlu0 %2848
    %v2850 = vsel %vm2837, %v2825, -inf
    %2851 = vmax.xlane.f32.xlu0 %v2850
    %v2852 = vpop.xlane.xlu0 %2851
    %v2853 = vsel %vm2837, %v2826, -inf
    %2854 = vmax.xlane.f32.xlu0 %v2853
    %v2855 = vpop.xlane.xlu0 %2854
    %v2856 = vsel %vm2837, %v2827, -inf
    %2857 = vmax.xlane.f32.xlu0 %v2856
    %v2858 = vpop.xlane.xlu0 %2857
    %v2859 = vsel %vm2837, %v2828, -inf
    %2860 = vmax.xlane.f32.xlu0 %v2859
    %v2861 = vpop.xlane.xlu0 %2860
    %v2862 = vsel %vm2837, %v2829, -inf
    %2863 = vmax.xlane.f32.xlu0 %v2862
    %v2864 = vpop.xlane.xlu0 %2863
    %v2865 = vsel %vm2837, %v2830, -inf
    %2866 = vmax.xlane.f32.xlu0 %v2865
    %v2867 = vpop.xlane.xlu0 %2866
    %v2868 = vsel %vm2837, %v2831, -inf
    %2869 = vmax.xlane.f32.xlu0 %v2868
    %v2870 = vpop.xlane.xlu0 %2869
    %v2871 = vsel %vm2837, %v2832, -inf
    %2872 = vmax.xlane.f32.xlu0 %v2871
    %v2873 = vpop.xlane.xlu0 %2872
    %v2874 = vsel %vm2837, %v2833, -inf
    %2875 = vmax.xlane.f32.xlu0 %v2874
    %v2876 = vpop.xlane.xlu0 %2875
    %v2877 = vsel %vm2837, %v2834, -inf
    %2878 = vmax.xlane.f32.xlu0 %v2877
    %v2879 = vpop.xlane.xlu0 %2878
    %v2880 = vsel %vm2837, %v2835, -inf
    %2881 = vmax.xlane.f32.xlu0 %v2880
    %v2882 = vpop.xlane.xlu0 %2881
    %v2883 = vsel %vm2837, %v2836, -inf
    %2884 = vmax.xlane.f32.xlu0 %v2883
    %v2885 = vpop.xlane.xlu0 %2884
    %v2886 = vsub.f32 %v2821, %v2840
    %v2887 = vsub.f32 %v2822, %v2843
    %v2888 = vsub.f32 %v2823, %v2846
    %v2889 = vsub.f32 %v2824, %v2849
    %v2890 = vsub.f32 %v2825, %v2852
    %v2891 = vsub.f32 %v2826, %v2855
    %v2892 = vsub.f32 %v2827, %v2858
    %v2893 = vsub.f32 %v2828, %v2861
    %v2894 = vsub.f32 %v2829, %v2864
    %v2895 = vsub.f32 %v2830, %v2867
    %v2896 = vsub.f32 %v2831, %v2870
    %v2897 = vsub.f32 %v2832, %v2873
    %v2898 = vsub.f32 %v2833, %v2876
    %v2899 = vsub.f32 %v2834, %v2879
    %v2900 = vsub.f32 %v2835, %v2882
    %v2901 = vsub.f32 %v2836, %v2885
    %v2902 = vmul.f32 %v2886, 1.442695
    %v2903 = vpow.pop %v2902
    %v2904 = vmul.f32 %v2887, 1.442695
    %v2905 = vpow.pop %v2904
    %v2906 = vmul.f32 %v2888, 1.442695
    %v2907 = vpow.pop %v2906
    %v2908 = vmul.f32 %v2889, 1.442695
    %v2909 = vpow.pop %v2908
    %v2910 = vmul.f32 %v2890, 1.442695
    %v2911 = vpow.pop %v2910
    %v2912 = vmul.f32 %v2891, 1.442695
    %v2913 = vpow.pop %v2912
    %v2914 = vmul.f32 %v2892, 1.442695
    %v2915 = vpow.pop %v2914
    %v2916 = vmul.f32 %v2893, 1.442695
    %v2917 = vpow.pop %v2916
    %v2918 = vmul.f32 %v2894, 1.442695
    %v2919 = vpow.pop %v2918
    %v2920 = vmul.f32 %v2895, 1.442695
    %v2921 = vpow.pop %v2920
    %v2922 = vmul.f32 %v2896, 1.442695
    %v2923 = vpow.pop %v2922
    %v2924 = vmul.f32 %v2897, 1.442695
    %v2925 = vpow.pop %v2924
    %v2926 = vmul.f32 %v2898, 1.442695
    %v2927 = vpow.pop %v2926
    %v2928 = vmul.f32 %v2899, 1.442695
    %v2929 = vpow.pop %v2928
    %v2930 = vmul.f32 %v2900, 1.442695
    %v2931 = vpow.pop %v2930
    %v2932 = vmul.f32 %v2901, 1.442695
    %v2933 = vpow.pop %v2932
    %v2934 = vsel %vm2837, %v2903, 0.0
    %2935 = vadd.xlane.f32.xlu0 %v2934
    %v2936 = vpop.xlane.xlu0 %2935
    %v2937 = vsel %vm2837, %v2905, 0.0
    %2938 = vadd.xlane.f32.xlu0 %v2937
    %v2939 = vpop.xlane.xlu0 %2938
    %v2940 = vsel %vm2837, %v2907, 0.0
    %2941 = vadd.xlane.f32.xlu0 %v2940
    %v2942 = vpop.xlane.xlu0 %2941
    %v2943 = vsel %vm2837, %v2909, 0.0
    %2944 = vadd.xlane.f32.xlu0 %v2943
    %v2945 = vpop.xlane.xlu0 %2944
    %v2946 = vsel %vm2837, %v2911, 0.0
    %2947 = vadd.xlane.f32.xlu0 %v2946
    %v2948 = vpop.xlane.xlu0 %2947
    %v2949 = vsel %vm2837, %v2913, 0.0
    %2950 = vadd.xlane.f32.xlu0 %v2949
    %v2951 = vpop.xlane.xlu0 %2950
    %v2952 = vsel %vm2837, %v2915, 0.0
    %2953 = vadd.xlane.f32.xlu0 %v2952
    %v2954 = vpop.xlane.xlu0 %2953
    %v2955 = vsel %vm2837, %v2917, 0.0
    %2956 = vadd.xlane.f32.xlu0 %v2955
    %v2957 = vpop.xlane.xlu0 %2956
    %v2958 = vsel %vm2837, %v2919, 0.0
    %2959 = vadd.xlane.f32.xlu0 %v2958
    %v2960 = vpop.xlane.xlu0 %2959
    %v2961 = vsel %vm2837, %v2921, 0.0
    %2962 = vadd.xlane.f32.xlu0 %v2961
    %v2963 = vpop.xlane.xlu0 %2962
    %v2964 = vsel %vm2837, %v2923, 0.0
    %2965 = vadd.xlane.f32.xlu0 %v2964
    %v2966 = vpop.xlane.xlu0 %2965
    %v2967 = vsel %vm2837, %v2925, 0.0
    %2968 = vadd.xlane.f32.xlu0 %v2967
    %v2969 = vpop.xlane.xlu0 %2968
    %v2970 = vsel %vm2837, %v2927, 0.0
    %2971 = vadd.xlane.f32.xlu0 %v2970
    %v2972 = vpop.xlane.xlu0 %2971
    %v2973 = vsel %vm2837, %v2929, 0.0
    %2974 = vadd.xlane.f32.xlu0 %v2973
    %v2975 = vpop.xlane.xlu0 %2974
    %v2976 = vsel %vm2837, %v2931, 0.0
    %2977 = vadd.xlane.f32.xlu0 %v2976
    %v2978 = vpop.xlane.xlu0 %2977
    %v2979 = vsel %vm2837, %v2933, 0.0
    %2980 = vadd.xlane.f32.xlu0 %v2979
    %v2981 = vpop.xlane.xlu0 %2980
    %v2982 = vrcp.pop %v2936
    %v2983 = vrcp.pop %v2939
    %v2984 = vrcp.pop %v2942
    %v2985 = vrcp.pop %v2945
    %v2986 = vrcp.pop %v2948
    %v2987 = vrcp.pop %v2951
    %v2988 = vrcp.pop %v2954
    %v2989 = vrcp.pop %v2957
    %v2990 = vrcp.pop %v2960
    %v2991 = vrcp.pop %v2963
    %v2992 = vrcp.pop %v2966
    %v2993 = vrcp.pop %v2969
    %v2994 = vrcp.pop %v2972
    %v2995 = vrcp.pop %v2975
    %v2996 = vrcp.pop %v2978
    %v2997 = vrcp.pop %v2981
    %v2998 = vmul.f32 %v2903, %v2982
    %v2999 = vmul.f32 %v2905, %v2983
    %v3000 = vmul.f32 %v2907, %v2984
    %v3001 = vmul.f32 %v2909, %v2985
    %v3002 = vmul.f32 %v2911, %v2986
    %v3003 = vmul.f32 %v2913, %v2987
    %v3004 = vmul.f32 %v2915, %v2988
    %v3005 = vmul.f32 %v2917, %v2989
    %v3006 = vmul.f32 %v2919, %v2990
    %v3007 = vmul.f32 %v2921, %v2991
    %v3008 = vmul.f32 %v2923, %v2992
    %v3009 = vmul.f32 %v2925, %v2993
    %v3010 = vmul.f32 %v2927, %v2994
    %v3011 = vmul.f32 %v2929, %v2995
    %v3012 = vmul.f32 %v2931, %v2996
    %v3013 = vmul.f32 %v2933, %v2997
    %v3014 = vpack.c.bf16 %v2998, %v2998
    %v3015 = vpack.c.bf16 %v2999, %v2999
    %v3016 = vpack.c.bf16 %v3000, %v3000
    %v3017 = vpack.c.bf16 %v3001, %v3001
    %v3018 = vpack.c.bf16 %v3002, %v3002
    %v3019 = vpack.c.bf16 %v3003, %v3003
    %v3020 = vpack.c.bf16 %v3004, %v3004
    %v3021 = vpack.c.bf16 %v3005, %v3005
    %v3022 = vpack.c.bf16 %v3006, %v3006
    %v3023 = vpack.c.bf16 %v3007, %v3007
    %v3024 = vpack.c.bf16 %v3008, %v3008
    %v3025 = vpack.c.bf16 %v3009, %v3009
    %v3026 = vpack.c.bf16 %v3010, %v3010
    %v3027 = vpack.c.bf16 %v3011, %v3011
    %v3028 = vpack.c.bf16 %v3012, %v3012
    %v3029 = vpack.c.bf16 %v3013, %v3013
    %v3030 = vpack.c.bf16 %v1837, %v1837
    %v3031 = vpack.c.bf16 %v1838, %v1838
    %v3032 = vpack.c.bf16 %v1839, %v1839
    %v3033 = vpack.c.bf16 %v1840, %v1840
    %v3034 = vpack.c.bf16 %v1905, %v1905
    %v3035 = vpack.c.bf16 %v1906, %v1906
    %v3036 = vpack.c.bf16 %v1907, %v1907
    %v3037 = vpack.c.bf16 %v1908, %v1908
    %v3038 = vpack.c.bf16 %v1973, %v1973
    %v3039 = vpack.c.bf16 %v1974, %v1974
    %v3040 = vpack.c.bf16 %v1975, %v1975
    %v3041 = vpack.c.bf16 %v1976, %v1976
    %v3042 = vpack.c.bf16 %v2041, %v2041
    %v3043 = vpack.c.bf16 %v2042, %v2042
    %v3044 = vpack.c.bf16 %v2043, %v2043
    %v3045 = vpack.c.bf16 %v2044, %v2044
    %v3047 = vsel %vm2837, %v3014, 0
    %vm3049 = vcmask 1043456
    %v3051 = vsel %vm3049, %v3030, 0
    %3053 = vmatprep.subr.bf16.mxu0 0
    %3054 = vmatpush1.bf16.msra.mxu0 %v3051
    %3055 = vmatprep.subr.bf16.mxu0 0
    %3056 = vmatpush1.bf16.msra.mxu0 0
    %3057 = vmatprep.subr.bf16.mxu0 0
    %3058 = vmatpush1.bf16.msra.mxu0 0
    %3059 = vmatprep.subr.bf16.mxu0 0
    %3060 = vmatpush1.bf16.msra.mxu0 0
    %3061 = vmatprep.subr.bf16.mxu0 0
    %3062 = vmatpush1.bf16.msra.mxu0 0
    %3063 = vmatprep.subr.bf16.mxu0 0
    %3064 = vmatpush1.bf16.msra.mxu0 0
    %3065 = vmatprep.subr.bf16.mxu0 0
    %3066 = vmatpush1.bf16.msra.mxu0 0
    %3067 = vmatprep.subr.bf16.mxu0 0
    %3068 = vmatpush1.bf16.msra.mxu0 0
    %3069 = vmatprep.subr.bf16.mxu0 0
    %3070 = vmatpush1.bf16.msra.mxu0 0
    %3071 = vmatprep.subr.bf16.mxu0 0
    %3072 = vmatpush1.bf16.msra.mxu0 0
    %3073 = vmatprep.subr.bf16.mxu0 0
    %3074 = vmatpush1.bf16.msra.mxu0 0
    %3075 = vmatprep.subr.bf16.mxu0 0
    %3076 = vmatpush1.bf16.msra.mxu0 0
    %3077 = vmatprep.subr.bf16.mxu0 0
    %3078 = vmatpush1.bf16.msra.mxu0 0
    %3079 = vmatprep.subr.bf16.mxu0 0
    %3080 = vmatpush1.bf16.msra.mxu0 0
    %3081 = vmatprep.subr.bf16.mxu0 0
    %3082 = vmatpush1.bf16.msra.mxu0 0
    %3083 = vmatprep.subr.bf16.mxu0 0
    %3084 = vmatpush1.bf16.msra.mxu0 0
    %3085 = vmatprep.mubr.bf16.mxu0 0
    %3086 = vmatmul.mubr.bf16.gmra.mrb[0].mxu0 %v3047
    %v3087 = vpop.f32.mrb[0].mxu0
    %v3088 = vadd.f32 0.0, %v3087
    %v3089 = vpop.f32.mrb[0].mxu0
    %v3090 = vpop.f32.mrb[0].mxu0
    %v3091 = vpop.f32.mrb[0].mxu0
    %3092 = vdwg.mxu0
    %v3094 = vsel %vm2837, %v3015, 0
    %v3097 = vsel %vm3049, %v3031, 0
    %3099 = vmatprep.subr.bf16.mxu0 0
    %3100 = vmatpush1.bf16.msra.mxu0 %v3097
    %3101 = vmatprep.subr.bf16.mxu0 0
    %3102 = vmatpush1.bf16.msra.mxu0 0
    %3103 = vmatprep.subr.bf16.mxu0 0
    %3104 = vmatpush1.bf16.msra.mxu0 0
    %3105 = vmatprep.subr.bf16.mxu0 0
    %3106 = vmatpush1.bf16.msra.mxu0 0
    %3107 = vmatprep.subr.bf16.mxu0 0
    %3108 = vmatpush1.bf16.msra.mxu0 0
    %3109 = vmatprep.subr.bf16.mxu0 0
    %3110 = vmatpush1.bf16.msra.mxu0 0
    %3111 = vmatprep.subr.bf16.mxu0 0
    %3112 = vmatpush1.bf16.msra.mxu0 0
    %3113 = vmatprep.subr.bf16.mxu0 0
    %3114 = vmatpush1.bf16.msra.mxu0 0
    %3115 = vmatprep.subr.bf16.mxu0 0
    %3116 = vmatpush1.bf16.msra.mxu0 0
    %3117 = vmatprep.subr.bf16.mxu0 0
    %3118 = vmatpush1.bf16.msra.mxu0 0
    %3119 = vmatprep.subr.bf16.mxu0 0
    %3120 = vmatpush1.bf16.msra.mxu0 0
    %3121 = vmatprep.subr.bf16.mxu0 0
    %3122 = vmatpush1.bf16.msra.mxu0 0
    %3123 = vmatprep.subr.bf16.mxu0 0
    %3124 = vmatpush1.bf16.msra.mxu0 0
    %3125 = vmatprep.subr.bf16.mxu0 0
    %3126 = vmatpush1.bf16.msra.mxu0 0
    %3127 = vmatprep.subr.bf16.mxu0 0
    %3128 = vmatpush1.bf16.msra.mxu0 0
    %3129 = vmatprep.subr.bf16.mxu0 0
    %3130 = vmatpush1.bf16.msra.mxu0 0
    %3131 = vmatprep.mubr.bf16.mxu0 0
    %3132 = vmatmul.mubr.bf16.gmra.mrb[0].mxu0 %v3094
    %v3133 = vpop.f32.mrb[0].mxu0
    %v3134 = vadd.f32 0.0, %v3133
    %v3135 = vpop.f32.mrb[0].mxu0
    %v3136 = vpop.f32.mrb[0].mxu0
    %v3137 = vpop.f32.mrb[0].mxu0
    %3138 = vdwg.mxu0
    %v3140 = vsel %vm2837, %v3016, 0
    %v3143 = vsel %vm3049, %v3032, 0
    %3145 = vmatprep.subr.bf16.mxu0 0
    %3146 = vmatpush1.bf16.msra.mxu0 %v3143
    %3147 = vmatprep.subr.bf16.mxu0 0
    %3148 = vmatpush1.bf16.msra.mxu0 0
    %3149 = vmatprep.subr.bf16.mxu0 0
    %3150 = vmatpush1.bf16.msra.mxu0 0
    %3151 = vmatprep.subr.bf16.mxu0 0
    %3152 = vmatpush1.bf16.msra.mxu0 0
    %3153 = vmatprep.subr.bf16.mxu0 0
    %3154 = vmatpush1.bf16.msra.mxu0 0
    %3155 = vmatprep.subr.bf16.mxu0 0
    %3156 = vmatpush1.bf16.msra.mxu0 0
    %3157 = vmatprep.subr.bf16.mxu0 0
    %3158 = vmatpush1.bf16.msra.mxu0 0
    %3159 = vmatprep.subr.bf16.mxu0 0
    %3160 = vmatpush1.bf16.msra.mxu0 0
    %3161 = vmatprep.subr.bf16.mxu0 0
    %3162 = vmatpush1.bf16.msra.mxu0 0
    %3163 = vmatprep.subr.bf16.mxu0 0
    %3164 = vmatpush1.bf16.msra.mxu0 0
    %3165 = vmatprep.subr.bf16.mxu0 0
    %3166 = vmatpush1.bf16.msra.mxu0 0
    %3167 = vmatprep.subr.bf16.mxu0 0
    %3168 = vmatpush1.bf16.msra.mxu0 0
    %3169 = vmatprep.subr.bf16.mxu0 0
    %3170 = vmatpush1.bf16.msra.mxu0 0
    %3171 = vmatprep.subr.bf16.mxu0 0
    %3172 = vmatpush1.bf16.msra.mxu0 0
    %3173 = vmatprep.subr.bf16.mxu0 0
    %3174 = vmatpush1.bf16.msra.mxu0 0
    %3175 = vmatprep.subr.bf16.mxu0 0
    %3176 = vmatpush1.bf16.msra.mxu0 0
    %3177 = vmatprep.mubr.bf16.mxu0 0
    %3178 = vmatmul.mubr.bf16.gmra.mrb[0].mxu0 %v3140
    %v3179 = vpop.f32.mrb[0].mxu0
    %v3180 = vadd.f32 0.0, %v3179
    %v3181 = vpop.f32.mrb[0].mxu0
    %v3182 = vpop.f32.mrb[0].mxu0
    %v3183 = vpop.f32.mrb[0].mxu0
    %3184 = vdwg.mxu0
    %v3186 = vsel %vm2837, %v3017, 0
    %v3189 = vsel %vm3049, %v3033, 0
    %3191 = vmatprep.subr.bf16.mxu0 0
    %3192 = vmatpush1.bf16.msra.mxu0 %v3189
    %3193 = vmatprep.subr.bf16.mxu0 0
    %3194 = vmatpush1.bf16.msra.mxu0 0
    %3195 = vmatprep.subr.bf16.mxu0 0
    %3196 = vmatpush1.bf16.msra.mxu0 0
    %3197 = vmatprep.subr.bf16.mxu0 0
    %3198 = vmatpush1.bf16.msra.mxu0 0
    %3199 = vmatprep.subr.bf16.mxu0 0
    %3200 = vmatpush1.bf16.msra.mxu0 0
    %3201 = vmatprep.subr.bf16.mxu0 0
    %3202 = vmatpush1.bf16.msra.mxu0 0
    %3203 = vmatprep.subr.bf16.mxu0 0
    %3204 = vmatpush1.bf16.msra.mxu0 0
    %3205 = vmatprep.subr.bf16.mxu0 0
    %3206 = vmatpush1.bf16.msra.mxu0 0
    %3207 = vmatprep.subr.bf16.mxu0 0
    %3208 = vmatpush1.bf16.msra.mxu0 0
    %3209 = vmatprep.subr.bf16.mxu0 0
    %3210 = vmatpush1.bf16.msra.mxu0 0
    %3211 = vmatprep.subr.bf16.mxu0 0
    %3212 = vmatpush1.bf16.msra.mxu0 0
    %3213 = vmatprep.subr.bf16.mxu0 0
    %3214 = vmatpush1.bf16.msra.mxu0 0
    %3215 = vmatprep.subr.bf16.mxu0 0
    %3216 = vmatpush1.bf16.msra.mxu0 0
    %3217 = vmatprep.subr.bf16.mxu0 0
    %3218 = vmatpush1.bf16.msra.mxu0 0
    %3219 = vmatprep.subr.bf16.mxu0 0
    %3220 = vmatpush1.bf16.msra.mxu0 0
    %3221 = vmatprep.subr.bf16.mxu0 0
    %3222 = vmatpush1.bf16.msra.mxu0 0
    %3223 = vmatprep.mubr.bf16.mxu0 0
    %3224 = vmatmul.mubr.bf16.gmra.mrb[0].mxu0 %v3186
    %v3225 = vpop.f32.mrb[0].mxu0
    %v3226 = vadd.f32 0.0, %v3225
    %v3227 = vpop.f32.mrb[0].mxu0
    %v3228 = vpop.f32.mrb[0].mxu0
    %v3229 = vpop.f32.mrb[0].mxu0
    %3230 = vdwg.mxu0
    %v3232 = vsel %vm2837, %v3018, 0
    %v3235 = vsel %vm3049, %v3034, 0
    %3237 = vmatprep.subr.bf16.mxu0 0
    %3238 = vmatpush1.bf16.msra.mxu0 %v3235
    %3239 = vmatprep.subr.bf16.mxu0 0
    %3240 = vmatpush1.bf16.msra.mxu0 0
    %3241 = vmatprep.subr.bf16.mxu0 0
    %3242 = vmatpush1.bf16.msra.mxu0 0
    %3243 = vmatprep.subr.bf16.mxu0 0
    %3244 = vmatpush1.bf16.msra.mxu0 0
    %3245 = vmatprep.subr.bf16.mxu0 0
    %3246 = vmatpush1.bf16.msra.mxu0 0
    %3247 = vmatprep.subr.bf16.mxu0 0
    %3248 = vmatpush1.bf16.msra.mxu0 0
    %3249 = vmatprep.subr.bf16.mxu0 0
    %3250 = vmatpush1.bf16.msra.mxu0 0
    %3251 = vmatprep.subr.bf16.mxu0 0
    %3252 = vmatpush1.bf16.msra.mxu0 0
    %3253 = vmatprep.subr.bf16.mxu0 0
    %3254 = vmatpush1.bf16.msra.mxu0 0
    %3255 = vmatprep.subr.bf16.mxu0 0
    %3256 = vmatpush1.bf16.msra.mxu0 0
    %3257 = vmatprep.subr.bf16.mxu0 0
    %3258 = vmatpush1.bf16.msra.mxu0 0
    %3259 = vmatprep.subr.bf16.mxu0 0
    %3260 = vmatpush1.bf16.msra.mxu0 0
    %3261 = vmatprep.subr.bf16.mxu0 0
    %3262 = vmatpush1.bf16.msra.mxu0 0
    %3263 = vmatprep.subr.bf16.mxu0 0
    %3264 = vmatpush1.bf16.msra.mxu0 0
    %3265 = vmatprep.subr.bf16.mxu0 0
    %3266 = vmatpush1.bf16.msra.mxu0 0
    %3267 = vmatprep.subr.bf16.mxu0 0
    %3268 = vmatpush1.bf16.msra.mxu0 0
    %3269 = vmatprep.mubr.bf16.mxu0 0
    %3270 = vmatmul.mubr.bf16.gmra.mrb[0].mxu0 %v3232
    %v3271 = vpop.f32.mrb[0].mxu0
    %v3272 = vadd.f32 0.0, %v3271
    %v3273 = vpop.f32.mrb[0].mxu0
    %v3274 = vpop.f32.mrb[0].mxu0
    %v3275 = vpop.f32.mrb[0].mxu0
    %3276 = vdwg.mxu0
    %v3278 = vsel %vm2837, %v3019, 0
    %v3281 = vsel %vm3049, %v3035, 0
    %3283 = vmatprep.subr.bf16.mxu0 0
    %3284 = vmatpush1.bf16.msra.mxu0 %v3281
    %3285 = vmatprep.subr.bf16.mxu0 0
    %3286 = vmatpush1.bf16.msra.mxu0 0
    %3287 = vmatprep.subr.bf16.mxu0 0
    %3288 = vmatpush1.bf16.msra.mxu0 0
    %3289 = vmatprep.subr.bf16.mxu0 0
    %3290 = vmatpush1.bf16.msra.mxu0 0
    %3291 = vmatprep.subr.bf16.mxu0 0
    %3292 = vmatpush1.bf16.msra.mxu0 0
    %3293 = vmatprep.subr.bf16.mxu0 0
    %3294 = vmatpush1.bf16.msra.mxu0 0
    %3295 = vmatprep.subr.bf16.mxu0 0
    %3296 = vmatpush1.bf16.msra.mxu0 0
    %3297 = vmatprep.subr.bf16.mxu0 0
    %3298 = vmatpush1.bf16.msra.mxu0 0
    %3299 = vmatprep.subr.bf16.mxu0 0
    %3300 = vmatpush1.bf16.msra.mxu0 0
    %3301 = vmatprep.subr.bf16.mxu0 0
    %3302 = vmatpush1.bf16.msra.mxu0 0
    %3303 = vmatprep.subr.bf16.mxu0 0
    %3304 = vmatpush1.bf16.msra.mxu0 0
    %3305 = vmatprep.subr.bf16.mxu0 0
    %3306 = vmatpush1.bf16.msra.mxu0 0
    %3307 = vmatprep.subr.bf16.mxu0 0
    %3308 = vmatpush1.bf16.msra.mxu0 0
    %3309 = vmatprep.subr.bf16.mxu0 0
    %3310 = vmatpush1.bf16.msra.mxu0 0
    %3311 = vmatprep.subr.bf16.mxu0 0
    %3312 = vmatpush1.bf16.msra.mxu0 0
    %3313 = vmatprep.subr.bf16.mxu0 0
    %3314 = vmatpush1.bf16.msra.mxu0 0
    %3315 = vmatprep.mubr.bf16.mxu0 0
    %3316 = vmatmul.mubr.bf16.gmra.mrb[0].mxu0 %v3278
    %v3317 = vpop.f32.mrb[0].mxu0
    %v3318 = vadd.f32 0.0, %v3317
    %v3319 = vpop.f32.mrb[0].mxu0
    %v3320 = vpop.f32.mrb[0].mxu0
    %v3321 = vpop.f32.mrb[0].mxu0
    %3322 = vdwg.mxu0
    %v3324 = vsel %vm2837, %v3020, 0
    %v3327 = vsel %vm3049, %v3036, 0
    %3329 = vmatprep.subr.bf16.mxu0 0
    %3330 = vmatpush1.bf16.msra.mxu0 %v3327
    %3331 = vmatprep.subr.bf16.mxu0 0
    %3332 = vmatpush1.bf16.msra.mxu0 0
    %3333 = vmatprep.subr.bf16.mxu0 0
    %3334 = vmatpush1.bf16.msra.mxu0 0
    %3335 = vmatprep.subr.bf16.mxu0 0
    %3336 = vmatpush1.bf16.msra.mxu0 0
    %3337 = vmatprep.subr.bf16.mxu0 0
    %3338 = vmatpush1.bf16.msra.mxu0 0
    %3339 = vmatprep.subr.bf16.mxu0 0
    %3340 = vmatpush1.bf16.msra.mxu0 0
    %3341 = vmatprep.subr.bf16.mxu0 0
    %3342 = vmatpush1.bf16.msra.mxu0 0
    %3343 = vmatprep.subr.bf16.mxu0 0
    %3344 = vmatpush1.bf16.msra.mxu0 0
    %3345 = vmatprep.subr.bf16.mxu0 0
    %3346 = vmatpush1.bf16.msra.mxu0 0
    %3347 = vmatprep.subr.bf16.mxu0 0
    %3348 = vmatpush1.bf16.msra.mxu0 0
    %3349 = vmatprep.subr.bf16.mxu0 0
    %3350 = vmatpush1.bf16.msra.mxu0 0
    %3351 = vmatprep.subr.bf16.mxu0 0
    %3352 = vmatpush1.bf16.msra.mxu0 0
    %3353 = vmatprep.subr.bf16.mxu0 0
    %3354 = vmatpush1.bf16.msra.mxu0 0
    %3355 = vmatprep.subr.bf16.mxu0 0
    %3356 = vmatpush1.bf16.msra.mxu0 0
    %3357 = vmatprep.subr.bf16.mxu0 0
    %3358 = vmatpush1.bf16.msra.mxu0 0
    %3359 = vmatprep.subr.bf16.mxu0 0
    %3360 = vmatpush1.bf16.msra.mxu0 0
    %3361 = vmatprep.mubr.bf16.mxu0 0
    %3362 = vmatmul.mubr.bf16.gmra.mrb[0].mxu0 %v3324
    %v3363 = vpop.f32.mrb[0].mxu0
    %v3364 = vadd.f32 0.0, %v3363
    %v3365 = vpop.f32.mrb[0].mxu0
    %v3366 = vpop.f32.mrb[0].mxu0
    %v3367 = vpop.f32.mrb[0].mxu0
    %3368 = vdwg.mxu0
    %v3370 = vsel %vm2837, %v3021, 0
    %v3373 = vsel %vm3049, %v3037, 0
    %3375 = vmatprep.subr.bf16.mxu0 0
    %3376 = vmatpush1.bf16.msra.mxu0 %v3373
    %3377 = vmatprep.subr.bf16.mxu0 0
    %3378 = vmatpush1.bf16.msra.mxu0 0
    %3379 = vmatprep.subr.bf16.mxu0 0
    %3380 = vmatpush1.bf16.msra.mxu0 0
    %3381 = vmatprep.subr.bf16.mxu0 0
    %3382 = vmatpush1.bf16.msra.mxu0 0
    %3383 = vmatprep.subr.bf16.mxu0 0
    %3384 = vmatpush1.bf16.msra.mxu0 0
    %3385 = vmatprep.subr.bf16.mxu0 0
    %3386 = vmatpush1.bf16.msra.mxu0 0
    %3387 = vmatprep.subr.bf16.mxu0 0
    %3388 = vmatpush1.bf16.msra.mxu0 0
    %3389 = vmatprep.subr.bf16.mxu0 0
    %3390 = vmatpush1.bf16.msra.mxu0 0
    %3391 = vmatprep.subr.bf16.mxu0 0
    %3392 = vmatpush1.bf16.msra.mxu0 0
    %3393 = vmatprep.subr.bf16.mxu0 0
    %3394 = vmatpush1.bf16.msra.mxu0 0
    %3395 = vmatprep.subr.bf16.mxu0 0
    %3396 = vmatpush1.bf16.msra.mxu0 0
    %3397 = vmatprep.subr.bf16.mxu0 0
    %3398 = vmatpush1.bf16.msra.mxu0 0
    %3399 = vmatprep.subr.bf16.mxu0 0
    %3400 = vmatpush1.bf16.msra.mxu0 0
    %3401 = vmatprep.subr.bf16.mxu0 0
    %3402 = vmatpush1.bf16.msra.mxu0 0
    %3403 = vmatprep.subr.bf16.mxu0 0
    %3404 = vmatpush1.bf16.msra.mxu0 0
    %3405 = vmatprep.subr.bf16.mxu0 0
    %3406 = vmatpush1.bf16.msra.mxu0 0
    %3407 = vmatprep.mubr.bf16.mxu0 0
    %3408 = vmatmul.mubr.bf16.gmra.mrb[0].mxu0 %v3370
    %v3409 = vpop.f32.mrb[0].mxu0
    %v3410 = vadd.f32 0.0, %v3409
    %v3411 = vpop.f32.mrb[0].mxu0
    %v3412 = vpop.f32.mrb[0].mxu0
    %v3413 = vpop.f32.mrb[0].mxu0
    %3414 = vdwg.mxu0
    %v3416 = vsel %vm2837, %v3022, 0
    %v3419 = vsel %vm3049, %v3038, 0
    %3421 = vmatprep.subr.bf16.mxu0 0
    %3422 = vmatpush1.bf16.msra.mxu0 %v3419
    %3423 = vmatprep.subr.bf16.mxu0 0
    %3424 = vmatpush1.bf16.msra.mxu0 0
    %3425 = vmatprep.subr.bf16.mxu0 0
    %3426 = vmatpush1.bf16.msra.mxu0 0
    %3427 = vmatprep.subr.bf16.mxu0 0
    %3428 = vmatpush1.bf16.msra.mxu0 0
    %3429 = vmatprep.subr.bf16.mxu0 0
    %3430 = vmatpush1.bf16.msra.mxu0 0
    %3431 = vmatprep.subr.bf16.mxu0 0
    %3432 = vmatpush1.bf16.msra.mxu0 0
    %3433 = vmatprep.subr.bf16.mxu0 0
    %3434 = vmatpush1.bf16.msra.mxu0 0
    %3435 = vmatprep.subr.bf16.mxu0 0
    %3436 = vmatpush1.bf16.msra.mxu0 0
    %3437 = vmatprep.subr.bf16.mxu0 0
    %3438 = vmatpush1.bf16.msra.mxu0 0
    %3439 = vmatprep.subr.bf16.mxu0 0
    %3440 = vmatpush1.bf16.msra.mxu0 0
    %3441 = vmatprep.subr.bf16.mxu0 0
    %3442 = vmatpush1.bf16.msra.mxu0 0
    %3443 = vmatprep.subr.bf16.mxu0 0
    %3444 = vmatpush1.bf16.msra.mxu0 0
    %3445 = vmatprep.subr.bf16.mxu0 0
    %3446 = vmatpush1.bf16.msra.mxu0 0
    %3447 = vmatprep.subr.bf16.mxu0 0
    %3448 = vmatpush1.bf16.msra.mxu0 0
    %3449 = vmatprep.subr.bf16.mxu0 0
    %3450 = vmatpush1.bf16.msra.mxu0 0
    %3451 = vmatprep.subr.bf16.mxu0 0
    %3452 = vmatpush1.bf16.msra.mxu0 0
    %3453 = vmatprep.mubr.bf16.mxu0 0
    %3454 = vmatmul.mubr.bf16.gmra.mrb[0].mxu0 %v3416
    %v3455 = vpop.f32.mrb[0].mxu0
    %v3456 = vadd.f32 0.0, %v3455
    %v3457 = vpop.f32.mrb[0].mxu0
    %v3458 = vpop.f32.mrb[0].mxu0
    %v3459 = vpop.f32.mrb[0].mxu0
    %3460 = vdwg.mxu0
    %v3462 = vsel %vm2837, %v3023, 0
    %v3465 = vsel %vm3049, %v3039, 0
    %3467 = vmatprep.subr.bf16.mxu0 0
    %3468 = vmatpush1.bf16.msra.mxu0 %v3465
    %3469 = vmatprep.subr.bf16.mxu0 0
    %3470 = vmatpush1.bf16.msra.mxu0 0
    %3471 = vmatprep.subr.bf16.mxu0 0
    %3472 = vmatpush1.bf16.msra.mxu0 0
    %3473 = vmatprep.subr.bf16.mxu0 0
    %3474 = vmatpush1.bf16.msra.mxu0 0
    %3475 = vmatprep.subr.bf16.mxu0 0
    %3476 = vmatpush1.bf16.msra.mxu0 0
    %3477 = vmatprep.subr.bf16.mxu0 0
    %3478 = vmatpush1.bf16.msra.mxu0 0
    %3479 = vmatprep.subr.bf16.mxu0 0
    %3480 = vmatpush1.bf16.msra.mxu0 0
    %3481 = vmatprep.subr.bf16.mxu0 0
    %3482 = vmatpush1.bf16.msra.mxu0 0
    %3483 = vmatprep.subr.bf16.mxu0 0
    %3484 = vmatpush1.bf16.msra.mxu0 0
    %3485 = vmatprep.subr.bf16.mxu0 0
    %3486 = vmatpush1.bf16.msra.mxu0 0
    %3487 = vmatprep.subr.bf16.mxu0 0
    %3488 = vmatpush1.bf16.msra.mxu0 0
    %3489 = vmatprep.subr.bf16.mxu0 0
    %3490 = vmatpush1.bf16.msra.mxu0 0
    %3491 = vmatprep.subr.bf16.mxu0 0
    %3492 = vmatpush1.bf16.msra.mxu0 0
    %3493 = vmatprep.subr.bf16.mxu0 0
    %3494 = vmatpush1.bf16.msra.mxu0 0
    %3495 = vmatprep.subr.bf16.mxu0 0
    %3496 = vmatpush1.bf16.msra.mxu0 0
    %3497 = vmatprep.subr.bf16.mxu0 0
    %3498 = vmatpush1.bf16.msra.mxu0 0
    %3499 = vmatprep.mubr.bf16.mxu0 0
    %3500 = vmatmul.mubr.bf16.gmra.mrb[0].mxu0 %v3462
    %v3501 = vpop.f32.mrb[0].mxu0
    %v3502 = vadd.f32 0.0, %v3501
    %v3503 = vpop.f32.mrb[0].mxu0
    %v3504 = vpop.f32.mrb[0].mxu0
    %v3505 = vpop.f32.mrb[0].mxu0
    %3506 = vdwg.mxu0
    %v3508 = vsel %vm2837, %v3024, 0
    %v3511 = vsel %vm3049, %v3040, 0
    %3513 = vmatprep.subr.bf16.mxu0 0
    %3514 = vmatpush1.bf16.msra.mxu0 %v3511
    %3515 = vmatprep.subr.bf16.mxu0 0
    %3516 = vmatpush1.bf16.msra.mxu0 0
    %3517 = vmatprep.subr.bf16.mxu0 0
    %3518 = vmatpush1.bf16.msra.mxu0 0
    %3519 = vmatprep.subr.bf16.mxu0 0
    %3520 = vmatpush1.bf16.msra.mxu0 0
    %3521 = vmatprep.subr.bf16.mxu0 0
    %3522 = vmatpush1.bf16.msra.mxu0 0
    %3523 = vmatprep.subr.bf16.mxu0 0
    %3524 = vmatpush1.bf16.msra.mxu0 0
    %3525 = vmatprep.subr.bf16.mxu0 0
    %3526 = vmatpush1.bf16.msra.mxu0 0
    %3527 = vmatprep.subr.bf16.mxu0 0
    %3528 = vmatpush1.bf16.msra.mxu0 0
    %3529 = vmatprep.subr.bf16.mxu0 0
    %3530 = vmatpush1.bf16.msra.mxu0 0
    %3531 = vmatprep.subr.bf16.mxu0 0
    %3532 = vmatpush1.bf16.msra.mxu0 0
    %3533 = vmatprep.subr.bf16.mxu0 0
    %3534 = vmatpush1.bf16.msra.mxu0 0
    %3535 = vmatprep.subr.bf16.mxu0 0
    %3536 = vmatpush1.bf16.msra.mxu0 0
    %3537 = vmatprep.subr.bf16.mxu0 0
    %3538 = vmatpush1.bf16.msra.mxu0 0
    %3539 = vmatprep.subr.bf16.mxu0 0
    %3540 = vmatpush1.bf16.msra.mxu0 0
    %3541 = vmatprep.subr.bf16.mxu0 0
    %3542 = vmatpush1.bf16.msra.mxu0 0
    %3543 = vmatprep.subr.bf16.mxu0 0
    %3544 = vmatpush1.bf16.msra.mxu0 0
    %3545 = vmatprep.mubr.bf16.mxu0 0
    %3546 = vmatmul.mubr.bf16.gmra.mrb[0].mxu0 %v3508
    %v3547 = vpop.f32.mrb[0].mxu0
    %v3548 = vadd.f32 0.0, %v3547
    %v3549 = vpop.f32.mrb[0].mxu0
    %v3550 = vpop.f32.mrb[0].mxu0
    %v3551 = vpop.f32.mrb[0].mxu0
    %3552 = vdwg.mxu0
    %v3554 = vsel %vm2837, %v3025, 0
    %v3557 = vsel %vm3049, %v3041, 0
    %3559 = vmatprep.subr.bf16.mxu0 0
    %3560 = vmatpush1.bf16.msra.mxu0 %v3557
    %3561 = vmatprep.subr.bf16.mxu0 0
    %3562 = vmatpush1.bf16.msra.mxu0 0
    %3563 = vmatprep.subr.bf16.mxu0 0
    %3564 = vmatpush1.bf16.msra.mxu0 0
    %3565 = vmatprep.subr.bf16.mxu0 0
    %3566 = vmatpush1.bf16.msra.mxu0 0
    %3567 = vmatprep.subr.bf16.mxu0 0
    %3568 = vmatpush1.bf16.msra.mxu0 0
    %3569 = vmatprep.subr.bf16.mxu0 0
    %3570 = vmatpush1.bf16.msra.mxu0 0
    %3571 = vmatprep.subr.bf16.mxu0 0
    %3572 = vmatpush1.bf16.msra.mxu0 0
    %3573 = vmatprep.subr.bf16.mxu0 0
    %3574 = vmatpush1.bf16.msra.mxu0 0
    %3575 = vmatprep.subr.bf16.mxu0 0
    %3576 = vmatpush1.bf16.msra.mxu0 0
    %3577 = vmatprep.subr.bf16.mxu0 0
    %3578 = vmatpush1.bf16.msra.mxu0 0
    %3579 = vmatprep.subr.bf16.mxu0 0
    %3580 = vmatpush1.bf16.msra.mxu0 0
    %3581 = vmatprep.subr.bf16.mxu0 0
    %3582 = vmatpush1.bf16.msra.mxu0 0
    %3583 = vmatprep.subr.bf16.mxu0 0
    %3584 = vmatpush1.bf16.msra.mxu0 0
    %3585 = vmatprep.subr.bf16.mxu0 0
    %3586 = vmatpush1.bf16.msra.mxu0 0
    %3587 = vmatprep.subr.bf16.mxu0 0
    %3588 = vmatpush1.bf16.msra.mxu0 0
    %3589 = vmatprep.subr.bf16.mxu0 0
    %3590 = vmatpush1.bf16.msra.mxu0 0
    %3591 = vmatprep.mubr.bf16.mxu0 0
    %3592 = vmatmul.mubr.bf16.gmra.mrb[0].mxu0 %v3554
    %v3593 = vpop.f32.mrb[0].mxu0
    %v3594 = vadd.f32 0.0, %v3593
    %v3595 = vpop.f32.mrb[0].mxu0
    %v3596 = vpop.f32.mrb[0].mxu0
    %v3597 = vpop.f32.mrb[0].mxu0
    %3598 = vdwg.mxu0
    %v3600 = vsel %vm2837, %v3026, 0
    %v3603 = vsel %vm3049, %v3042, 0
    %3605 = vmatprep.subr.bf16.mxu0 0
    %3606 = vmatpush1.bf16.msra.mxu0 %v3603
    %3607 = vmatprep.subr.bf16.mxu0 0
    %3608 = vmatpush1.bf16.msra.mxu0 0
    %3609 = vmatprep.subr.bf16.mxu0 0
    %3610 = vmatpush1.bf16.msra.mxu0 0
    %3611 = vmatprep.subr.bf16.mxu0 0
    %3612 = vmatpush1.bf16.msra.mxu0 0
    %3613 = vmatprep.subr.bf16.mxu0 0
    %3614 = vmatpush1.bf16.msra.mxu0 0
    %3615 = vmatprep.subr.bf16.mxu0 0
    %3616 = vmatpush1.bf16.msra.mxu0 0
    %3617 = vmatprep.subr.bf16.mxu0 0
    %3618 = vmatpush1.bf16.msra.mxu0 0
    %3619 = vmatprep.subr.bf16.mxu0 0
    %3620 = vmatpush1.bf16.msra.mxu0 0
    %3621 = vmatprep.subr.bf16.mxu0 0
    %3622 = vmatpush1.bf16.msra.mxu0 0
    %3623 = vmatprep.subr.bf16.mxu0 0
    %3624 = vmatpush1.bf16.msra.mxu0 0
    %3625 = vmatprep.subr.bf16.mxu0 0
    %3626 = vmatpush1.bf16.msra.mxu0 0
    %3627 = vmatprep.subr.bf16.mxu0 0
    %3628 = vmatpush1.bf16.msra.mxu0 0
    %3629 = vmatprep.subr.bf16.mxu0 0
    %3630 = vmatpush1.bf16.msra.mxu0 0
    %3631 = vmatprep.subr.bf16.mxu0 0
    %3632 = vmatpush1.bf16.msra.mxu0 0
    %3633 = vmatprep.subr.bf16.mxu0 0
    %3634 = vmatpush1.bf16.msra.mxu0 0
    %3635 = vmatprep.subr.bf16.mxu0 0
    %3636 = vmatpush1.bf16.msra.mxu0 0
    %3637 = vmatprep.mubr.bf16.mxu0 0
    %3638 = vmatmul.mubr.bf16.gmra.mrb[0].mxu0 %v3600
    %v3639 = vpop.f32.mrb[0].mxu0
    %v3640 = vadd.f32 0.0, %v3639
    %v3641 = vpop.f32.mrb[0].mxu0
    %v3642 = vpop.f32.mrb[0].mxu0
    %v3643 = vpop.f32.mrb[0].mxu0
    %3644 = vdwg.mxu0
    %v3646 = vsel %vm2837, %v3027, 0
    %v3649 = vsel %vm3049, %v3043, 0
    %3651 = vmatprep.subr.bf16.mxu0 0
    %3652 = vmatpush1.bf16.msra.mxu0 %v3649
    %3653 = vmatprep.subr.bf16.mxu0 0
    %3654 = vmatpush1.bf16.msra.mxu0 0
    %3655 = vmatprep.subr.bf16.mxu0 0
    %3656 = vmatpush1.bf16.msra.mxu0 0
    %3657 = vmatprep.subr.bf16.mxu0 0
    %3658 = vmatpush1.bf16.msra.mxu0 0
    %3659 = vmatprep.subr.bf16.mxu0 0
    %3660 = vmatpush1.bf16.msra.mxu0 0
    %3661 = vmatprep.subr.bf16.mxu0 0
    %3662 = vmatpush1.bf16.msra.mxu0 0
    %3663 = vmatprep.subr.bf16.mxu0 0
    %3664 = vmatpush1.bf16.msra.mxu0 0
    %3665 = vmatprep.subr.bf16.mxu0 0
    %3666 = vmatpush1.bf16.msra.mxu0 0
    %3667 = vmatprep.subr.bf16.mxu0 0
    %3668 = vmatpush1.bf16.msra.mxu0 0
    %3669 = vmatprep.subr.bf16.mxu0 0
    %3670 = vmatpush1.bf16.msra.mxu0 0
    %3671 = vmatprep.subr.bf16.mxu0 0
    %3672 = vmatpush1.bf16.msra.mxu0 0
    %3673 = vmatprep.subr.bf16.mxu0 0
    %3674 = vmatpush1.bf16.msra.mxu0 0
    %3675 = vmatprep.subr.bf16.mxu0 0
    %3676 = vmatpush1.bf16.msra.mxu0 0
    %3677 = vmatprep.subr.bf16.mxu0 0
    %3678 = vmatpush1.bf16.msra.mxu0 0
    %3679 = vmatprep.subr.bf16.mxu0 0
    %3680 = vmatpush1.bf16.msra.mxu0 0
    %3681 = vmatprep.subr.bf16.mxu0 0
    %3682 = vmatpush1.bf16.msra.mxu0 0
    %3683 = vmatprep.mubr.bf16.mxu0 0
    %3684 = vmatmul.mubr.bf16.gmra.mrb[0].mxu0 %v3646
    %v3685 = vpop.f32.mrb[0].mxu0
    %v3686 = vadd.f32 0.0, %v3685
    %v3687 = vpop.f32.mrb[0].mxu0
    %v3688 = vpop.f32.mrb[0].mxu0
    %v3689 = vpop.f32.mrb[0].mxu0
    %3690 = vdwg.mxu0
    %v3692 = vsel %vm2837, %v3028, 0
    %v3695 = vsel %vm3049, %v3044, 0
    %3697 = vmatprep.subr.bf16.mxu0 0
    %3698 = vmatpush1.bf16.msra.mxu0 %v3695
    %3699 = vmatprep.subr.bf16.mxu0 0
    %3700 = vmatpush1.bf16.msra.mxu0 0
    %3701 = vmatprep.subr.bf16.mxu0 0
    %3702 = vmatpush1.bf16.msra.mxu0 0
    %3703 = vmatprep.subr.bf16.mxu0 0
    %3704 = vmatpush1.bf16.msra.mxu0 0
    %3705 = vmatprep.subr.bf16.mxu0 0
    %3706 = vmatpush1.bf16.msra.mxu0 0
    %3707 = vmatprep.subr.bf16.mxu0 0
    %3708 = vmatpush1.bf16.msra.mxu0 0
    %3709 = vmatprep.subr.bf16.mxu0 0
    %3710 = vmatpush1.bf16.msra.mxu0 0
    %3711 = vmatprep.subr.bf16.mxu0 0
    %3712 = vmatpush1.bf16.msra.mxu0 0
    %3713 = vmatprep.subr.bf16.mxu0 0
    %3714 = vmatpush1.bf16.msra.mxu0 0
    %3715 = vmatprep.subr.bf16.mxu0 0
    %3716 = vmatpush1.bf16.msra.mxu0 0
    %3717 = vmatprep.subr.bf16.mxu0 0
    %3718 = vmatpush1.bf16.msra.mxu0 0
    %3719 = vmatprep.subr.bf16.mxu0 0
    %3720 = vmatpush1.bf16.msra.mxu0 0
    %3721 = vmatprep.subr.bf16.mxu0 0
    %3722 = vmatpush1.bf16.msra.mxu0 0
    %3723 = vmatprep.subr.bf16.mxu0 0
    %3724 = vmatpush1.bf16.msra.mxu0 0
    %3725 = vmatprep.subr.bf16.mxu0 0
    %3726 = vmatpush1.bf16.msra.mxu0 0
    %3727 = vmatprep.subr.bf16.mxu0 0
    %3728 = vmatpush1.bf16.msra.mxu0 0
    %3729 = vmatprep.mubr.bf16.mxu0 0
    %3730 = vmatmul.mubr.bf16.gmra.mrb[0].mxu0 %v3692
    %v3731 = vpop.f32.mrb[0].mxu0
    %v3732 = vadd.f32 0.0, %v3731
    %v3733 = vpop.f32.mrb[0].mxu0
    %v3734 = vpop.f32.mrb[0].mxu0
    %v3735 = vpop.f32.mrb[0].mxu0
    %3736 = vdwg.mxu0
    %v3738 = vsel %vm2837, %v3029, 0
    %v3741 = vsel %vm3049, %v3045, 0
    %3743 = vmatprep.subr.bf16.mxu0 0
    %3744 = vmatpush1.bf16.msra.mxu0 %v3741
    %3745 = vmatprep.subr.bf16.mxu0 0
    %3746 = vmatpush1.bf16.msra.mxu0 0
    %3747 = vmatprep.subr.bf16.mxu0 0
    %3748 = vmatpush1.bf16.msra.mxu0 0
    %3749 = vmatprep.subr.bf16.mxu0 0
    %3750 = vmatpush1.bf16.msra.mxu0 0
    %3751 = vmatprep.subr.bf16.mxu0 0
    %3752 = vmatpush1.bf16.msra.mxu0 0
    %3753 = vmatprep.subr.bf16.mxu0 0
    %3754 = vmatpush1.bf16.msra.mxu0 0
    %3755 = vmatprep.subr.bf16.mxu0 0
    %3756 = vmatpush1.bf16.msra.mxu0 0
    %3757 = vmatprep.subr.bf16.mxu0 0
    %3758 = vmatpush1.bf16.msra.mxu0 0
    %3759 = vmatprep.subr.bf16.mxu0 0
    %3760 = vmatpush1.bf16.msra.mxu0 0
    %3761 = vmatprep.subr.bf16.mxu0 0
    %3762 = vmatpush1.bf16.msra.mxu0 0
    %3763 = vmatprep.subr.bf16.mxu0 0
    %3764 = vmatpush1.bf16.msra.mxu0 0
    %3765 = vmatprep.subr.bf16.mxu0 0
    %3766 = vmatpush1.bf16.msra.mxu0 0
    %3767 = vmatprep.subr.bf16.mxu0 0
    %3768 = vmatpush1.bf16.msra.mxu0 0
    %3769 = vmatprep.subr.bf16.mxu0 0
    %3770 = vmatpush1.bf16.msra.mxu0 0
    %3771 = vmatprep.subr.bf16.mxu0 0
    %3772 = vmatpush1.bf16.msra.mxu0 0
    %3773 = vmatprep.subr.bf16.mxu0 0
    %3774 = vmatpush1.bf16.msra.mxu0 0
    %3775 = vmatprep.mubr.bf16.mxu0 0
    %3776 = vmatmul.mubr.bf16.gmra.mrb[0].mxu0 %v3738
    %v3777 = vpop.f32.mrb[0].mxu0
    %v3778 = vadd.f32 0.0, %v3777
    %v3779 = vpop.f32.mrb[0].mxu0
    %v3780 = vpop.f32.mrb[0].mxu0
    %v3781 = vpop.f32.mrb[0].mxu0
    %3782 = vdwg.mxu0
    %v3783 = vcombine.low %v3088, %v3180
    %v3784 = vcombine.high %v3088, %v3180
    %v3786 = vunpack.c.l.s4 1983009808
    %v3787 = vunpack.c.0.s8 %v3786
    %v3788 = vlaneseq
    %v3789 = vshrl.u32 %v3788, 7
    %v3790 = vsub.s32 %v3787, %v3789
    %v3791 = vrot.slane %v3783, %v3790
    %v3793 = vunpack.c.l.s4 1983009808
    %v3794 = vunpack.c.0.s8 %v3793
    %v3795 = vlaneseq
    %v3796 = vshrl.u32 %v3795, 7
    %v3797 = vsub.s32 %v3794, %v3796
    %v3798 = vrot.slane %v3784, %v3797
    %v3799 = vcombine.low %v3134, %v3226
    %v3800 = vcombine.high %v3134, %v3226
    %v3802 = vunpack.c.l.s4 1983009808
    %v3803 = vunpack.c.0.s8 %v3802
    %v3804 = vlaneseq
    %v3805 = vshrl.u32 %v3804, 7
    %v3806 = vsub.s32 %v3803, %v3805
    %v3807 = vrot.slane %v3799, %v3806
    %v3809 = vunpack.c.l.s4 1983009808
    %v3810 = vunpack.c.0.s8 %v3809
    %v3811 = vlaneseq
    %v3812 = vshrl.u32 %v3811, 7
    %v3813 = vsub.s32 %v3810, %v3812
    %v3814 = vrot.slane %v3800, %v3813
    %v3815 = vcombine.low %v3791, %v3807
    %v3816 = vcombine.high %v3791, %v3807
    %v3818 = vunpack.c.l.s4 1934713408
    %v3819 = vunpack.c.0.s8 %v3818
    %v3820 = vlaneseq
    %v3821 = vshrl.u32 %v3820, 7
    %v3822 = vsub.s32 %v3819, %v3821
    %v3823 = vrot.slane %v3815, %v3822
    %v3825 = vunpack.c.l.s4 1934713408
    %v3826 = vunpack.c.0.s8 %v3825
    %v3827 = vlaneseq
    %v3828 = vshrl.u32 %v3827, 7
    %v3829 = vsub.s32 %v3826, %v3828
    %v3830 = vrot.slane %v3816, %v3829
    %v3831 = vcombine.low %v3798, %v3814
    %v3832 = vcombine.high %v3798, %v3814
    %v3834 = vunpack.c.l.s4 1934713408
    %v3835 = vunpack.c.0.s8 %v3834
    %v3836 = vlaneseq
    %v3837 = vshrl.u32 %v3836, 7
    %v3838 = vsub.s32 %v3835, %v3837
    %v3839 = vrot.slane %v3831, %v3838
    %v3841 = vunpack.c.l.s4 1934713408
    %v3842 = vunpack.c.0.s8 %v3841
    %v3843 = vlaneseq
    %v3844 = vshrl.u32 %v3843, 7
    %v3845 = vsub.s32 %v3842, %v3844
    %v3846 = vrot.slane %v3832, %v3845
    %v3847 = vcombine.high %v3823, 0.0
    %v3848 = vcombine.high %v3830, 0.0
    %v3849 = vcombine.high %v3839, 0.0
    %v3850 = vcombine.high %v3846, 0.0
    %v3851 = vcombine.low %v3272, %v3364
    %v3852 = vcombine.high %v3272, %v3364
    %v3854 = vunpack.c.l.s4 1983009808
    %v3855 = vunpack.c.0.s8 %v3854
    %v3856 = vlaneseq
    %v3857 = vshrl.u32 %v3856, 7
    %v3858 = vsub.s32 %v3855, %v3857
    %v3859 = vrot.slane %v3851, %v3858
    %v3861 = vunpack.c.l.s4 1983009808
    %v3862 = vunpack.c.0.s8 %v3861
    %v3863 = vlaneseq
    %v3864 = vshrl.u32 %v3863, 7
    %v3865 = vsub.s32 %v3862, %v3864
    %v3866 = vrot.slane %v3852, %v3865
    %v3867 = vcombine.low %v3318, %v3410
    %v3868 = vcombine.high %v3318, %v3410
    %v3870 = vunpack.c.l.s4 1983009808
    %v3871 = vunpack.c.0.s8 %v3870
    %v3872 = vlaneseq
    %v3873 = vshrl.u32 %v3872, 7
    %v3874 = vsub.s32 %v3871, %v3873
    %v3875 = vrot.slane %v3867, %v3874
    %v3877 = vunpack.c.l.s4 1983009808
    %v3878 = vunpack.c.0.s8 %v3877
    %v3879 = vlaneseq
    %v3880 = vshrl.u32 %v3879, 7
    %v3881 = vsub.s32 %v3878, %v3880
    %v3882 = vrot.slane %v3868, %v3881
    %v3883 = vcombine.low %v3859, %v3875
    %v3884 = vcombine.high %v3859, %v3875
    %v3886 = vunpack.c.l.s4 1934713408
    %v3887 = vunpack.c.0.s8 %v3886
    %v3888 = vlaneseq
    %v3889 = vshrl.u32 %v3888, 7
    %v3890 = vsub.s32 %v3887, %v3889
    %v3891 = vrot.slane %v3883, %v3890
    %v3893 = vunpack.c.l.s4 1934713408
    %v3894 = vunpack.c.0.s8 %v3893
    %v3895 = vlaneseq
    %v3896 = vshrl.u32 %v3895, 7
    %v3897 = vsub.s32 %v3894, %v3896
    %v3898 = vrot.slane %v3884, %v3897
    %v3899 = vcombine.low %v3866, %v3882
    %v3900 = vcombine.high %v3866, %v3882
    %v3902 = vunpack.c.l.s4 1934713408
    %v3903 = vunpack.c.0.s8 %v3902
    %v3904 = vlaneseq
    %v3905 = vshrl.u32 %v3904, 7
    %v3906 = vsub.s32 %v3903, %v3905
    %v3907 = vrot.slane %v3899, %v3906
    %v3909 = vunpack.c.l.s4 1934713408
    %v3910 = vunpack.c.0.s8 %v3909
    %v3911 = vlaneseq
    %v3912 = vshrl.u32 %v3911, 7
    %v3913 = vsub.s32 %v3910, %v3912
    %v3914 = vrot.slane %v3900, %v3913
    %v3915 = vcombine.high %v3891, 0.0
    %v3916 = vcombine.high %v3898, 0.0
    %v3917 = vcombine.high %v3907, 0.0
    %v3918 = vcombine.high %v3914, 0.0
    %v3919 = vcombine.low %v3456, %v3548
    %v3920 = vcombine.high %v3456, %v3548
    %v3922 = vunpack.c.l.s4 1983009808
    %v3923 = vunpack.c.0.s8 %v3922
    %v3924 = vlaneseq
    %v3925 = vshrl.u32 %v3924, 7
    %v3926 = vsub.s32 %v3923, %v3925
    %v3927 = vrot.slane %v3919, %v3926
    %v3929 = vunpack.c.l.s4 1983009808
    %v3930 = vunpack.c.0.s8 %v3929
    %v3931 = vlaneseq
    %v3932 = vshrl.u32 %v3931, 7
    %v3933 = vsub.s32 %v3930, %v3932
    %v3934 = vrot.slane %v3920, %v3933
    %v3935 = vcombine.low %v3502, %v3594
    %v3936 = vcombine.high %v3502, %v3594
    %v3938 = vunpack.c.l.s4 1983009808
    %v3939 = vunpack.c.0.s8 %v3938
    %v3940 = vlaneseq
    %v3941 = vshrl.u32 %v3940, 7
    %v3942 = vsub.s32 %v3939, %v3941
    %v3943 = vrot.slane %v3935, %v3942
    %v3945 = vunpack.c.l.s4 1983009808
    %v3946 = vunpack.c.0.s8 %v3945
    %v3947 = vlaneseq
    %v3948 = vshrl.u32 %v3947, 7
    %v3949 = vsub.s32 %v3946, %v3948
    %v3950 = vrot.slane %v3936, %v3949
    %v3951 = vcombine.low %v3927, %v3943
    %v3952 = vcombine.high %v3927, %v3943
    %v3954 = vunpack.c.l.s4 1934713408
    %v3955 = vunpack.c.0.s8 %v3954
    %v3956 = vlaneseq
    %v3957 = vshrl.u32 %v3956, 7
    %v3958 = vsub.s32 %v3955, %v3957
    %v3959 = vrot.slane %v3951, %v3958
    %v3961 = vunpack.c.l.s4 1934713408
    %v3962 = vunpack.c.0.s8 %v3961
    %v3963 = vlaneseq
    %v3964 = vshrl.u32 %v3963, 7
    %v3965 = vsub.s32 %v3962, %v3964
    %v3966 = vrot.slane %v3952, %v3965
    %v3967 = vcombine.low %v3934, %v3950
    %v3968 = vcombine.high %v3934, %v3950
    %v3970 = vunpack.c.l.s4 1934713408
    %v3971 = vunpack.c.0.s8 %v3970
    %v3972 = vlaneseq
    %v3973 = vshrl.u32 %v3972, 7
    %v3974 = vsub.s32 %v3971, %v3973
    %v3975 = vrot.slane %v3967, %v3974
    %v3977 = vunpack.c.l.s4 1934713408
    %v3978 = vunpack.c.0.s8 %v3977
    %v3979 = vlaneseq
    %v3980 = vshrl.u32 %v3979, 7
    %v3981 = vsub.s32 %v3978, %v3980
    %v3982 = vrot.slane %v3968, %v3981
    %v3983 = vcombine.high %v3959, 0.0
    %v3984 = vcombine.high %v3966, 0.0
    %v3985 = vcombine.high %v3975, 0.0
    %v3986 = vcombine.high %v3982, 0.0
    %v3987 = vcombine.low %v3640, %v3732
    %v3988 = vcombine.high %v3640, %v3732
    %v3990 = vunpack.c.l.s4 1983009808
    %v3991 = vunpack.c.0.s8 %v3990
    %v3992 = vlaneseq
    %v3993 = vshrl.u32 %v3992, 7
    %v3994 = vsub.s32 %v3991, %v3993
    %v3995 = vrot.slane %v3987, %v3994
    %v3997 = vunpack.c.l.s4 1983009808
    %v3998 = vunpack.c.0.s8 %v3997
    %v3999 = vlaneseq
    %v4000 = vshrl.u32 %v3999, 7
    %v4001 = vsub.s32 %v3998, %v4000
    %v4002 = vrot.slane %v3988, %v4001
    %v4003 = vcombine.low %v3686, %v3778
    %v4004 = vcombine.high %v3686, %v3778
    %v4006 = vunpack.c.l.s4 1983009808
    %v4007 = vunpack.c.0.s8 %v4006
    %v4008 = vlaneseq
    %v4009 = vshrl.u32 %v4008, 7
    %v4010 = vsub.s32 %v4007, %v4009
    %v4011 = vrot.slane %v4003, %v4010
    %v4013 = vunpack.c.l.s4 1983009808
    %v4014 = vunpack.c.0.s8 %v4013
    %v4015 = vlaneseq
    %v4016 = vshrl.u32 %v4015, 7
    %v4017 = vsub.s32 %v4014, %v4016
    %v4018 = vrot.slane %v4004, %v4017
    %v4019 = vcombine.low %v3995, %v4011
    %v4020 = vcombine.high %v3995, %v4011
    %v4022 = vunpack.c.l.s4 1934713408
    %v4023 = vunpack.c.0.s8 %v4022
    %v4024 = vlaneseq
    %v4025 = vshrl.u32 %v4024, 7
    %v4026 = vsub.s32 %v4023, %v4025
    %v4027 = vrot.slane %v4019, %v4026
    %v4029 = vunpack.c.l.s4 1934713408
    %v4030 = vunpack.c.0.s8 %v4029
    %v4031 = vlaneseq
    %v4032 = vshrl.u32 %v4031, 7
    %v4033 = vsub.s32 %v4030, %v4032
    %v4034 = vrot.slane %v4020, %v4033
    %v4035 = vcombine.low %v4002, %v4018
    %v4036 = vcombine.high %v4002, %v4018
    %v4038 = vunpack.c.l.s4 1934713408
    %v4039 = vunpack.c.0.s8 %v4038
    %v4040 = vlaneseq
    %v4041 = vshrl.u32 %v4040, 7
    %v4042 = vsub.s32 %v4039, %v4041
    %v4043 = vrot.slane %v4035, %v4042
    %v4045 = vunpack.c.l.s4 1934713408
    %v4046 = vunpack.c.0.s8 %v4045
    %v4047 = vlaneseq
    %v4048 = vshrl.u32 %v4047, 7
    %v4049 = vsub.s32 %v4046, %v4048
    %v4050 = vrot.slane %v4036, %v4049
    %v4051 = vcombine.high %v4027, 0.0
    %v4052 = vcombine.high %v4034, 0.0
    %v4053 = vcombine.high %v4043, 0.0
    %v4054 = vcombine.high %v4050, 0.0
    %v4055 = vcombine.low %v3823, %v3830
    %v4057 = vunpack.c.l.s4 1983009808
    %v4058 = vunpack.c.0.s8 %v4057
    %v4059 = vlaneseq
    %v4060 = vshrl.u32 %v4059, 7
    %v4061 = vsub.s32 %v4058, %v4060
    %v4062 = vrot.slane %v4055, %v4061
    %v4063 = vcombine.low %v3847, %v3848
    %v4065 = vunpack.c.l.s4 1983009808
    %v4066 = vunpack.c.0.s8 %v4065
    %v4067 = vlaneseq
    %v4068 = vshrl.u32 %v4067, 7
    %v4069 = vsub.s32 %v4066, %v4068
    %v4070 = vrot.slane %v4063, %v4069
    %v4071 = vcombine.low %v3839, %v3846
    %v4073 = vunpack.c.l.s4 1983009808
    %v4074 = vunpack.c.0.s8 %v4073
    %v4075 = vlaneseq
    %v4076 = vshrl.u32 %v4075, 7
    %v4077 = vsub.s32 %v4074, %v4076
    %v4078 = vrot.slane %v4071, %v4077
    %v4079 = vcombine.low %v3849, %v3850
    %v4081 = vunpack.c.l.s4 1983009808
    %v4082 = vunpack.c.0.s8 %v4081
    %v4083 = vlaneseq
    %v4084 = vshrl.u32 %v4083, 7
    %v4085 = vsub.s32 %v4082, %v4084
    %v4086 = vrot.slane %v4079, %v4085
    %v4087 = vcombine.low %v4062, %v4070
    %v4088 = vcombine.high %v4062, %v4070
    %v4090 = vunpack.c.l.s4 1934713408
    %v4091 = vunpack.c.0.s8 %v4090
    %v4092 = vlaneseq
    %v4093 = vshrl.u32 %v4092, 7
    %v4094 = vsub.s32 %v4091, %v4093
    %v4095 = vrot.slane %v4087, %v4094
    %v4097 = vunpack.c.l.s4 1934713408
    %v4098 = vunpack.c.0.s8 %v4097
    %v4099 = vlaneseq
    %v4100 = vshrl.u32 %v4099, 7
    %v4101 = vsub.s32 %v4098, %v4100
    %v4102 = vrot.slane %v4088, %v4101
    %v4103 = vcombine.low %v4078, %v4086
    %v4104 = vcombine.high %v4078, %v4086
    %v4106 = vunpack.c.l.s4 1934713408
    %v4107 = vunpack.c.0.s8 %v4106
    %v4108 = vlaneseq
    %v4109 = vshrl.u32 %v4108, 7
    %v4110 = vsub.s32 %v4107, %v4109
    %v4111 = vrot.slane %v4103, %v4110
    %v4113 = vunpack.c.l.s4 1934713408
    %v4114 = vunpack.c.0.s8 %v4113
    %v4115 = vlaneseq
    %v4116 = vshrl.u32 %v4115, 7
    %v4117 = vsub.s32 %v4114, %v4116
    %v4118 = vrot.slane %v4104, %v4117
    %v4119 = vcombine.low %v4095, %v4111
    %v4120 = vcombine.high %v4095, %v4111
    %v4121 = vcombine.low %v4102, %v4118
    %v4122 = vcombine.high %v4102, %v4118
    %v4123 = vcombine.low %v3891, %v3898
    %v4125 = vunpack.c.l.s4 1983009808
    %v4126 = vunpack.c.0.s8 %v4125
    %v4127 = vlaneseq
    %v4128 = vshrl.u32 %v4127, 7
    %v4129 = vsub.s32 %v4126, %v4128
    %v4130 = vrot.slane %v4123, %v4129
    %v4131 = vcombine.low %v3915, %v3916
    %v4133 = vunpack.c.l.s4 1983009808
    %v4134 = vunpack.c.0.s8 %v4133
    %v4135 = vlaneseq
    %v4136 = vshrl.u32 %v4135, 7
    %v4137 = vsub.s32 %v4134, %v4136
    %v4138 = vrot.slane %v4131, %v4137
    %v4139 = vcombine.low %v3907, %v3914
    %v4141 = vunpack.c.l.s4 1983009808
    %v4142 = vunpack.c.0.s8 %v4141
    %v4143 = vlaneseq
    %v4144 = vshrl.u32 %v4143, 7
    %v4145 = vsub.s32 %v4142, %v4144
    %v4146 = vrot.slane %v4139, %v4145
    %v4147 = vcombine.low %v3917, %v3918
    %v4149 = vunpack.c.l.s4 1983009808
    %v4150 = vunpack.c.0.s8 %v4149
    %v4151 = vlaneseq
    %v4152 = vshrl.u32 %v4151, 7
    %v4153 = vsub.s32 %v4150, %v4152
    %v4154 = vrot.slane %v4147, %v4153
    %v4155 = vcombine.low %v4130, %v4138
    %v4156 = vcombine.high %v4130, %v4138
    %v4158 = vunpack.c.l.s4 1934713408
    %v4159 = vunpack.c.0.s8 %v4158
    %v4160 = vlaneseq
    %v4161 = vshrl.u32 %v4160, 7
    %v4162 = vsub.s32 %v4159, %v4161
    %v4163 = vrot.slane %v4155, %v4162
    %v4165 = vunpack.c.l.s4 1934713408
    %v4166 = vunpack.c.0.s8 %v4165
    %v4167 = vlaneseq
    %v4168 = vshrl.u32 %v4167, 7
    %v4169 = vsub.s32 %v4166, %v4168
    %v4170 = vrot.slane %v4156, %v4169
    %v4171 = vcombine.low %v4146, %v4154
    %v4172 = vcombine.high %v4146, %v4154
    %v4174 = vunpack.c.l.s4 1934713408
    %v4175 = vunpack.c.0.s8 %v4174
    %v4176 = vlaneseq
    %v4177 = vshrl.u32 %v4176, 7
    %v4178 = vsub.s32 %v4175, %v4177
    %v4179 = vrot.slane %v4171, %v4178
    %v4181 = vunpack.c.l.s4 1934713408
    %v4182 = vunpack.c.0.s8 %v4181
    %v4183 = vlaneseq
    %v4184 = vshrl.u32 %v4183, 7
    %v4185 = vsub.s32 %v4182, %v4184
    %v4186 = vrot.slane %v4172, %v4185
    %v4187 = vcombine.low %v4163, %v4179
    %v4188 = vcombine.high %v4163, %v4179
    %v4189 = vcombine.low %v4170, %v4186
    %v4190 = vcombine.high %v4170, %v4186
    %v4191 = vcombine.low %v3959, %v3966
    %v4193 = vunpack.c.l.s4 1983009808
    %v4194 = vunpack.c.0.s8 %v4193
    %v4195 = vlaneseq
    %v4196 = vshrl.u32 %v4195, 7
    %v4197 = vsub.s32 %v4194, %v4196
    %v4198 = vrot.slane %v4191, %v4197
    %v4199 = vcombine.low %v3983, %v3984
    %v4201 = vunpack.c.l.s4 1983009808
    %v4202 = vunpack.c.0.s8 %v4201
    %v4203 = vlaneseq
    %v4204 = vshrl.u32 %v4203, 7
    %v4205 = vsub.s32 %v4202, %v4204
    %v4206 = vrot.slane %v4199, %v4205
    %v4207 = vcombine.low %v3975, %v3982
    %v4209 = vunpack.c.l.s4 1983009808
    %v4210 = vunpack.c.0.s8 %v4209
    %v4211 = vlaneseq
    %v4212 = vshrl.u32 %v4211, 7
    %v4213 = vsub.s32 %v4210, %v4212
    %v4214 = vrot.slane %v4207, %v4213
    %v4215 = vcombine.low %v3985, %v3986
    %v4217 = vunpack.c.l.s4 1983009808
    %v4218 = vunpack.c.0.s8 %v4217
    %v4219 = vlaneseq
    %v4220 = vshrl.u32 %v4219, 7
    %v4221 = vsub.s32 %v4218, %v4220
    %v4222 = vrot.slane %v4215, %v4221
    %v4223 = vcombine.low %v4198, %v4206
    %v4224 = vcombine.high %v4198, %v4206
    %v4226 = vunpack.c.l.s4 1934713408
    %v4227 = vunpack.c.0.s8 %v4226
    %v4228 = vlaneseq
    %v4229 = vshrl.u32 %v4228, 7
    %v4230 = vsub.s32 %v4227, %v4229
    %v4231 = vrot.slane %v4223, %v4230
    %v4233 = vunpack.c.l.s4 1934713408
    %v4234 = vunpack.c.0.s8 %v4233
    %v4235 = vlaneseq
    %v4236 = vshrl.u32 %v4235, 7
    %v4237 = vsub.s32 %v4234, %v4236
    %v4238 = vrot.slane %v4224, %v4237
    %v4239 = vcombine.low %v4214, %v4222
    %v4240 = vcombine.high %v4214, %v4222
    %v4242 = vunpack.c.l.s4 1934713408
    %v4243 = vunpack.c.0.s8 %v4242
    %v4244 = vlaneseq
    %v4245 = vshrl.u32 %v4244, 7
    %v4246 = vsub.s32 %v4243, %v4245
    %v4247 = vrot.slane %v4239, %v4246
    %v4249 = vunpack.c.l.s4 1934713408
    %v4250 = vunpack.c.0.s8 %v4249
    %v4251 = vlaneseq
    %v4252 = vshrl.u32 %v4251, 7
    %v4253 = vsub.s32 %v4250, %v4252
    %v4254 = vrot.slane %v4240, %v4253
    %v4255 = vcombine.low %v4231, %v4247
    %v4256 = vcombine.high %v4231, %v4247
    %v4257 = vcombine.low %v4238, %v4254
    %v4258 = vcombine.high %v4238, %v4254
    %v4259 = vcombine.low %v4027, %v4034
    %v4261 = vunpack.c.l.s4 1983009808
    %v4262 = vunpack.c.0.s8 %v4261
    %v4263 = vlaneseq
    %v4264 = vshrl.u32 %v4263, 7
    %v4265 = vsub.s32 %v4262, %v4264
    %v4266 = vrot.slane %v4259, %v4265
    %v4267 = vcombine.low %v4051, %v4052
    %v4269 = vunpack.c.l.s4 1983009808
    %v4270 = vunpack.c.0.s8 %v4269
    %v4271 = vlaneseq
    %v4272 = vshrl.u32 %v4271, 7
    %v4273 = vsub.s32 %v4270, %v4272
    %v4274 = vrot.slane %v4267, %v4273
    %v4275 = vcombine.low %v4043, %v4050
    %v4277 = vunpack.c.l.s4 1983009808
    %v4278 = vunpack.c.0.s8 %v4277
    %v4279 = vlaneseq
    %v4280 = vshrl.u32 %v4279, 7
    %v4281 = vsub.s32 %v4278, %v4280
    %v4282 = vrot.slane %v4275, %v4281
    %v4283 = vcombine.low %v4053, %v4054
    %v4285 = vunpack.c.l.s4 1983009808
    %v4286 = vunpack.c.0.s8 %v4285
    %v4287 = vlaneseq
    %v4288 = vshrl.u32 %v4287, 7
    %v4289 = vsub.s32 %v4286, %v4288
    %v4290 = vrot.slane %v4283, %v4289
    %v4291 = vcombine.low %v4266, %v4274
    %v4292 = vcombine.high %v4266, %v4274
    %v4294 = vunpack.c.l.s4 1934713408
    %v4295 = vunpack.c.0.s8 %v4294
    %v4296 = vlaneseq
    %v4297 = vshrl.u32 %v4296, 7
    %v4298 = vsub.s32 %v4295, %v4297
    %v4299 = vrot.slane %v4291, %v4298
    %v4301 = vunpack.c.l.s4 1934713408
    %v4302 = vunpack.c.0.s8 %v4301
    %v4303 = vlaneseq
    %v4304 = vshrl.u32 %v4303, 7
    %v4305 = vsub.s32 %v4302, %v4304
    %v4306 = vrot.slane %v4292, %v4305
    %v4307 = vcombine.low %v4282, %v4290
    %v4308 = vcombine.high %v4282, %v4290
    %v4310 = vunpack.c.l.s4 1934713408
    %v4311 = vunpack.c.0.s8 %v4310
    %v4312 = vlaneseq
    %v4313 = vshrl.u32 %v4312, 7
    %v4314 = vsub.s32 %v4311, %v4313
    %v4315 = vrot.slane %v4307, %v4314
    %v4317 = vunpack.c.l.s4 1934713408
    %v4318 = vunpack.c.0.s8 %v4317
    %v4319 = vlaneseq
    %v4320 = vshrl.u32 %v4319, 7
    %v4321 = vsub.s32 %v4318, %v4320
    %v4322 = vrot.slane %v4308, %v4321
    %v4323 = vcombine.low %v4299, %v4315
    %v4324 = vcombine.high %v4299, %v4315
    %v4325 = vcombine.low %v4306, %v4322
    %v4326 = vcombine.high %v4306, %v4322
    %4331 = vrot.lane.b32.xlu0 %v4120, 16
    %v4332 = vpop.permute.xlu0 %4331
    %4333 = vrot.lane.b32.xlu0 %v4188, 16
    %v4334 = vpop.permute.xlu0 %4333
    %4335 = vrot.lane.b32.xlu0 %v4256, 16
    %v4336 = vpop.permute.xlu0 %4335
    %4337 = vrot.lane.b32.xlu0 %v4324, 16
    %v4338 = vpop.permute.xlu0 %4337
    %4347 = vrot.lane.b32.xlu0 %v4121, 32
    %v4348 = vpop.permute.xlu0 %4347
    %4349 = vrot.lane.b32.xlu0 %v4189, 32
    %v4350 = vpop.permute.xlu0 %4349
    %4351 = vrot.lane.b32.xlu0 %v4257, 32
    %v4352 = vpop.permute.xlu0 %4351
    %4353 = vrot.lane.b32.xlu0 %v4325, 32
    %v4354 = vpop.permute.xlu0 %4353
    %4363 = vrot.lane.b32.xlu0 %v4122, 48
    %v4364 = vpop.permute.xlu0 %4363
    %4365 = vrot.lane.b32.xlu0 %v4190, 48
    %v4366 = vpop.permute.xlu0 %4365
    %4367 = vrot.lane.b32.xlu0 %v4258, 48
    %v4368 = vpop.permute.xlu0 %4367
    %4369 = vrot.lane.b32.xlu0 %v4326, 48
    %v4370 = vpop.permute.xlu0 %4369
    %v4375 = vsel %vm2082, %v4119, %v4332
    %v4376 = vsel %vm2082, %v4187, %v4334
    %v4377 = vsel %vm2082, %v4255, %v4336
    %v4378 = vsel %vm2082, %v4323, %v4338
    %vm4379 = vcmask 261120
    %v4380 = vsel %vm4379, %v4375, %v4348
    %v4381 = vsel %vm4379, %v4376, %v4350
    %v4382 = vsel %vm4379, %v4377, %v4352
    %v4383 = vsel %vm4379, %v4378, %v4354
    %vm4384 = vcmask 392192
    %v4385 = vsel %vm4384, %v4380, %v4364
    %v4386 = vsel %vm4384, %v4381, %v4366
    %v4387 = vsel %vm4384, %v4382, %v4368
    %v4388 = vsel %vm4384, %v4383, %v4370
    %v4389 = vpack.c.bf16 %v4386, %v4385
    %v4390 = vpack.c.bf16 %v4388, %v4387
    %v4391 = vld [vmem:[%s4] sm:$0xff]
    %v4392 = vld [vmem:[%s4 + $0x8] sm:$0xff]
    %v4393 = vld [vmem:[%s4 + $0x10] sm:$0xff]
    %v4394 = vld [vmem:[%s4 + $0x18] sm:$0xff]
    %v4395 = vld [vmem:[%s4 + $0x20] sm:$0xff]
    %v4396 = vld [vmem:[%s4 + $0x28] sm:$0xff]
    %v4397 = vld [vmem:[%s4 + $0x30] sm:$0xff]
    %v4398 = vld [vmem:[%s4 + $0x38] sm:$0xff]
    %v4399 = vpack.c.bf16 %v4392, %v4391
    %v4400 = vpack.c.bf16 %v4394, %v4393
    %v4401 = vpack.c.bf16 %v4396, %v4395
    %v4402 = vpack.c.bf16 %v4398, %v4397
    %v4404 = vsel %vm209, %v4389, 0
    %v4407 = vsel %vm209, %v4390, 0
    %4409 = vmatprep.subr.bf16.mxu0 0
    %4410 = vmatpush1.bf16.msra.mxu0 %v4399
    %4411 = vmatprep.subr.bf16.mxu0 0
    %4412 = vmatpush1.bf16.msra.mxu0 %v4400
    %4413 = vmatprep.subr.bf16.mxu0 0
    %4414 = vmatpush1.bf16.msra.mxu0 %v4401
    %4415 = vmatprep.subr.bf16.mxu0 0
    %4416 = vmatpush1.bf16.msra.mxu0 %v4402
    %4417 = vmatprep.subr.bf16.mxu0 0
    %4418 = vmatpush1.bf16.msra.mxu0 0
    %4419 = vmatprep.subr.bf16.mxu0 0
    %4420 = vmatpush1.bf16.msra.mxu0 0
    %4421 = vmatprep.subr.bf16.mxu0 0
    %4422 = vmatpush1.bf16.msra.mxu0 0
    %4423 = vmatprep.subr.bf16.mxu0 0
    %4424 = vmatpush1.bf16.msra.mxu0 0
    %4425 = vmatprep.subr.bf16.mxu0 0
    %4426 = vmatpush1.bf16.msra.mxu0 0
    %4427 = vmatprep.subr.bf16.mxu0 0
    %4428 = vmatpush1.bf16.msra.mxu0 0
    %4429 = vmatprep.subr.bf16.mxu0 0
    %4430 = vmatpush1.bf16.msra.mxu0 0
    %4431 = vmatprep.subr.bf16.mxu0 0
    %4432 = vmatpush1.bf16.msra.mxu0 0
    %4433 = vmatprep.subr.bf16.mxu0 0
    %4434 = vmatpush1.bf16.msra.mxu0 0
    %4435 = vmatprep.subr.bf16.mxu0 0
    %4436 = vmatpush1.bf16.msra.mxu0 0
    %4437 = vmatprep.subr.bf16.mxu0 0
    %4438 = vmatpush1.bf16.msra.mxu0 0
    %4439 = vmatprep.subr.bf16.mxu0 0
    %4440 = vmatpush1.bf16.msra.mxu0 0
    %4441 = vmatprep.mubr.bf16.mxu0 0
    %4442 = vmatmul.mubr.bf16.gmra.mrb[0].mxu0 %v4404
    %v4443 = vpop.f32.mrb[0].mxu0
    %v4444 = vadd.f32 %v88, %v4443
    %v4445 = vpop.f32.mrb[0].mxu0
    %v4446 = vpop.f32.mrb[0].mxu0
    %v4447 = vadd.f32 %v88, %v4446
    %v4448 = vpop.f32.mrb[0].mxu0
    %4449 = vmatprep.mubr.bf16.mxu0 0
    %4450 = vmatmul.mubr.bf16.gmra.mrb[0].mxu0 %v4407
    %v4451 = vpop.f32.mrb[0].mxu0
    %v4452 = vadd.f32 %v88, %v4451
    %v4453 = vpop.f32.mrb[0].mxu0
    %v4454 = vpop.f32.mrb[0].mxu0
    %v4455 = vadd.f32 %v88, %v4454
    %v4456 = vpop.f32.mrb[0].mxu0
    %4457 = vdwg.mxu0
    %v4458 = vadd.f32 %v158, %v4444
    %v4459 = vadd.f32 %v161, %v4447
    %v4460 = vadd.f32 %v166, %v4452
    %v4461 = vadd.f32 %v169, %v4455
    %v4462 = vsel %vm209, %v4458, 0.0
    %4463 = vadd.xlane.f32.xlu0 %v4462
    %v4464 = vpop.xlane.xlu0 %4463
    %v4465 = vsel %vm209, %v4459, 0.0
    %4466 = vadd.xlane.f32.xlu0 %v4465
    %v4467 = vpop.xlane.xlu0 %4466
    %v4468 = vsel %vm209, %v4460, 0.0
    %4469 = vadd.xlane.f32.xlu0 %v4468
    %v4470 = vpop.xlane.xlu0 %4469
    %v4471 = vsel %vm209, %v4461, 0.0
    %4472 = vadd.xlane.f32.xlu0 %v4471
    %v4473 = vpop.xlane.xlu0 %4472
    %v4474 = vrcp.pop 64.0
    %v4475 = vmul.f32 %v4464, %v4474
    %v4476 = vmul.f32 %v4467, %v4474
    %v4477 = vmul.f32 %v4470, %v4474
    %v4478 = vmul.f32 %v4473, %v4474
    %v4479 = vsub.f32 %v4458, %v4475
    %v4480 = vsub.f32 %v4459, %v4476
    %v4481 = vsub.f32 %v4460, %v4477
    %v4482 = vsub.f32 %v4461, %v4478
    %v4483 = vmul.f32 %v4479, %v4479
    %v4484 = vmul.f32 %v4480, %v4480
    %v4485 = vmul.f32 %v4481, %v4481
    %v4486 = vmul.f32 %v4482, %v4482
    %v4487 = vsel %vm209, %v4483, 0.0
    %4488 = vadd.xlane.f32.xlu0 %v4487
    %v4489 = vpop.xlane.xlu0 %4488
    %v4490 = vsel %vm209, %v4484, 0.0
    %4491 = vadd.xlane.f32.xlu0 %v4490
    %v4492 = vpop.xlane.xlu0 %4491
    %v4493 = vsel %vm209, %v4485, 0.0
    %4494 = vadd.xlane.f32.xlu0 %v4493
    %v4495 = vpop.xlane.xlu0 %4494
    %v4496 = vsel %vm209, %v4486, 0.0
    %4497 = vadd.xlane.f32.xlu0 %v4496
    %v4498 = vpop.xlane.xlu0 %4497
    %v4499 = vmul.f32 %v4489, %v4474
    %v4500 = vmul.f32 %v4492, %v4474
    %v4501 = vmul.f32 %v4495, %v4474
    %v4502 = vmul.f32 %v4498, %v4474
    %v4503 = vadd.f32 %v4499, 1e-05
    %v4504 = vadd.f32 %v4500, 1e-05
    %v4505 = vadd.f32 %v4501, 1e-05
    %v4506 = vadd.f32 %v4502, 1e-05
    %v4507 = vrsqrt.pop %v4503
    %v4508 = vrsqrt.pop %v4504
    %v4509 = vrsqrt.pop %v4505
    %v4510 = vrsqrt.pop %v4506
    %v4511 = vmul.f32 %v4479, %v4507
    %v4512 = vmul.f32 %v4480, %v4508
    %v4513 = vmul.f32 %v4481, %v4509
    %v4514 = vmul.f32 %v4482, %v4510
    %v4515 = vmul.f32 %v4511, %v89
    %v4516 = vmul.f32 %v4512, %v89
    %v4517 = vmul.f32 %v4513, %v89
    %v4518 = vmul.f32 %v4514, %v89
    %v4519 = vadd.f32 %v4515, %v90
    %v4520 = vadd.f32 %v4516, %v90
    %v4521 = vadd.f32 %v4517, %v90
    %v4522 = vadd.f32 %v4518, %v90
    %v4523 = vpack.c.bf16 %v4520, %v4519
    %v4524 = vpack.c.bf16 %v4522, %v4521
    %v4525 = vld [vmem:[#allocation7] sm:$0xff]
    %v4526 = vld [vmem:[#allocation7 + $0x8] sm:$0xff]
    %v4527 = vld [vmem:[#allocation7 + $0x10] sm:$0xff]
    %v4528 = vld [vmem:[#allocation7 + $0x18] sm:$0xff]
    %v4529 = vld [vmem:[#allocation7 + $0x20] sm:$0xff]
    %v4530 = vld [vmem:[#allocation7 + $0x28] sm:$0xff]
    %v4531 = vld [vmem:[#allocation7 + $0x30] sm:$0xff]
    %v4532 = vld [vmem:[#allocation7 + $0x38] sm:$0xff]
    %v4533 = vpack.c.bf16 %v4526, %v4525
    %v4534 = vpack.c.bf16 %v4528, %v4527
    %v4535 = vpack.c.bf16 %v4530, %v4529
    %v4536 = vpack.c.bf16 %v4532, %v4531
    %v4538 = vsel %vm209, %v4523, 0
    %v4541 = vsel %vm209, %v4524, 0
    %4543 = vmatprep.subr.bf16.mxu0 0
    %4544 = vmatpush1.bf16.msra.mxu0 %v4533
    %4545 = vmatprep.subr.bf16.mxu0 0
    %4546 = vmatpush1.bf16.msra.mxu0 %v4534
    %4547 = vmatprep.subr.bf16.mxu0 0
    %4548 = vmatpush1.bf16.msra.mxu0 %v4535
    %4549 = vmatprep.subr.bf16.mxu0 0
    %4550 = vmatpush1.bf16.msra.mxu0 %v4536
    %4551 = vmatprep.subr.bf16.mxu0 0
    %4552 = vmatpush1.bf16.msra.mxu0 0
    %4553 = vmatprep.subr.bf16.mxu0 0
    %4554 = vmatpush1.bf16.msra.mxu0 0
    %4555 = vmatprep.subr.bf16.mxu0 0
    %4556 = vmatpush1.bf16.msra.mxu0 0
    %4557 = vmatprep.subr.bf16.mxu0 0
    %4558 = vmatpush1.bf16.msra.mxu0 0
    %4559 = vmatprep.subr.bf16.mxu0 0
    %4560 = vmatpush1.bf16.msra.mxu0 0
    %4561 = vmatprep.subr.bf16.mxu0 0
    %4562 = vmatpush1.bf16.msra.mxu0 0
    %4563 = vmatprep.subr.bf16.mxu0 0
    %4564 = vmatpush1.bf16.msra.mxu0 0
    %4565 = vmatprep.subr.bf16.mxu0 0
    %4566 = vmatpush1.bf16.msra.mxu0 0
    %4567 = vmatprep.subr.bf16.mxu0 0
    %4568 = vmatpush1.bf16.msra.mxu0 0
    %4569 = vmatprep.subr.bf16.mxu0 0
    %4570 = vmatpush1.bf16.msra.mxu0 0
    %4571 = vmatprep.subr.bf16.mxu0 0
    %4572 = vmatpush1.bf16.msra.mxu0 0
    %4573 = vmatprep.subr.bf16.mxu0 0
    %4574 = vmatpush1.bf16.msra.mxu0 0
    %4575 = vmatprep.mubr.bf16.mxu0 0
    %4576 = vmatmul.mubr.bf16.gmra.mrb[0].mxu0 %v4538
    %v4577 = vpop.f32.mrb[0].mxu0
    %v4578 = vadd.f32 %v87, %v4577
    %v4579 = vpop.f32.mrb[0].mxu0
    %v4580 = vpop.f32.mrb[0].mxu0
    %v4581 = vadd.f32 %v87, %v4580
    %v4582 = vpop.f32.mrb[0].mxu0
    %4583 = vmatprep.mubr.bf16.mxu0 0
    %4584 = vmatmul.mubr.bf16.gmra.mrb[0].mxu0 %v4541
    %v4585 = vpop.f32.mrb[0].mxu0
    %v4586 = vadd.f32 %v87, %v4585
    %v4587 = vpop.f32.mrb[0].mxu0
    %v4588 = vpop.f32.mrb[0].mxu0
    %v4589 = vadd.f32 %v87, %v4588
    %v4590 = vpop.f32.mrb[0].mxu0
    %4591 = vdwg.mxu0
    %v4592 = vmax.f32 %v4578, 0.0
    %v4593 = vmax.f32 %v4581, 0.0
    %v4594 = vmax.f32 %v4586, 0.0
    %v4595 = vmax.f32 %v4589, 0.0
    %v4596 = vpack.c.bf16 %v4593, %v4592
    %v4597 = vpack.c.bf16 %v4595, %v4594
    %v4598 = vld [vmem:[%s6] sm:$0xff]
    %v4599 = vld [vmem:[%s6 + $0x8] sm:$0xff]
    %v4600 = vld [vmem:[%s6 + $0x10] sm:$0xff]
    %v4601 = vld [vmem:[%s6 + $0x18] sm:$0xff]
    %v4602 = vld [vmem:[%s6 + $0x20] sm:$0xff]
    %v4603 = vld [vmem:[%s6 + $0x28] sm:$0xff]
    %v4604 = vld [vmem:[%s6 + $0x30] sm:$0xff]
    %v4605 = vld [vmem:[%s6 + $0x38] sm:$0xff]
    %v4606 = vld [vmem:[%s6 + $0x40] sm:$0xff]
    %v4607 = vld [vmem:[%s6 + $0x48] sm:$0xff]
    %v4608 = vld [vmem:[%s6 + $0x50] sm:$0xff]
    %v4609 = vld [vmem:[%s6 + $0x58] sm:$0xff]
    %v4610 = vld [vmem:[%s6 + $0x60] sm:$0xff]
    %v4611 = vld [vmem:[%s6 + $0x68] sm:$0xff]
    %v4612 = vld [vmem:[%s6 + $0x70] sm:$0xff]
    %v4613 = vld [vmem:[%s6 + $0x78] sm:$0xff]
    %v4614 = vpack.c.bf16 %v4599, %v4598
    %v4615 = vpack.c.bf16 %v4601, %v4600
    %v4616 = vpack.c.bf16 %v4603, %v4602
    %v4617 = vpack.c.bf16 %v4605, %v4604
    %v4618 = vpack.c.bf16 %v4607, %v4606
    %v4619 = vpack.c.bf16 %v4609, %v4608
    %v4620 = vpack.c.bf16 %v4611, %v4610
    %v4621 = vpack.c.bf16 %v4613, %v4612
    %4622 = vmatprep.subr.bf16.mxu0 0
    %4623 = vmatpush1.bf16.msra.mxu0 %v4614
    %4624 = vmatprep.subr.bf16.mxu0 0
    %4625 = vmatpush1.bf16.msra.mxu0 %v4615
    %4626 = vmatprep.subr.bf16.mxu0 0
    %4627 = vmatpush1.bf16.msra.mxu0 %v4616
    %4628 = vmatprep.subr.bf16.mxu0 0
    %4629 = vmatpush1.bf16.msra.mxu0 %v4617
    %4630 = vmatprep.subr.bf16.mxu0 0
    %4631 = vmatpush1.bf16.msra.mxu0 %v4618
    %4632 = vmatprep.subr.bf16.mxu0 0
    %4633 = vmatpush1.bf16.msra.mxu0 %v4619
    %4634 = vmatprep.subr.bf16.mxu0 0
    %4635 = vmatpush1.bf16.msra.mxu0 %v4620
    %4636 = vmatprep.subr.bf16.mxu0 0
    %4637 = vmatpush1.bf16.msra.mxu0 %v4621
    %4638 = vmatprep.subr.bf16.mxu0 0
    %4639 = vmatpush1.bf16.msra.mxu0 0
    %4640 = vmatprep.subr.bf16.mxu0 0
    %4641 = vmatpush1.bf16.msra.mxu0 0
    %4642 = vmatprep.subr.bf16.mxu0 0
    %4643 = vmatpush1.bf16.msra.mxu0 0
    %4644 = vmatprep.subr.bf16.mxu0 0
    %4645 = vmatpush1.bf16.msra.mxu0 0
    %4646 = vmatprep.subr.bf16.mxu0 0
    %4647 = vmatpush1.bf16.msra.mxu0 0
    %4648 = vmatprep.subr.bf16.mxu0 0
    %4649 = vmatpush1.bf16.msra.mxu0 0
    %4650 = vmatprep.subr.bf16.mxu0 0
    %4651 = vmatpush1.bf16.msra.mxu0 0
    %4652 = vmatprep.subr.bf16.mxu0 0
    %4653 = vmatpush1.bf16.msra.mxu0 0
    %4654 = vmatprep.mubr.bf16.mxu0 0
    %4655 = vmatmul.mubr.bf16.gmra.mrb[0].mxu0 %v4596
    %v4656 = vpop.f32.mrb[0].mxu0
    %v4657 = vadd.f32 %v91, %v4656
    %v4658 = vpop.f32.mrb[0].mxu0
    %v4659 = vpop.f32.mrb[0].mxu0
    %v4660 = vadd.f32 %v91, %v4659
    %v4661 = vpop.f32.mrb[0].mxu0
    %4662 = vmatprep.mubr.bf16.mxu0 0
    %4663 = vmatmul.mubr.bf16.gmra.mrb[0].mxu0 %v4597
    %v4664 = vpop.f32.mrb[0].mxu0
    %v4665 = vadd.f32 %v91, %v4664
    %v4666 = vpop.f32.mrb[0].mxu0
    %v4667 = vpop.f32.mrb[0].mxu0
    %v4668 = vadd.f32 %v91, %v4667
    %v4669 = vpop.f32.mrb[0].mxu0
    %4670 = vdwg.mxu0
    %v4671 = vadd.f32 %v4519, %v4657
    %v4672 = vadd.f32 %v4520, %v4660
    %v4673 = vadd.f32 %v4521, %v4665
    %v4674 = vadd.f32 %v4522, %v4668
    %v4675 = vsel %vm209, %v4671, 0.0
    %4676 = vadd.xlane.f32.xlu0 %v4675
    %v4677 = vpop.xlane.xlu0 %4676
    %v4678 = vsel %vm209, %v4672, 0.0
    %4679 = vadd.xlane.f32.xlu0 %v4678
    %v4680 = vpop.xlane.xlu0 %4679
    %v4681 = vsel %vm209, %v4673, 0.0
    %4682 = vadd.xlane.f32.xlu0 %v4681
    %v4683 = vpop.xlane.xlu0 %4682
    %v4684 = vsel %vm209, %v4674, 0.0
    %4685 = vadd.xlane.f32.xlu0 %v4684
    %v4686 = vpop.xlane.xlu0 %4685
    %v4687 = vmul.f32 %v4677, %v4474
    %v4688 = vmul.f32 %v4680, %v4474
    %v4689 = vmul.f32 %v4683, %v4474
    %v4690 = vmul.f32 %v4686, %v4474
    %v4691 = vsub.f32 %v4671, %v4687
    %v4692 = vsub.f32 %v4672, %v4688
    %v4693 = vsub.f32 %v4673, %v4689
    %v4694 = vsub.f32 %v4674, %v4690
    %v4695 = vmul.f32 %v4691, %v4691
    %v4696 = vmul.f32 %v4692, %v4692
    %v4697 = vmul.f32 %v4693, %v4693
    %v4698 = vmul.f32 %v4694, %v4694
    %v4699 = vsel %vm209, %v4695, 0.0
    %4700 = vadd.xlane.f32.xlu0 %v4699
    %v4701 = vpop.xlane.xlu0 %4700
    %v4702 = vsel %vm209, %v4696, 0.0
    %4703 = vadd.xlane.f32.xlu0 %v4702
    %v4704 = vpop.xlane.xlu0 %4703
    %v4705 = vsel %vm209, %v4697, 0.0
    %4706 = vadd.xlane.f32.xlu0 %v4705
    %v4707 = vpop.xlane.xlu0 %4706
    %v4708 = vsel %vm209, %v4698, 0.0
    %4709 = vadd.xlane.f32.xlu0 %v4708
    %v4710 = vpop.xlane.xlu0 %4709
    %v4711 = vmul.f32 %v4701, %v4474
    %v4712 = vmul.f32 %v4704, %v4474
    %v4713 = vmul.f32 %v4707, %v4474
    %v4714 = vmul.f32 %v4710, %v4474
    %v4715 = vadd.f32 %v4711, 1e-05
    %v4716 = vadd.f32 %v4712, 1e-05
    %v4717 = vadd.f32 %v4713, 1e-05
    %v4718 = vadd.f32 %v4714, 1e-05
    %v4719 = vrsqrt.pop %v4715
    %v4720 = vrsqrt.pop %v4716
    %v4721 = vrsqrt.pop %v4717
    %v4722 = vrsqrt.pop %v4718
    %v4723 = vmul.f32 %v4691, %v4719
    %v4724 = vmul.f32 %v4692, %v4720
    %v4725 = vmul.f32 %v4693, %v4721
    %v4726 = vmul.f32 %v4694, %v4722
    %v4727 = vmul.f32 %v4723, %v92
    %v4728 = vmul.f32 %v4724, %v92
    %v4729 = vmul.f32 %v4725, %v92
    %v4730 = vmul.f32 %v4726, %v92
    %v4731 = vadd.f32 %v4727, %v93
    %v4732 = vadd.f32 %v4728, %v93
    %v4733 = vadd.f32 %v4729, %v93
    %v4734 = vadd.f32 %v4730, %v93
    %v4735 = vmul.f32 %v4731, %v94
    %v4736 = vmul.f32 %v4732, %v94
    %v4737 = vmul.f32 %v4733, %v94
    %v4738 = vmul.f32 %v4734, %v94
    %v4739 = vsel %vm209, %v4735, 0.0
    %4740 = vadd.xlane.f32.xlu0 %v4739
    %v4741 = vpop.xlane.xlu0 %4740
    %v4742 = vsel %vm209, %v4736, 0.0
    %4743 = vadd.xlane.f32.xlu0 %v4742
    %v4744 = vpop.xlane.xlu0 %4743
    %v4745 = vsel %vm209, %v4737, 0.0
    %4746 = vadd.xlane.f32.xlu0 %v4745
    %v4747 = vpop.xlane.xlu0 %4746
    %v4748 = vsel %vm209, %v4738, 0.0
    %4749 = vadd.xlane.f32.xlu0 %v4748
    %v4750 = vpop.xlane.xlu0 %4749
    %4752 = vset.pattern.permute.xlu0 0
    %4753 = vperm.xlu0 %4752, %v95
    %v4754 = vpop.permute.xlu0 %4753
    %v4756 = vadd.f32 %v4741, %v4754
    %v4757 = vadd.f32 %v4744, %v4754
    %v4758 = vadd.f32 %v4747, %v4754
    %v4759 = vadd.f32 %v4750, %v4754
    %v4764 = vlaneseq
    %v4765 = vshrl.u32 %v4764, 7
    %v4766 = vsub.s32 %v2048, %v4765
    %v4767 = vrot.slane %v4756, %v4766
    %v4768 = vadd.s32 %v2048, 4294967288
    %v4769 = vlaneseq
    %v4770 = vshrl.u32 %v4769, 7
    %v4771 = vsub.s32 %v4768, %v4770
    %v4772 = vrot.slane %v4757, %v4771
    %vm4773 = vcmask 130112
    %v4774 = vsel %vm4773, %v4772, %v4767
    %v4775 = vadd.s32 %v2048, 4294967280
    %v4776 = vlaneseq
    %v4777 = vshrl.u32 %v4776, 7
    %v4778 = vsub.s32 %v4775, %v4777
    %v4779 = vrot.slane %v4758, %v4778
    %vm4780 = vcmask 195712
    %v4781 = vsel %vm4780, %v4779, %v4774
    %v4782 = vadd.s32 %v2048, 4294967272
    %v4783 = vlaneseq
    %v4784 = vshrl.u32 %v4783, 7
    %v4785 = vsub.s32 %v4782, %v4784
    %v4786 = vrot.slane %v4759, %v4785
    %vm4787 = vcmask 261312
    %v4788 = vsel %vm4787, %v4786, %v4781
    %vm4790 = vcmask 253952
    %4791 = vst.msk [vmem:[#allocation10] sm:$0x1] %vm4790, %v4788
    // Predicated region
    $region50: #{tpu_custom_call.1} parent=1 // pred_check
      _
    $region51: #{tpu_custom_call.1} parent=1 // pred_check_branch
      %4793 = sbr.rel (0) target = $region53
    $region52: #{tpu_custom_call.1} parent=1 // pred_region
      %s4795 = ssub.s32 16, 16
      %4796 = vsyncadd [#allocation4], %s4795
      %s4798 = sshll.u32 [#allocation10], 4
      %s4799 = int_to_ptr.vmem [resolvable:$true] %s4798
      %4801 = dma.vmem_to_hbm [thread:$0]  %s4799, 16, %s8, [#allocation4]
    $region53: #{tpu_custom_call.1} parent=1 // pred_fallthru
      _
    // Predicated region
    $region54: #{tpu_custom_call.1} parent=1 // pred_check
      _
    $region55: #{tpu_custom_call.1} parent=1 // pred_check_branch
      %4803 = sbr.rel (0) target = $region57
    $region56: #{tpu_custom_call.1} parent=1 // pred_region
      %4804 = dma.done [#allocation4], 16
    $region57: #{tpu_custom_call.1} parent=1 // pred_fallthru
      _
    %4805 = vsyncpa [#allocation3], 1
    %4806 = vsyncpa [#allocation6], 1
    %4807 = vsyncpa [#allocation9], 1
    %4808 = vsyncpa [#allocation4], 1

</llo_original>
